<compile_context>
chip_gen: v7x
topology: tpu7x:2x2x1
jax: 0.10.0
libtpu: 0.0.40
codegen_flags: <defaults>
</compile_context>

<pallas_src>
import functools

import jax
import jax.numpy as jnp
import numpy as np
from jax.experimental import pallas as pl
from jax.experimental.pallas import tpu as pltpu

SCALES = (4, 8, 16, 32)
NEG_SLOPE = 0.2


def _leaky(x):
    return jnp.where(x >= 0, x, NEG_SLOPE * x)


def pyramid_pooling_kernel(x_ref, pm_ref, gc_ref, b_ref, pr_ref, pc_ref, ur_ref, gsu_ref,
                           out_ref, *, h):
    # x_ref   : (Nb*H, C*W)        feats, channels interleaved along lanes
    # pm_ref  : (C*W, S*W)         fused stage 1x1-conv matrix (block (c,s) = ws[s,c] * I_W)
    # gc_ref  : (C*W, Co*W)        bottleneck scatter for raw channels (block = wb[o,S+c]*I_W)
    # b_ref   : (1, Co*W)          bottleneck bias, replicated per W-lane block
    # pr_ref  : (S, Hp, H)  f32    row avg-pool operators (zero-padded to Hp rows)
    # pc_ref  : (S, W, Wp)  f32    column avg-pool operators, transposed (padded to Wp cols)
    # ur_ref  : (S, H, Hp)  f32    row nearest-upsample operators
    # gsu_ref : (S, Wp, Co*W)      column-upsample folded into per-stage bottleneck scatter
    # out_ref : (Nb*H, Co*W)
    n_scales = pr_ref.shape[0]
    w = pc_ref.shape[1]
    nb = x_ref.shape[0] // h

    xf = x_ref[...]                                                       # (Nb*H, C*W)
    # Raw-channel bottleneck contribution + bias: one full-M MXU matmul, bias folded once.
    acc = jnp.dot(xf, gc_ref[...], preferred_element_type=jnp.float32) + b_ref[...]
    # All S stage 1x1 convs fused into a single full-M, 128-lane MXU matmul.
    proj_all = jnp.dot(xf, pm_ref[...], preferred_element_type=jnp.float32)  # (Nb*H, S*W)

    # Tiny per-scale operators, loaded once per grid step (hoisted out of the batch loop).
    p_rows = [pr_ref[s] for s in range(n_scales)]
    p_cols = [pc_ref[s] for s in range(n_scales)]
    u_rows = [ur_ref[s] for s in range(n_scales)]
    gsus = [gsu_ref[s] for s in range(n_scales)]

    for b in range(nb):
        r0 = b * h
        acc_b = acc[r0:r0 + h]                                            # (H, Co*W)
        for s in range(n_scales):
            proj = proj_all[r0:r0 + h, s * w:(s + 1) * w]                 # (H, W)
            # Factored avg-pool: rectangular row / column operators, padded to (Hp, Wp).
            pooled = jnp.dot(
                jnp.dot(p_rows[s], proj, preferred_element_type=jnp.float32),
                p_cols[s], preferred_element_type=jnp.float32)            # (Hp, Wp)
            act = _leaky(pooled)                     # stage LeakyReLU at pooled resolution
            # Column-upsample folded into gsu; row-upsample applied to the contribution.
            contrib = jnp.dot(
                u_rows[s],
                jnp.dot(act, gsus[s], preferred_element_type=jnp.float32),
                preferred_element_type=jnp.float32)                       # (H, Co*W)
            acc_b = acc_b + contrib
        # Lane-dense, unmasked store (full Co*W lanes, H rows = multiple of 8 sublanes).
        out_ref[r0:r0 + h, :] = _leaky(acc_b).astype(out_ref.dtype)


def pyramid_pooling(feats, ws, wb, bias, scales=SCALES, batch_block=1):
    N, C, H, W = feats.shape
    S = len(scales)
    C_out = wb.shape[0]
    s_min = min(scales)
    Hp, Wp = H // s_min, W // s_min
    assert all(H % s == 0 and W % s == 0 for s in scales)
    assert N % batch_block == 0, "batch_block must divide N"
    assert (batch_block * H) % 8 == 0, "row block must be a multiple of 8 sublanes"

    # ---------------- wrapper-side layout plumbing (XLA ops, not kernel work) ----------------
    # x_wide[n*H + h, c*W + w] = feats[n, c, h, w]   -> lane-dense last dim (C*W)
    x_wide = jnp.transpose(feats, (0, 2, 1, 3)).reshape(N * H, C * W)

    ws_f = ws.astype(jnp.float32)          # (S, C)
    wb_f = wb.astype(jnp.float32)          # (C_out, S + C)
    eye_w = jnp.eye(W, dtype=jnp.float32)

    # Fused stage-projection matrix (C*W, S*W): block (c, s) = ws[s, c] * I_W.
    pm_all = (ws_f.T[:, None, :, None] * eye_w[None, :, None, :]).reshape(C * W, S * W)
    # Raw-channel bottleneck scatter (C*W, Co*W): block (c, o) = wb[o, S+c] * I_W.
    gc = (wb_f[:, S:].T[:, None, :, None] * eye_w[None, :, None, :]).reshape(C * W, C_out * W)
    bias_wide = jnp.repeat(bias.astype(jnp.float32), W)[None, :]           # (1, Co*W)
    # TODO(synk): for production W >= 128 switch the block-identity pm_all/gc/gsu to the flat
    # (S+C, H*W)-slab bottleneck contraction (K = S+C) to avoid W-fold zero padding on the MXU.

    # Factored pool / nearest-upsample operators, zero-padded to a common (Hp, Wp) pooled
    # shape.  Padding is exact: padded pooled entries are 0, LeakyReLU(0)=0 and the padded
    # columns of u_row / rows of gsu are 0, so they contribute nothing.
    p_row_np = np.zeros((S, Hp, H), np.float32)
    p_colT_np = np.zeros((S, W, Wp), np.float32)
    u_row_np = np.zeros((S, H, Hp), np.float32)
    e_col_np = np.zeros((S, Wp, W), np.float32)
    rows, cols = np.arange(H), np.arange(W)
    for si, s in enumerate(scales):
        p_row_np[si, rows // s, rows] = 1.0 / s      # (H/s, H) row averaging
        p_colT_np[si, cols, cols // s] = 1.0 / s     # (W, W/s) column averaging (transposed)
        u_row_np[si, rows, rows // s] = 1.0          # (H, H/s) row nearest-upsample
        e_col_np[si, cols // s, cols] = 1.0          # (W/s, W) column nearest-upsample
    p_row = jnp.asarray(p_row_np)
    p_colT = jnp.asarray(p_colT_np)
    u_row = jnp.asarray(u_row_np)
    # gsu[s] = E_col_s @ gs_s  (column-upsample folded into the per-stage bottleneck scatter):
    # gsu[s, j, o*W + w] = wb[o, s] * E_col_s[j, w]
    gsu = (wb_f[:, :S].T[:, None, :, None]
           * jnp.asarray(e_col_np)[:, :, None, :]).reshape(S, Wp, C_out * W)

    kernel = functools.partial(pyramid_pooling_kernel, h=H)
    out_shape = jax.ShapeDtypeStruct((N * H, C_out * W), feats.dtype)
    operands = (x_wide, pm_all, gc, bias_wide, p_row, p_colT, u_row, gsu)

    def build(single_buffer_consts):
        # Grid-invariant operands: their block index never changes, so default double
        # buffering only wastes VMEM (matters on v7x's 64 MiB) -> single-buffer them.
        ckw = {"pipeline_mode": pl.Buffered(1)} if single_buffer_consts else {}
        grid_spec = pltpu.PrefetchScalarGridSpec(
            num_scalar_prefetch=0,
            grid=(N // batch_block,),
            in_specs=[
                pl.BlockSpec((batch_block * H, C * W), lambda n: (n, 0)),
                pl.BlockSpec((C * W, S * W), lambda n: (0, 0), **ckw),
                pl.BlockSpec((C * W, C_out * W), lambda n: (0, 0), **ckw),
                pl.BlockSpec((1, C_out * W), lambda n: (0, 0), **ckw),
                pl.BlockSpec((S, Hp, H), lambda n: (0, 0, 0), **ckw),
                pl.BlockSpec((S, W, Wp), lambda n: (0, 0, 0), **ckw),
                pl.BlockSpec((S, H, Hp), lambda n: (0, 0, 0), **ckw),
                pl.BlockSpec((S, Wp, C_out * W), lambda n: (0, 0, 0), **ckw),
            ],
            out_specs=pl.BlockSpec((batch_block * H, C_out * W), lambda n: (n, 0)),
        )
        return pl.pallas_call(
            kernel,
            out_shape=out_shape,
            grid_spec=grid_spec,
            # Batch axis "parallel" (grid length N//batch_block >= 2 so both v7x TensorCores
            # get work); explicit scoped-VMEM limit (raise it when batch_block grows on v6e,
            # budget against 16 MiB default / 64 MiB physical on v5e / v7x respectively).
            compiler_params=pltpu.CompilerParams(
                dimension_semantics=("parallel",),
                vmem_limit_bytes=48 * 1024 * 1024,
            ),
        )

    try:
        out_wide = build(True)(*operands)
    except Exception:  # pl.Buffered(1) unsupported on this jax/libtpu -> default buffering.
        out_wide = build(False)(*operands)

    # Un-interleave: (N*H, C_out*W) -> (N, C_out, H, W)  (layout plumbing).
    return jnp.transpose(out_wide.reshape(N, H, C_out, W), (0, 2, 1, 3))


def ref_forward(feats, ws, wb, bias, scales=SCALES):
    """Pure-JAX reference matching the PyTorch module exactly."""
    N, C, H, W = feats.shape
    priors = []
    for i, s in enumerate(scales):
        pooled = feats.reshape(N, C, H // s, s, W // s, s).mean(axis=(3, 5))
        conv = jnp.einsum('nchw,c->nhw', pooled, ws[i])[:, None]            # 1x1 conv, no bias
        act = jnp.where(conv >= 0, conv, NEG_SLOPE * conv)
        up = jnp.repeat(jnp.repeat(act, s, axis=2), s, axis=3)              # nearest upsample
        priors.append(up)
    priors.append(feats)
    cat = jnp.concatenate(priors, axis=1)                                   # (N, S+C, H, W)
    out = jnp.einsum('nkhw,ok->nohw', cat, wb) + bias[None, :, None, None]
    return jnp.where(out >= 0, out, NEG_SLOPE * out)


if __name__ == "__main__":
    key = jax.random.PRNGKey(0)
    k1, k2, k3, k4 = jax.random.split(key, 4)

    # spatial must be divisible by the largest scale (32)
    N, C_in, H, W = 2, 4, 32, 32
    C_out = 8
    S = len(SCALES)

    feats = jax.random.normal(k1, (N, C_in, H, W), jnp.float32)
    ws = jax.random.normal(k2, (S, C_in), jnp.float32) * 0.5          # stage 1x1 conv weights
    wb = jax.random.normal(k3, (C_out, S + C_in), jnp.float32) * 0.3  # bottleneck weight
    bias = jax.random.normal(k4, (C_out,), jnp.float32) * 0.1         # bottleneck bias

    # batch_block=1 -> grid of 2 steps (keeps both v7x TensorCores busy on the parallel axis).
    out = jax.block_until_ready(pyramid_pooling(feats, ws, wb, bias, batch_block=1))
    ref = jax.block_until_ready(ref_forward(feats, ws, wb, bias))

    assert out.shape == (N, C_out, H, W)
    np.testing.assert_allclose(np.asarray(out), np.asarray(ref), rtol=2e-4, atol=2e-4)
    print("KERNEL_OK")
</pallas_src>

<mosaic_0001>
module attributes {stable_mosaic.version = 11 : i64} {
  func.func @pyramid_pooling_kernel(%arg0: i32, %arg1: memref<32x128xf32, #tpu.memory_space<vmem>>, %arg2: memref<128x128xf32, #tpu.memory_space<vmem>>, %arg3: memref<128x256xf32, #tpu.memory_space<vmem>>, %arg4: memref<1x256xf32, #tpu.memory_space<vmem>>, %arg5: memref<4x8x32xf32, #tpu.memory_space<vmem>>, %arg6: memref<4x32x8xf32, #tpu.memory_space<vmem>>, %arg7: memref<4x32x8xf32, #tpu.memory_space<vmem>>, %arg8: memref<4x8x256xf32, #tpu.memory_space<vmem>>, %arg9: memref<32x256xf32, #tpu.memory_space<vmem>>) attributes {dimension_semantics = [#tpu.dimension_semantics<parallel>], iteration_bounds = array<i64: 2>, scalar_prefetch = 0 : i64, scratch_operands = 0 : i64, tpu.core_type = #tpu.core_type<tc>, window_params = [{transform_indices = @transform_0, window_bounds = array<i64: 32, 128>}, {pipeline_mode = #tpu.pipeline_mode<synchronous>, transform_indices = @transform_1, window_bounds = array<i64: 128, 128>}, {pipeline_mode = #tpu.pipeline_mode<synchronous>, transform_indices = @transform_2, window_bounds = array<i64: 128, 256>}, {pipeline_mode = #tpu.pipeline_mode<synchronous>, transform_indices = @transform_3, window_bounds = array<i64: 1, 256>}, {pipeline_mode = #tpu.pipeline_mode<synchronous>, transform_indices = @transform_4, window_bounds = array<i64: 4, 8, 32>}, {pipeline_mode = #tpu.pipeline_mode<synchronous>, transform_indices = @transform_5, window_bounds = array<i64: 4, 32, 8>}, {pipeline_mode = #tpu.pipeline_mode<synchronous>, transform_indices = @transform_6, window_bounds = array<i64: 4, 32, 8>}, {pipeline_mode = #tpu.pipeline_mode<synchronous>, transform_indices = @transform_7, window_bounds = array<i64: 4, 8, 256>}, {transform_indices = @transform_8, window_bounds = array<i64: 32, 256>}]} {
    %c0 = arith.constant 0 : index
    %c0_0 = arith.constant 0 : index
    %0 = vector.load %arg1[%c0, %c0_0] : memref<32x128xf32, #tpu.memory_space<vmem>>, vector<32x128xf32>
    %c0_1 = arith.constant 0 : index
    %c0_2 = arith.constant 0 : index
    %1 = vector.load %arg3[%c0_1, %c0_2] : memref<128x256xf32, #tpu.memory_space<vmem>>, vector<128x256xf32>
    %cst = arith.constant dense<0.000000e+00> : vector<32x256xf32>
    %2 = tpu.matmul %0, %1, %cst {dimension_numbers = #tpu.dot_dimension_numbers<[1], [0], [0], [1], [0, 0, 1, 1], [], []>} : vector<32x128xf32>, vector<128x256xf32>, vector<32x256xf32> -> vector<32x256xf32>
    %c0_3 = arith.constant 0 : index
    %c0_4 = arith.constant 0 : index
    %3 = vector.load %arg4[%c0_3, %c0_4] : memref<1x256xf32, #tpu.memory_space<vmem>>, vector<1x256xf32>
    %4 = vector.broadcast %3 : vector<1x256xf32> to vector<32x256xf32>
    %5 = arith.addf %2, %4 : vector<32x256xf32>
    %c0_5 = arith.constant 0 : index
    %c0_6 = arith.constant 0 : index
    %6 = vector.load %arg2[%c0_5, %c0_6] : memref<128x128xf32, #tpu.memory_space<vmem>>, vector<128x128xf32>
    %cst_7 = arith.constant dense<0.000000e+00> : vector<32x128xf32>
    %7 = tpu.matmul %0, %6, %cst_7 {dimension_numbers = #tpu.dot_dimension_numbers<[1], [0], [0], [1], [0, 0, 1, 1], [], []>} : vector<32x128xf32>, vector<128x128xf32>, vector<32x128xf32> -> vector<32x128xf32>
    %c0_8 = arith.constant 0 : index
    %c0_9 = arith.constant 0 : index
    %c0_10 = arith.constant 0 : index
    %8 = vector.load %arg5[%c0_8, %c0_9, %c0_10] : memref<4x8x32xf32, #tpu.memory_space<vmem>>, vector<1x8x32xf32>
    %9 = vector.shape_cast %8 : vector<1x8x32xf32> to vector<8x32xf32>
    %c1 = arith.constant 1 : index
    %c0_11 = arith.constant 0 : index
    %c0_12 = arith.constant 0 : index
    %10 = vector.load %arg5[%c1, %c0_11, %c0_12] : memref<4x8x32xf32, #tpu.memory_space<vmem>>, vector<1x8x32xf32>
    %11 = vector.shape_cast %10 : vector<1x8x32xf32> to vector<8x32xf32>
    %c2 = arith.constant 2 : index
    %c0_13 = arith.constant 0 : index
    %c0_14 = arith.constant 0 : index
    %12 = vector.load %arg5[%c2, %c0_13, %c0_14] : memref<4x8x32xf32, #tpu.memory_space<vmem>>, vector<1x8x32xf32>
    %13 = vector.shape_cast %12 : vector<1x8x32xf32> to vector<8x32xf32>
    %c3 = arith.constant 3 : index
    %c0_15 = arith.constant 0 : index
    %c0_16 = arith.constant 0 : index
    %14 = vector.load %arg5[%c3, %c0_15, %c0_16] : memref<4x8x32xf32, #tpu.memory_space<vmem>>, vector<1x8x32xf32>
    %15 = vector.shape_cast %14 : vector<1x8x32xf32> to vector<8x32xf32>
    %c0_17 = arith.constant 0 : index
    %c0_18 = arith.constant 0 : index
    %c0_19 = arith.constant 0 : index
    %16 = vector.load %arg6[%c0_17, %c0_18, %c0_19] : memref<4x32x8xf32, #tpu.memory_space<vmem>>, vector<1x32x8xf32>
    %17 = vector.shape_cast %16 : vector<1x32x8xf32> to vector<32x8xf32>
    %c1_20 = arith.constant 1 : index
    %c0_21 = arith.constant 0 : index
    %c0_22 = arith.constant 0 : index
    %18 = vector.load %arg6[%c1_20, %c0_21, %c0_22] : memref<4x32x8xf32, #tpu.memory_space<vmem>>, vector<1x32x8xf32>
    %19 = vector.shape_cast %18 : vector<1x32x8xf32> to vector<32x8xf32>
    %c2_23 = arith.constant 2 : index
    %c0_24 = arith.constant 0 : index
    %c0_25 = arith.constant 0 : index
    %20 = vector.load %arg6[%c2_23, %c0_24, %c0_25] : memref<4x32x8xf32, #tpu.memory_space<vmem>>, vector<1x32x8xf32>
    %21 = vector.shape_cast %20 : vector<1x32x8xf32> to vector<32x8xf32>
    %c3_26 = arith.constant 3 : index
    %c0_27 = arith.constant 0 : index
    %c0_28 = arith.constant 0 : index
    %22 = vector.load %arg6[%c3_26, %c0_27, %c0_28] : memref<4x32x8xf32, #tpu.memory_space<vmem>>, vector<1x32x8xf32>
    %23 = vector.shape_cast %22 : vector<1x32x8xf32> to vector<32x8xf32>
    %c0_29 = arith.constant 0 : index
    %c0_30 = arith.constant 0 : index
    %c0_31 = arith.constant 0 : index
    %24 = vector.load %arg7[%c0_29, %c0_30, %c0_31] : memref<4x32x8xf32, #tpu.memory_space<vmem>>, vector<1x32x8xf32>
    %25 = vector.shape_cast %24 : vector<1x32x8xf32> to vector<32x8xf32>
    %c1_32 = arith.constant 1 : index
    %c0_33 = arith.constant 0 : index
    %c0_34 = arith.constant 0 : index
    %26 = vector.load %arg7[%c1_32, %c0_33, %c0_34] : memref<4x32x8xf32, #tpu.memory_space<vmem>>, vector<1x32x8xf32>
    %27 = vector.shape_cast %26 : vector<1x32x8xf32> to vector<32x8xf32>
    %c2_35 = arith.constant 2 : index
    %c0_36 = arith.constant 0 : index
    %c0_37 = arith.constant 0 : index
    %28 = vector.load %arg7[%c2_35, %c0_36, %c0_37] : memref<4x32x8xf32, #tpu.memory_space<vmem>>, vector<1x32x8xf32>
    %29 = vector.shape_cast %28 : vector<1x32x8xf32> to vector<32x8xf32>
    %c3_38 = arith.constant 3 : index
    %c0_39 = arith.constant 0 : index
    %c0_40 = arith.constant 0 : index
    %30 = vector.load %arg7[%c3_38, %c0_39, %c0_40] : memref<4x32x8xf32, #tpu.memory_space<vmem>>, vector<1x32x8xf32>
    %31 = vector.shape_cast %30 : vector<1x32x8xf32> to vector<32x8xf32>
    %c0_41 = arith.constant 0 : index
    %c0_42 = arith.constant 0 : index
    %c0_43 = arith.constant 0 : index
    %32 = vector.load %arg8[%c0_41, %c0_42, %c0_43] : memref<4x8x256xf32, #tpu.memory_space<vmem>>, vector<1x8x256xf32>
    %33 = vector.shape_cast %32 : vector<1x8x256xf32> to vector<8x256xf32>
    %c1_44 = arith.constant 1 : index
    %c0_45 = arith.constant 0 : index
    %c0_46 = arith.constant 0 : index
    %34 = vector.load %arg8[%c1_44, %c0_45, %c0_46] : memref<4x8x256xf32, #tpu.memory_space<vmem>>, vector<1x8x256xf32>
    %35 = vector.shape_cast %34 : vector<1x8x256xf32> to vector<8x256xf32>
    %c2_47 = arith.constant 2 : index
    %c0_48 = arith.constant 0 : index
    %c0_49 = arith.constant 0 : index
    %36 = vector.load %arg8[%c2_47, %c0_48, %c0_49] : memref<4x8x256xf32, #tpu.memory_space<vmem>>, vector<1x8x256xf32>
    %37 = vector.shape_cast %36 : vector<1x8x256xf32> to vector<8x256xf32>
    %c3_50 = arith.constant 3 : index
    %c0_51 = arith.constant 0 : index
    %c0_52 = arith.constant 0 : index
    %38 = vector.load %arg8[%c3_50, %c0_51, %c0_52] : memref<4x8x256xf32, #tpu.memory_space<vmem>>, vector<1x8x256xf32>
    %39 = vector.shape_cast %38 : vector<1x8x256xf32> to vector<8x256xf32>
    %40 = vector.extract_strided_slice %7 {offsets = [0, 0], sizes = [32, 32], strides = [1, 1]} : vector<32x128xf32> to vector<32x32xf32>
    %cst_53 = arith.constant dense<0.000000e+00> : vector<8x32xf32>
    %41 = tpu.matmul %9, %40, %cst_53 {dimension_numbers = #tpu.dot_dimension_numbers<[1], [0], [0], [1], [0, 0, 1, 1], [], []>} : vector<8x32xf32>, vector<32x32xf32>, vector<8x32xf32> -> vector<8x32xf32>
    %cst_54 = arith.constant dense<0.000000e+00> : vector<8x8xf32>
    %42 = tpu.matmul %41, %17, %cst_54 {dimension_numbers = #tpu.dot_dimension_numbers<[1], [0], [0], [1], [0, 0, 1, 1], [], []>} : vector<8x32xf32>, vector<32x8xf32>, vector<8x8xf32> -> vector<8x8xf32>
    %cst_55 = arith.constant 0.000000e+00 : f32
    %43 = vector.broadcast %cst_55 : f32 to vector<8x8xf32>
    %44 = arith.cmpf oge, %42, %43 : vector<8x8xf32>
    %cst_56 = arith.constant 2.000000e-01 : f32
    %45 = vector.broadcast %cst_56 : f32 to vector<8x8xf32>
    %46 = arith.mulf %45, %42 : vector<8x8xf32>
    %47 = arith.select %44, %42, %46 : vector<8x8xi1>, vector<8x8xf32>
    %cst_57 = arith.constant dense<0.000000e+00> : vector<8x256xf32>
    %48 = tpu.matmul %47, %33, %cst_57 {dimension_numbers = #tpu.dot_dimension_numbers<[1], [0], [0], [1], [0, 0, 1, 1], [], []>} : vector<8x8xf32>, vector<8x256xf32>, vector<8x256xf32> -> vector<8x256xf32>
    %cst_58 = arith.constant dense<0.000000e+00> : vector<32x256xf32>
    %49 = tpu.matmul %25, %48, %cst_58 {dimension_numbers = #tpu.dot_dimension_numbers<[1], [0], [0], [1], [0, 0, 1, 1], [], []>} : vector<32x8xf32>, vector<8x256xf32>, vector<32x256xf32> -> vector<32x256xf32>
    %50 = arith.addf %5, %49 : vector<32x256xf32>
    %51 = vector.extract_strided_slice %7 {offsets = [0, 32], sizes = [32, 32], strides = [1, 1]} : vector<32x128xf32> to vector<32x32xf32>
    %cst_59 = arith.constant dense<0.000000e+00> : vector<8x32xf32>
    %52 = tpu.matmul %11, %51, %cst_59 {dimension_numbers = #tpu.dot_dimension_numbers<[1], [0], [0], [1], [0, 0, 1, 1], [], []>} : vector<8x32xf32>, vector<32x32xf32>, vector<8x32xf32> -> vector<8x32xf32>
    %cst_60 = arith.constant dense<0.000000e+00> : vector<8x8xf32>
    %53 = tpu.matmul %52, %19, %cst_60 {dimension_numbers = #tpu.dot_dimension_numbers<[1], [0], [0], [1], [0, 0, 1, 1], [], []>} : vector<8x32xf32>, vector<32x8xf32>, vector<8x8xf32> -> vector<8x8xf32>
    %cst_61 = arith.constant 0.000000e+00 : f32
    %54 = vector.broadcast %cst_61 : f32 to vector<8x8xf32>
    %55 = arith.cmpf oge, %53, %54 : vector<8x8xf32>
    %cst_62 = arith.constant 2.000000e-01 : f32
    %56 = vector.broadcast %cst_62 : f32 to vector<8x8xf32>
    %57 = arith.mulf %56, %53 : vector<8x8xf32>
    %58 = arith.select %55, %53, %57 : vector<8x8xi1>, vector<8x8xf32>
    %cst_63 = arith.constant dense<0.000000e+00> : vector<8x256xf32>
    %59 = tpu.matmul %58, %35, %cst_63 {dimension_numbers = #tpu.dot_dimension_numbers<[1], [0], [0], [1], [0, 0, 1, 1], [], []>} : vector<8x8xf32>, vector<8x256xf32>, vector<8x256xf32> -> vector<8x256xf32>
    %cst_64 = arith.constant dense<0.000000e+00> : vector<32x256xf32>
    %60 = tpu.matmul %27, %59, %cst_64 {dimension_numbers = #tpu.dot_dimension_numbers<[1], [0], [0], [1], [0, 0, 1, 1], [], []>} : vector<32x8xf32>, vector<8x256xf32>, vector<32x256xf32> -> vector<32x256xf32>
    %61 = arith.addf %50, %60 : vector<32x256xf32>
    %62 = vector.extract_strided_slice %7 {offsets = [0, 64], sizes = [32, 32], strides = [1, 1]} : vector<32x128xf32> to vector<32x32xf32>
    %cst_65 = arith.constant dense<0.000000e+00> : vector<8x32xf32>
    %63 = tpu.matmul %13, %62, %cst_65 {dimension_numbers = #tpu.dot_dimension_numbers<[1], [0], [0], [1], [0, 0, 1, 1], [], []>} : vector<8x32xf32>, vector<32x32xf32>, vector<8x32xf32> -> vector<8x32xf32>
    %cst_66 = arith.constant dense<0.000000e+00> : vector<8x8xf32>
    %64 = tpu.matmul %63, %21, %cst_66 {dimension_numbers = #tpu.dot_dimension_numbers<[1], [0], [0], [1], [0, 0, 1, 1], [], []>} : vector<8x32xf32>, vector<32x8xf32>, vector<8x8xf32> -> vector<8x8xf32>
    %cst_67 = arith.constant 0.000000e+00 : f32
    %65 = vector.broadcast %cst_67 : f32 to vector<8x8xf32>
    %66 = arith.cmpf oge, %64, %65 : vector<8x8xf32>
    %cst_68 = arith.constant 2.000000e-01 : f32
    %67 = vector.broadcast %cst_68 : f32 to vector<8x8xf32>
    %68 = arith.mulf %67, %64 : vector<8x8xf32>
    %69 = arith.select %66, %64, %68 : vector<8x8xi1>, vector<8x8xf32>
    %cst_69 = arith.constant dense<0.000000e+00> : vector<8x256xf32>
    %70 = tpu.matmul %69, %37, %cst_69 {dimension_numbers = #tpu.dot_dimension_numbers<[1], [0], [0], [1], [0, 0, 1, 1], [], []>} : vector<8x8xf32>, vector<8x256xf32>, vector<8x256xf32> -> vector<8x256xf32>
    %cst_70 = arith.constant dense<0.000000e+00> : vector<32x256xf32>
    %71 = tpu.matmul %29, %70, %cst_70 {dimension_numbers = #tpu.dot_dimension_numbers<[1], [0], [0], [1], [0, 0, 1, 1], [], []>} : vector<32x8xf32>, vector<8x256xf32>, vector<32x256xf32> -> vector<32x256xf32>
    %72 = arith.addf %61, %71 : vector<32x256xf32>
    %73 = vector.extract_strided_slice %7 {offsets = [0, 96], sizes = [32, 32], strides = [1, 1]} : vector<32x128xf32> to vector<32x32xf32>
    %cst_71 = arith.constant dense<0.000000e+00> : vector<8x32xf32>
    %74 = tpu.matmul %15, %73, %cst_71 {dimension_numbers = #tpu.dot_dimension_numbers<[1], [0], [0], [1], [0, 0, 1, 1], [], []>} : vector<8x32xf32>, vector<32x32xf32>, vector<8x32xf32> -> vector<8x32xf32>
    %cst_72 = arith.constant dense<0.000000e+00> : vector<8x8xf32>
    %75 = tpu.matmul %74, %23, %cst_72 {dimension_numbers = #tpu.dot_dimension_numbers<[1], [0], [0], [1], [0, 0, 1, 1], [], []>} : vector<8x32xf32>, vector<32x8xf32>, vector<8x8xf32> -> vector<8x8xf32>
    %cst_73 = arith.constant 0.000000e+00 : f32
    %76 = vector.broadcast %cst_73 : f32 to vector<8x8xf32>
    %77 = arith.cmpf oge, %75, %76 : vector<8x8xf32>
    %cst_74 = arith.constant 2.000000e-01 : f32
    %78 = vector.broadcast %cst_74 : f32 to vector<8x8xf32>
    %79 = arith.mulf %78, %75 : vector<8x8xf32>
    %80 = arith.select %77, %75, %79 : vector<8x8xi1>, vector<8x8xf32>
    %cst_75 = arith.constant dense<0.000000e+00> : vector<8x256xf32>
    %81 = tpu.matmul %80, %39, %cst_75 {dimension_numbers = #tpu.dot_dimension_numbers<[1], [0], [0], [1], [0, 0, 1, 1], [], []>} : vector<8x8xf32>, vector<8x256xf32>, vector<8x256xf32> -> vector<8x256xf32>
    %cst_76 = arith.constant dense<0.000000e+00> : vector<32x256xf32>
    %82 = tpu.matmul %31, %81, %cst_76 {dimension_numbers = #tpu.dot_dimension_numbers<[1], [0], [0], [1], [0, 0, 1, 1], [], []>} : vector<32x8xf32>, vector<8x256xf32>, vector<32x256xf32> -> vector<32x256xf32>
    %83 = arith.addf %72, %82 : vector<32x256xf32>
    %cst_77 = arith.constant 0.000000e+00 : f32
    %84 = vector.broadcast %cst_77 : f32 to vector<32x256xf32>
    %85 = arith.cmpf oge, %83, %84 : vector<32x256xf32>
    %cst_78 = arith.constant 2.000000e-01 : f32
    %86 = vector.broadcast %cst_78 : f32 to vector<32x256xf32>
    %87 = arith.mulf %86, %83 : vector<32x256xf32>
    %88 = arith.select %85, %83, %87 : vector<32x256xi1>, vector<32x256xf32>
    %c0_79 = arith.constant 0 : index
    %c0_80 = arith.constant 0 : index
    %89 = vector.load %arg9[%c0_79, %c0_80] : memref<32x256xf32, #tpu.memory_space<vmem>>, vector<32x256xf32>
    tpu.vector_store %arg9[%c0_79, %c0_80], %88 {strides = array<i32>} : memref<32x256xf32, #tpu.memory_space<vmem>>, vector<32x256xf32>,
    return
  }
  func.func @transform_0(%arg0: i32) -> (i32, i32) {
    %c0_i32 = arith.constant 0 : i32
    %c0_i32_0 = arith.constant 0 : i32
    return %arg0, %c0_i32 : i32, i32
  }
  func.func @transform_1(%arg0: i32) -> (i32, i32) {
    %c0_i32 = arith.constant 0 : i32
    %c0_i32_0 = arith.constant 0 : i32
    %c0_i32_1 = arith.constant 0 : i32
    return %c0_i32, %c0_i32_0 : i32, i32
  }
  func.func @transform_2(%arg0: i32) -> (i32, i32) {
    %c0_i32 = arith.constant 0 : i32
    %c0_i32_0 = arith.constant 0 : i32
    %c0_i32_1 = arith.constant 0 : i32
    return %c0_i32, %c0_i32_0 : i32, i32
  }
  func.func @transform_3(%arg0: i32) -> (i32, i32) {
    %c0_i32 = arith.constant 0 : i32
    %c0_i32_0 = arith.constant 0 : i32
    %c0_i32_1 = arith.constant 0 : i32
    return %c0_i32, %c0_i32_0 : i32, i32
  }
  func.func @transform_4(%arg0: i32) -> (i32, i32, i32) {
    %c0_i32 = arith.constant 0 : i32
    %c0_i32_0 = arith.constant 0 : i32
    %c0_i32_1 = arith.constant 0 : i32
    %c0_i32_2 = arith.constant 0 : i32
    return %c0_i32, %c0_i32_0, %c0_i32_1 : i32, i32, i32
  }
  func.func @transform_5(%arg0: i32) -> (i32, i32, i32) {
    %c0_i32 = arith.constant 0 : i32
    %c0_i32_0 = arith.constant 0 : i32
    %c0_i32_1 = arith.constant 0 : i32
    %c0_i32_2 = arith.constant 0 : i32
    return %c0_i32, %c0_i32_0, %c0_i32_1 : i32, i32, i32
  }
  func.func @transform_6(%arg0: i32) -> (i32, i32, i32) {
    %c0_i32 = arith.constant 0 : i32
    %c0_i32_0 = arith.constant 0 : i32
    %c0_i32_1 = arith.constant 0 : i32
    %c0_i32_2 = arith.constant 0 : i32
    return %c0_i32, %c0_i32_0, %c0_i32_1 : i32, i32, i32
  }
  func.func @transform_7(%arg0: i32) -> (i32, i32, i32) {
    %c0_i32 = arith.constant 0 : i32
    %c0_i32_0 = arith.constant 0 : i32
    %c0_i32_1 = arith.constant 0 : i32
    %c0_i32_2 = arith.constant 0 : i32
    return %c0_i32, %c0_i32_0, %c0_i32_1 : i32, i32, i32
  }
  func.func @transform_8(%arg0: i32) -> (i32, i32) {
    %c0_i32 = arith.constant 0 : i32
    %c0_i32_0 = arith.constant 0 : i32
    return %arg0, %c0_i32 : i32, i32
  }
}

module attributes {stable_mosaic.version = 11 : i64} {
  func.func @pyramid_pooling_kernel(%arg0: i32, %arg1: memref<32x128xf32, #tpu.memory_space<vmem>>, %arg2: memref<128x128xf32, #tpu.memory_space<vmem>>, %arg3: memref<128x256xf32, #tpu.memory_space<vmem>>, %arg4: memref<1x256xf32, #tpu.memory_space<vmem>>, %arg5: memref<4x8x32xf32, #tpu.memory_space<vmem>>, %arg6: memref<4x32x8xf32, #tpu.memory_space<vmem>>, %arg7: memref<4x32x8xf32, #tpu.memory_space<vmem>>, %arg8: memref<4x8x256xf32, #tpu.memory_space<vmem>>, %arg9: memref<32x256xf32, #tpu.memory_space<vmem>>) attributes {dimension_semantics = [#tpu.dimension_semantics<parallel>], iteration_bounds = array<i64: 2>, scalar_prefetch = 0 : i64, scratch_operands = 0 : i64, tpu.core_type = #tpu.core_type<tc>, window_params = [{transform_indices = @transform_0, window_bounds = array<i64: 32, 128>}, {pipeline_mode = #tpu.pipeline_mode<synchronous>, transform_indices = @transform_1, window_bounds = array<i64: 128, 128>}, {pipeline_mode = #tpu.pipeline_mode<synchronous>, transform_indices = @transform_2, window_bounds = array<i64: 128, 256>}, {pipeline_mode = #tpu.pipeline_mode<synchronous>, transform_indices = @transform_3, window_bounds = array<i64: 1, 256>}, {pipeline_mode = #tpu.pipeline_mode<synchronous>, transform_indices = @transform_4, window_bounds = array<i64: 4, 8, 32>}, {pipeline_mode = #tpu.pipeline_mode<synchronous>, transform_indices = @transform_5, window_bounds = array<i64: 4, 32, 8>}, {pipeline_mode = #tpu.pipeline_mode<synchronous>, transform_indices = @transform_6, window_bounds = array<i64: 4, 32, 8>}, {pipeline_mode = #tpu.pipeline_mode<synchronous>, transform_indices = @transform_7, window_bounds = array<i64: 4, 8, 256>}, {transform_indices = @transform_8, window_bounds = array<i64: 32, 256>}]} {
    %c0 = arith.constant 0 : index
    %c0_0 = arith.constant 0 : index
    %0 = vector.load %arg1[%c0, %c0_0] : memref<32x128xf32, #tpu.memory_space<vmem>>, vector<32x128xf32>
    %c0_1 = arith.constant 0 : index
    %c0_2 = arith.constant 0 : index
    %1 = vector.load %arg3[%c0_1, %c0_2] : memref<128x256xf32, #tpu.memory_space<vmem>>, vector<128x256xf32>
    %cst = arith.constant dense<0.000000e+00> : vector<32x256xf32>
    %2 = tpu.matmul %0, %1, %cst {dimension_numbers = #tpu.dot_dimension_numbers<[1], [0], [0], [1], [0, 0, 1, 1], [], []>} : vector<32x128xf32>, vector<128x256xf32>, vector<32x256xf32> -> vector<32x256xf32>
    %c0_3 = arith.constant 0 : index
    %c0_4 = arith.constant 0 : index
    %3 = vector.load %arg4[%c0_3, %c0_4] : memref<1x256xf32, #tpu.memory_space<vmem>>, vector<1x256xf32>
    %4 = vector.broadcast %3 : vector<1x256xf32> to vector<32x256xf32>
    %5 = arith.addf %2, %4 : vector<32x256xf32>
    %c0_5 = arith.constant 0 : index
    %c0_6 = arith.constant 0 : index
    %6 = vector.load %arg2[%c0_5, %c0_6] : memref<128x128xf32, #tpu.memory_space<vmem>>, vector<128x128xf32>
    %cst_7 = arith.constant dense<0.000000e+00> : vector<32x128xf32>
    %7 = tpu.matmul %0, %6, %cst_7 {dimension_numbers = #tpu.dot_dimension_numbers<[1], [0], [0], [1], [0, 0, 1, 1], [], []>} : vector<32x128xf32>, vector<128x128xf32>, vector<32x128xf32> -> vector<32x128xf32>
    %c0_8 = arith.constant 0 : index
    %c0_9 = arith.constant 0 : index
    %c0_10 = arith.constant 0 : index
    %8 = vector.load %arg5[%c0_8, %c0_9, %c0_10] : memref<4x8x32xf32, #tpu.memory_space<vmem>>, vector<1x8x32xf32>
    %9 = vector.shape_cast %8 : vector<1x8x32xf32> to vector<8x32xf32>
    %c1 = arith.constant 1 : index
    %c0_11 = arith.constant 0 : index
    %c0_12 = arith.constant 0 : index
    %10 = vector.load %arg5[%c1, %c0_11, %c0_12] : memref<4x8x32xf32, #tpu.memory_space<vmem>>, vector<1x8x32xf32>
    %11 = vector.shape_cast %10 : vector<1x8x32xf32> to vector<8x32xf32>
    %c2 = arith.constant 2 : index
    %c0_13 = arith.constant 0 : index
    %c0_14 = arith.constant 0 : index
    %12 = vector.load %arg5[%c2, %c0_13, %c0_14] : memref<4x8x32xf32, #tpu.memory_space<vmem>>, vector<1x8x32xf32>
    %13 = vector.shape_cast %12 : vector<1x8x32xf32> to vector<8x32xf32>
    %c3 = arith.constant 3 : index
    %c0_15 = arith.constant 0 : index
    %c0_16 = arith.constant 0 : index
    %14 = vector.load %arg5[%c3, %c0_15, %c0_16] : memref<4x8x32xf32, #tpu.memory_space<vmem>>, vector<1x8x32xf32>
    %15 = vector.shape_cast %14 : vector<1x8x32xf32> to vector<8x32xf32>
    %c0_17 = arith.constant 0 : index
    %c0_18 = arith.constant 0 : index
    %c0_19 = arith.constant 0 : index
    %16 = vector.load %arg6[%c0_17, %c0_18, %c0_19] : memref<4x32x8xf32, #tpu.memory_space<vmem>>, vector<1x32x8xf32>
    %17 = vector.shape_cast %16 : vector<1x32x8xf32> to vector<32x8xf32>
    %c1_20 = arith.constant 1 : index
    %c0_21 = arith.constant 0 : index
    %c0_22 = arith.constant 0 : index
    %18 = vector.load %arg6[%c1_20, %c0_21, %c0_22] : memref<4x32x8xf32, #tpu.memory_space<vmem>>, vector<1x32x8xf32>
    %19 = vector.shape_cast %18 : vector<1x32x8xf32> to vector<32x8xf32>
    %c2_23 = arith.constant 2 : index
    %c0_24 = arith.constant 0 : index
    %c0_25 = arith.constant 0 : index
    %20 = vector.load %arg6[%c2_23, %c0_24, %c0_25] : memref<4x32x8xf32, #tpu.memory_space<vmem>>, vector<1x32x8xf32>
    %21 = vector.shape_cast %20 : vector<1x32x8xf32> to vector<32x8xf32>
    %c3_26 = arith.constant 3 : index
    %c0_27 = arith.constant 0 : index
    %c0_28 = arith.constant 0 : index
    %22 = vector.load %arg6[%c3_26, %c0_27, %c0_28] : memref<4x32x8xf32, #tpu.memory_space<vmem>>, vector<1x32x8xf32>
    %23 = vector.shape_cast %22 : vector<1x32x8xf32> to vector<32x8xf32>
    %c0_29 = arith.constant 0 : index
    %c0_30 = arith.constant 0 : index
    %c0_31 = arith.constant 0 : index
    %24 = vector.load %arg7[%c0_29, %c0_30, %c0_31] : memref<4x32x8xf32, #tpu.memory_space<vmem>>, vector<1x32x8xf32>
    %25 = vector.shape_cast %24 : vector<1x32x8xf32> to vector<32x8xf32>
    %c1_32 = arith.constant 1 : index
    %c0_33 = arith.constant 0 : index
    %c0_34 = arith.constant 0 : index
    %26 = vector.load %arg7[%c1_32, %c0_33, %c0_34] : memref<4x32x8xf32, #tpu.memory_space<vmem>>, vector<1x32x8xf32>
    %27 = vector.shape_cast %26 : vector<1x32x8xf32> to vector<32x8xf32>
    %c2_35 = arith.constant 2 : index
    %c0_36 = arith.constant 0 : index
    %c0_37 = arith.constant 0 : index
    %28 = vector.load %arg7[%c2_35, %c0_36, %c0_37] : memref<4x32x8xf32, #tpu.memory_space<vmem>>, vector<1x32x8xf32>
    %29 = vector.shape_cast %28 : vector<1x32x8xf32> to vector<32x8xf32>
    %c3_38 = arith.constant 3 : index
    %c0_39 = arith.constant 0 : index
    %c0_40 = arith.constant 0 : index
    %30 = vector.load %arg7[%c3_38, %c0_39, %c0_40] : memref<4x32x8xf32, #tpu.memory_space<vmem>>, vector<1x32x8xf32>
    %31 = vector.shape_cast %30 : vector<1x32x8xf32> to vector<32x8xf32>
    %c0_41 = arith.constant 0 : index
    %c0_42 = arith.constant 0 : index
    %c0_43 = arith.constant 0 : index
    %32 = vector.load %arg8[%c0_41, %c0_42, %c0_43] : memref<4x8x256xf32, #tpu.memory_space<vmem>>, vector<1x8x256xf32>
    %33 = vector.shape_cast %32 : vector<1x8x256xf32> to vector<8x256xf32>
    %c1_44 = arith.constant 1 : index
    %c0_45 = arith.constant 0 : index
    %c0_46 = arith.constant 0 : index
    %34 = vector.load %arg8[%c1_44, %c0_45, %c0_46] : memref<4x8x256xf32, #tpu.memory_space<vmem>>, vector<1x8x256xf32>
    %35 = vector.shape_cast %34 : vector<1x8x256xf32> to vector<8x256xf32>
    %c2_47 = arith.constant 2 : index
    %c0_48 = arith.constant 0 : index
    %c0_49 = arith.constant 0 : index
    %36 = vector.load %arg8[%c2_47, %c0_48, %c0_49] : memref<4x8x256xf32, #tpu.memory_space<vmem>>, vector<1x8x256xf32>
    %37 = vector.shape_cast %36 : vector<1x8x256xf32> to vector<8x256xf32>
    %c3_50 = arith.constant 3 : index
    %c0_51 = arith.constant 0 : index
    %c0_52 = arith.constant 0 : index
    %38 = vector.load %arg8[%c3_50, %c0_51, %c0_52] : memref<4x8x256xf32, #tpu.memory_space<vmem>>, vector<1x8x256xf32>
    %39 = vector.shape_cast %38 : vector<1x8x256xf32> to vector<8x256xf32>
    %40 = vector.extract_strided_slice %7 {offsets = [0, 0], sizes = [32, 32], strides = [1, 1]} : vector<32x128xf32> to vector<32x32xf32>
    %cst_53 = arith.constant dense<0.000000e+00> : vector<8x32xf32>
    %41 = tpu.matmul %9, %40, %cst_53 {dimension_numbers = #tpu.dot_dimension_numbers<[1], [0], [0], [1], [0, 0, 1, 1], [], []>} : vector<8x32xf32>, vector<32x32xf32>, vector<8x32xf32> -> vector<8x32xf32>
    %cst_54 = arith.constant dense<0.000000e+00> : vector<8x8xf32>
    %42 = tpu.matmul %41, %17, %cst_54 {dimension_numbers = #tpu.dot_dimension_numbers<[1], [0], [0], [1], [0, 0, 1, 1], [], []>} : vector<8x32xf32>, vector<32x8xf32>, vector<8x8xf32> -> vector<8x8xf32>
    %cst_55 = arith.constant 0.000000e+00 : f32
    %43 = vector.broadcast %cst_55 : f32 to vector<8x8xf32>
    %44 = arith.cmpf oge, %42, %43 : vector<8x8xf32>
    %cst_56 = arith.constant 2.000000e-01 : f32
    %45 = vector.broadcast %cst_56 : f32 to vector<8x8xf32>
    %46 = arith.mulf %45, %42 : vector<8x8xf32>
    %47 = arith.select %44, %42, %46 : vector<8x8xi1>, vector<8x8xf32>
    %cst_57 = arith.constant dense<0.000000e+00> : vector<8x256xf32>
    %48 = tpu.matmul %47, %33, %cst_57 {dimension_numbers = #tpu.dot_dimension_numbers<[1], [0], [0], [1], [0, 0, 1, 1], [], []>} : vector<8x8xf32>, vector<8x256xf32>, vector<8x256xf32> -> vector<8x256xf32>
    %cst_58 = arith.constant dense<0.000000e+00> : vector<32x256xf32>
    %49 = tpu.matmul %25, %48, %cst_58 {dimension_numbers = #tpu.dot_dimension_numbers<[1], [0], [0], [1], [0, 0, 1, 1], [], []>} : vector<32x8xf32>, vector<8x256xf32>, vector<32x256xf32> -> vector<32x256xf32>
    %50 = arith.addf %5, %49 : vector<32x256xf32>
    %51 = vector.extract_strided_slice %7 {offsets = [0, 32], sizes = [32, 32], strides = [1, 1]} : vector<32x128xf32> to vector<32x32xf32>
    %cst_59 = arith.constant dense<0.000000e+00> : vector<8x32xf32>
    %52 = tpu.matmul %11, %51, %cst_59 {dimension_numbers = #tpu.dot_dimension_numbers<[1], [0], [0], [1], [0, 0, 1, 1], [], []>} : vector<8x32xf32>, vector<32x32xf32>, vector<8x32xf32> -> vector<8x32xf32>
    %cst_60 = arith.constant dense<0.000000e+00> : vector<8x8xf32>
    %53 = tpu.matmul %52, %19, %cst_60 {dimension_numbers = #tpu.dot_dimension_numbers<[1], [0], [0], [1], [0, 0, 1, 1], [], []>} : vector<8x32xf32>, vector<32x8xf32>, vector<8x8xf32> -> vector<8x8xf32>
    %cst_61 = arith.constant 0.000000e+00 : f32
    %54 = vector.broadcast %cst_61 : f32 to vector<8x8xf32>
    %55 = arith.cmpf oge, %53, %54 : vector<8x8xf32>
    %cst_62 = arith.constant 2.000000e-01 : f32
    %56 = vector.broadcast %cst_62 : f32 to vector<8x8xf32>
    %57 = arith.mulf %56, %53 : vector<8x8xf32>
    %58 = arith.select %55, %53, %57 : vector<8x8xi1>, vector<8x8xf32>
    %cst_63 = arith.constant dense<0.000000e+00> : vector<8x256xf32>
    %59 = tpu.matmul %58, %35, %cst_63 {dimension_numbers = #tpu.dot_dimension_numbers<[1], [0], [0], [1], [0, 0, 1, 1], [], []>} : vector<8x8xf32>, vector<8x256xf32>, vector<8x256xf32> -> vector<8x256xf32>
    %cst_64 = arith.constant dense<0.000000e+00> : vector<32x256xf32>
    %60 = tpu.matmul %27, %59, %cst_64 {dimension_numbers = #tpu.dot_dimension_numbers<[1], [0], [0], [1], [0, 0, 1, 1], [], []>} : vector<32x8xf32>, vector<8x256xf32>, vector<32x256xf32> -> vector<32x256xf32>
    %61 = arith.addf %50, %60 : vector<32x256xf32>
    %62 = vector.extract_strided_slice %7 {offsets = [0, 64], sizes = [32, 32], strides = [1, 1]} : vector<32x128xf32> to vector<32x32xf32>
    %cst_65 = arith.constant dense<0.000000e+00> : vector<8x32xf32>
    %63 = tpu.matmul %13, %62, %cst_65 {dimension_numbers = #tpu.dot_dimension_numbers<[1], [0], [0], [1], [0, 0, 1, 1], [], []>} : vector<8x32xf32>, vector<32x32xf32>, vector<8x32xf32> -> vector<8x32xf32>
    %cst_66 = arith.constant dense<0.000000e+00> : vector<8x8xf32>
    %64 = tpu.matmul %63, %21, %cst_66 {dimension_numbers = #tpu.dot_dimension_numbers<[1], [0], [0], [1], [0, 0, 1, 1], [], []>} : vector<8x32xf32>, vector<32x8xf32>, vector<8x8xf32> -> vector<8x8xf32>
    %cst_67 = arith.constant 0.000000e+00 : f32
    %65 = vector.broadcast %cst_67 : f32 to vector<8x8xf32>
    %66 = arith.cmpf oge, %64, %65 : vector<8x8xf32>
    %cst_68 = arith.constant 2.000000e-01 : f32
    %67 = vector.broadcast %cst_68 : f32 to vector<8x8xf32>
    %68 = arith.mulf %67, %64 : vector<8x8xf32>
    %69 = arith.select %66, %64, %68 : vector<8x8xi1>, vector<8x8xf32>
    %cst_69 = arith.constant dense<0.000000e+00> : vector<8x256xf32>
    %70 = tpu.matmul %69, %37, %cst_69 {dimension_numbers = #tpu.dot_dimension_numbers<[1], [0], [0], [1], [0, 0, 1, 1], [], []>} : vector<8x8xf32>, vector<8x256xf32>, vector<8x256xf32> -> vector<8x256xf32>
    %cst_70 = arith.constant dense<0.000000e+00> : vector<32x256xf32>
    %71 = tpu.matmul %29, %70, %cst_70 {dimension_numbers = #tpu.dot_dimension_numbers<[1], [0], [0], [1], [0, 0, 1, 1], [], []>} : vector<32x8xf32>, vector<8x256xf32>, vector<32x256xf32> -> vector<32x256xf32>
    %72 = arith.addf %61, %71 : vector<32x256xf32>
    %73 = vector.extract_strided_slice %7 {offsets = [0, 96], sizes = [32, 32], strides = [1, 1]} : vector<32x128xf32> to vector<32x32xf32>
    %cst_71 = arith.constant dense<0.000000e+00> : vector<8x32xf32>
    %74 = tpu.matmul %15, %73, %cst_71 {dimension_numbers = #tpu.dot_dimension_numbers<[1], [0], [0], [1], [0, 0, 1, 1], [], []>} : vector<8x32xf32>, vector<32x32xf32>, vector<8x32xf32> -> vector<8x32xf32>
    %cst_72 = arith.constant dense<0.000000e+00> : vector<8x8xf32>
    %75 = tpu.matmul %74, %23, %cst_72 {dimension_numbers = #tpu.dot_dimension_numbers<[1], [0], [0], [1], [0, 0, 1, 1], [], []>} : vector<8x32xf32>, vector<32x8xf32>, vector<8x8xf32> -> vector<8x8xf32>
    %cst_73 = arith.constant 0.000000e+00 : f32
    %76 = vector.broadcast %cst_73 : f32 to vector<8x8xf32>
    %77 = arith.cmpf oge, %75, %76 : vector<8x8xf32>
    %cst_74 = arith.constant 2.000000e-01 : f32
    %78 = vector.broadcast %cst_74 : f32 to vector<8x8xf32>
    %79 = arith.mulf %78, %75 : vector<8x8xf32>
    %80 = arith.select %77, %75, %79 : vector<8x8xi1>, vector<8x8xf32>
    %cst_75 = arith.constant dense<0.000000e+00> : vector<8x256xf32>
    %81 = tpu.matmul %80, %39, %cst_75 {dimension_numbers = #tpu.dot_dimension_numbers<[1], [0], [0], [1], [0, 0, 1, 1], [], []>} : vector<8x8xf32>, vector<8x256xf32>, vector<8x256xf32> -> vector<8x256xf32>
    %cst_76 = arith.constant dense<0.000000e+00> : vector<32x256xf32>
    %82 = tpu.matmul %31, %81, %cst_76 {dimension_numbers = #tpu.dot_dimension_numbers<[1], [0], [0], [1], [0, 0, 1, 1], [], []>} : vector<32x8xf32>, vector<8x256xf32>, vector<32x256xf32> -> vector<32x256xf32>
    %83 = arith.addf %72, %82 : vector<32x256xf32>
    %cst_77 = arith.constant 0.000000e+00 : f32
    %84 = vector.broadcast %cst_77 : f32 to vector<32x256xf32>
    %85 = arith.cmpf oge, %83, %84 : vector<32x256xf32>
    %cst_78 = arith.constant 2.000000e-01 : f32
    %86 = vector.broadcast %cst_78 : f32 to vector<32x256xf32>
    %87 = arith.mulf %86, %83 : vector<32x256xf32>
    %88 = arith.select %85, %83, %87 : vector<32x256xi1>, vector<32x256xf32>
    %c0_79 = arith.constant 0 : index
    %c0_80 = arith.constant 0 : index
    %89 = vector.load %arg9[%c0_79, %c0_80] : memref<32x256xf32, #tpu.memory_space<vmem>>, vector<32x256xf32>
    tpu.vector_store %arg9[%c0_79, %c0_80], %88 {strides = array<i32>} : memref<32x256xf32, #tpu.memory_space<vmem>>, vector<32x256xf32>,
    return
  }
  func.func @transform_0(%arg0: i32) -> (i32, i32) {
    %c0_i32 = arith.constant 0 : i32
    %c0_i32_0 = arith.constant 0 : i32
    return %arg0, %c0_i32 : i32, i32
  }
  func.func @transform_1(%arg0: i32) -> (i32, i32) {
    %c0_i32 = arith.constant 0 : i32
    %c0_i32_0 = arith.constant 0 : i32
    %c0_i32_1 = arith.constant 0 : i32
    return %c0_i32, %c0_i32_0 : i32, i32
  }
  func.func @transform_2(%arg0: i32) -> (i32, i32) {
    %c0_i32 = arith.constant 0 : i32
    %c0_i32_0 = arith.constant 0 : i32
    %c0_i32_1 = arith.constant 0 : i32
    return %c0_i32, %c0_i32_0 : i32, i32
  }
  func.func @transform_3(%arg0: i32) -> (i32, i32) {
    %c0_i32 = arith.constant 0 : i32
    %c0_i32_0 = arith.constant 0 : i32
    %c0_i32_1 = arith.constant 0 : i32
    return %c0_i32, %c0_i32_0 : i32, i32
  }
  func.func @transform_4(%arg0: i32) -> (i32, i32, i32) {
    %c0_i32 = arith.constant 0 : i32
    %c0_i32_0 = arith.constant 0 : i32
    %c0_i32_1 = arith.constant 0 : i32
    %c0_i32_2 = arith.constant 0 : i32
    return %c0_i32, %c0_i32_0, %c0_i32_1 : i32, i32, i32
  }
  func.func @transform_5(%arg0: i32) -> (i32, i32, i32) {
    %c0_i32 = arith.constant 0 : i32
    %c0_i32_0 = arith.constant 0 : i32
    %c0_i32_1 = arith.constant 0 : i32
    %c0_i32_2 = arith.constant 0 : i32
    return %c0_i32, %c0_i32_0, %c0_i32_1 : i32, i32, i32
  }
  func.func @transform_6(%arg0: i32) -> (i32, i32, i32) {
    %c0_i32 = arith.constant 0 : i32
    %c0_i32_0 = arith.constant 0 : i32
    %c0_i32_1 = arith.constant 0 : i32
    %c0_i32_2 = arith.constant 0 : i32
    return %c0_i32, %c0_i32_0, %c0_i32_1 : i32, i32, i32
  }
  func.func @transform_7(%arg0: i32) -> (i32, i32, i32) {
    %c0_i32 = arith.constant 0 : i32
    %c0_i32_0 = arith.constant 0 : i32
    %c0_i32_1 = arith.constant 0 : i32
    %c0_i32_2 = arith.constant 0 : i32
    return %c0_i32, %c0_i32_0, %c0_i32_1 : i32, i32, i32
  }
  func.func @transform_8(%arg0: i32) -> (i32, i32) {
    %c0_i32 = arith.constant 0 : i32
    %c0_i32_0 = arith.constant 0 : i32
    return %arg0, %c0_i32 : i32, i32
  }
}

</mosaic_0001>

<llo_original>
// kernel: tpu_custom_call.1
$region0: #{tpu_custom_call.1}
  #allocation0 [shape = 'u32[]', space=smem, size = 0x4, offset = 0x4, fixed_abs, tag = 'smem constant byte address 0x4 - core index']
  #allocation1 [shape = 'u32[144,128]{1,0:T(1,128)}', space=vmem, size = 0x12000, scoped, tag = 'internal scratch']
  %s0 = inlined_call_operand.vmem [shape: f32[64,128], index: 0, kind: input, shape index: {}]
  %s1 = inlined_call_operand.hbm [shape: f32[128,128], index: 1, kind: input, shape index: {}]
  %s2 = inlined_call_operand.vmem [shape: f32[128,256], index: 2, kind: input, shape index: {}]
  %s3 = inlined_call_operand.vmem [shape: f32[1,256], index: 3, kind: input, shape index: {}]
  %s4 = inlined_call_operand.hbm [shape: f32[4,8,32], index: 4, kind: input, shape index: {}]
  %s5 = inlined_call_operand.vmem [shape: f32[4,32,8], index: 5, kind: input, shape index: {}]
  %s6 = inlined_call_operand.vmem [shape: f32[4,32,8], index: 6, kind: input, shape index: {}]
  %s7 = inlined_call_operand.hbm [shape: f32[4,8,256], index: 7, kind: input, shape index: {}]
  %s8 = inlined_call_operand.hbm [shape: f32[64,256], index: 8, kind: output, shape index: {}]
  %s9 = sld [smem:[#allocation0]]
  $region77: #{tpu_custom_call.1} parent=0
    _
  %s11 = ssub.s32 1, %s9
  %s12 = scalar_select 0, %s11, %s9
  $region1: #{tpu_custom_call.1} parent=0
    #allocation2 [shape = 'u8[65536]{0}', space=vmem, size = 0x10000, scoped, tag = 'input window, operand 1, single buffered']
    #allocation3 [shape = 's32[2]{0}', space=sflag, size = 0x8, scoped, tag = 'scoped memory for tpu_custom_call.1']
    #allocation4 [shape = 's32[2]{0}', space=sflag, size = 0x8, scoped, tag = 'scoped memory for tpu_custom_call.1']
    #allocation5 [shape = 'u8[16384]{0}', space=vmem, size = 0x4000, scoped, tag = 'input window, operand 4, single buffered']
    #allocation6 [shape = 's32[1]{0}', space=sflag, size = 0x4, scoped, tag = 'scoped memory for tpu_custom_call.1']
    #allocation7 [shape = 'u8[32768]{0}', space=vmem, size = 0x8000, scoped, tag = 'input window, operand 7, single buffered']
    #allocation8 [shape = 'u8[65536]{0}', space=vmem, size = 0x10000, scoped, tag = 'output window, operand 0']
    %13 = vsyncpa [#allocation3], 0
    %14 = vsyncpa [#allocation6], 0
    %15 = vsyncpa [#allocation4], 0
    %s16 = scalar_lea.sflag [#allocation4], 1
    %17 = vsyncpa %s16, 0
    loop: start=0, step=1, limit=4
    $region2: #{tpu_custom_call.1} parent=1 // loop_pre_header
      _
    $region3: #{tpu_custom_call.1} parent=1 // loop_header
      %s19 = sphi 0, %s23
      %p20 = scmp.ge.s32.totalorder %s19, 4
      %s29 = sphi 0, %s31
      %s32 = sphi 0, %s29
      %s33 = sphi 0, %s32
      %s49 = sphi 0, %s33
      %s53 = sphi 0, %s53
      %s55 = sphi 0, %s53
      %s56 = sphi 0, %s55
      %s70 = sphi 0, %s56
      %s74 = sphi 0, %s74
      %s76 = sphi 0, %s74
      %s77 = sphi 0, %s76
      %s91 = sphi 0, %s77
      %s95 = sphi 0, %s95
      %s97 = sphi 0, %s95
      %s98 = sphi 0, %s97
      %s112 = sphi 0, %s98
      %s116 = sphi 0, %s116
      %s118 = sphi 0, %s116
      %s119 = sphi 0, %s118
      %s133 = sphi 0, %s119
      %s137 = sphi 0, %s137
      %s139 = sphi 0, %s137
      %s140 = sphi 0, %s139
      %s154 = sphi 0, %s140
      %s158 = sphi 0, %s158
      %s160 = sphi 0, %s158
      %s161 = sphi 0, %s160
      %s175 = sphi 0, %s161
      %s179 = sphi 0, %s179
      %s181 = sphi 0, %s179
      %s182 = sphi 0, %s181
      %s196 = sphi 0, %s182
      %s202 = sphi 0, %s204
      %s205 = sphi 0, %s202
      %s206 = sphi 0, %s205
      %s222 = sphi 0, %s206
    $region4: #{tpu_custom_call.1} parent=1 // loop_header_branch
      %22 = sbr.rel (%p20) target = $region8
    $region5: #{tpu_custom_call.1} parent=1 // loop_body
      %s24 = ssub.s32 %s19, 1
      %s25 = ssub.s32 %s19, 2
      %s26 = sadd.s32 %s19, 1
      %s27 = ssub.s32 %s19, %s26
      %p28 = scmp.eq.s32.totalorder %s27, 0
      %s30 = sadd.s32 %s29, 1
      %s31 = scalar_select %p28, %s29, %s30
      %p34 = pneg %p28
      %p35 = scmp.eq.s32.totalorder %s19, 1
      %p36 = por %p34, %p35
      %p37 = scmp.ne.s32.totalorder %s29, %s32
      %p38 = scmp.eq.s32.totalorder %s19, 0
      %p39 = por %p37, %p38
      %p40 = scmp.ne.s32.totalorder %s29, %s32
      %p41 = scmp.eq.s32.totalorder %s24, 1
      %p42 = por %p40, %p41
      %p43 = scmp.ne.s32.totalorder %s32, %s33
      %p44 = scmp.eq.s32.totalorder %s24, 0
      %p45 = por %p43, %p44
      %p46 = scmp.ne.s32.totalorder %s32, %s33
      %p47 = scmp.eq.s32.totalorder %s25, 1
      %p48 = por %p46, %p47
      %p50 = scmp.ne.s32.totalorder %s33, %s49
      %p51 = scmp.eq.s32.totalorder %s25, 0
      %p52 = por %p50, %p51
      %s54 = sadd.s32 %s53, 1
      %p57 = scmp.eq.s32.totalorder %s19, 1
      %p58 = scmp.ne.s32.totalorder %s53, %s55
      %p59 = scmp.eq.s32.totalorder %s19, 0
      %p60 = por %p58, %p59
      %p61 = scmp.ne.s32.totalorder %s53, %s55
      %p62 = scmp.eq.s32.totalorder %s24, 1
      %p63 = por %p61, %p62
      %p64 = scmp.ne.s32.totalorder %s55, %s56
      %p65 = scmp.eq.s32.totalorder %s24, 0
      %p66 = por %p64, %p65
      %p67 = scmp.ne.s32.totalorder %s55, %s56
      %p68 = scmp.eq.s32.totalorder %s25, 1
      %p69 = por %p67, %p68
      %p71 = scmp.ne.s32.totalorder %s56, %s70
      %p72 = scmp.eq.s32.totalorder %s25, 0
      %p73 = por %p71, %p72
      %s75 = sadd.s32 %s74, 1
      %p78 = scmp.eq.s32.totalorder %s19, 1
      %p79 = scmp.ne.s32.totalorder %s74, %s76
      %p80 = scmp.eq.s32.totalorder %s19, 0
      %p81 = por %p79, %p80
      %p82 = scmp.ne.s32.totalorder %s74, %s76
      %p83 = scmp.eq.s32.totalorder %s24, 1
      %p84 = por %p82, %p83
      %p85 = scmp.ne.s32.totalorder %s76, %s77
      %p86 = scmp.eq.s32.totalorder %s24, 0
      %p87 = por %p85, %p86
      %p88 = scmp.ne.s32.totalorder %s76, %s77
      %p89 = scmp.eq.s32.totalorder %s25, 1
      %p90 = por %p88, %p89
      %p92 = scmp.ne.s32.totalorder %s77, %s91
      %p93 = scmp.eq.s32.totalorder %s25, 0
      %p94 = por %p92, %p93
      %s96 = sadd.s32 %s95, 1
      %p99 = scmp.eq.s32.totalorder %s19, 1
      %p100 = scmp.ne.s32.totalorder %s95, %s97
      %p101 = scmp.eq.s32.totalorder %s19, 0
      %p102 = por %p100, %p101
      %p103 = scmp.ne.s32.totalorder %s95, %s97
      %p104 = scmp.eq.s32.totalorder %s24, 1
      %p105 = por %p103, %p104
      %p106 = scmp.ne.s32.totalorder %s97, %s98
      %p107 = scmp.eq.s32.totalorder %s24, 0
      %p108 = por %p106, %p107
      %p109 = scmp.ne.s32.totalorder %s97, %s98
      %p110 = scmp.eq.s32.totalorder %s25, 1
      %p111 = por %p109, %p110
      %p113 = scmp.ne.s32.totalorder %s98, %s112
      %p114 = scmp.eq.s32.totalorder %s25, 0
      %p115 = por %p113, %p114
      %s117 = sadd.s32 %s116, 1
      %p120 = scmp.eq.s32.totalorder %s19, 1
      %p121 = scmp.ne.s32.totalorder %s116, %s118
      %p122 = scmp.eq.s32.totalorder %s19, 0
      %p123 = por %p121, %p122
      %p124 = scmp.ne.s32.totalorder %s116, %s118
      %p125 = scmp.eq.s32.totalorder %s24, 1
      %p126 = por %p124, %p125
      %p127 = scmp.ne.s32.totalorder %s118, %s119
      %p128 = scmp.eq.s32.totalorder %s24, 0
      %p129 = por %p127, %p128
      %p130 = scmp.ne.s32.totalorder %s118, %s119
      %p131 = scmp.eq.s32.totalorder %s25, 1
      %p132 = por %p130, %p131
      %p134 = scmp.ne.s32.totalorder %s119, %s133
      %p135 = scmp.eq.s32.totalorder %s25, 0
      %p136 = por %p134, %p135
      %s138 = sadd.s32 %s137, 1
      %p141 = scmp.eq.s32.totalorder %s19, 1
      %p142 = scmp.ne.s32.totalorder %s137, %s139
      %p143 = scmp.eq.s32.totalorder %s19, 0
      %p144 = por %p142, %p143
      %p145 = scmp.ne.s32.totalorder %s137, %s139
      %p146 = scmp.eq.s32.totalorder %s24, 1
      %p147 = por %p145, %p146
      %p148 = scmp.ne.s32.totalorder %s139, %s140
      %p149 = scmp.eq.s32.totalorder %s24, 0
      %p150 = por %p148, %p149
      %p151 = scmp.ne.s32.totalorder %s139, %s140
      %p152 = scmp.eq.s32.totalorder %s25, 1
      %p153 = por %p151, %p152
      %p155 = scmp.ne.s32.totalorder %s140, %s154
      %p156 = scmp.eq.s32.totalorder %s25, 0
      %p157 = por %p155, %p156
      %s159 = sadd.s32 %s158, 1
      %p162 = scmp.eq.s32.totalorder %s19, 1
      %p163 = scmp.ne.s32.totalorder %s158, %s160
      %p164 = scmp.eq.s32.totalorder %s19, 0
      %p165 = por %p163, %p164
      %p166 = scmp.ne.s32.totalorder %s158, %s160
      %p167 = scmp.eq.s32.totalorder %s24, 1
      %p168 = por %p166, %p167
      %p169 = scmp.ne.s32.totalorder %s160, %s161
      %p170 = scmp.eq.s32.totalorder %s24, 0
      %p171 = por %p169, %p170
      %p172 = scmp.ne.s32.totalorder %s160, %s161
      %p173 = scmp.eq.s32.totalorder %s25, 1
      %p174 = por %p172, %p173
      %p176 = scmp.ne.s32.totalorder %s161, %s175
      %p177 = scmp.eq.s32.totalorder %s25, 0
      %p178 = por %p176, %p177
      %s180 = sadd.s32 %s179, 1
      %p183 = scmp.eq.s32.totalorder %s19, 1
      %p184 = scmp.ne.s32.totalorder %s179, %s181
      %p185 = scmp.eq.s32.totalorder %s19, 0
      %p186 = por %p184, %p185
      %p187 = scmp.ne.s32.totalorder %s179, %s181
      %p188 = scmp.eq.s32.totalorder %s24, 1
      %p189 = por %p187, %p188
      %p190 = scmp.ne.s32.totalorder %s181, %s182
      %p191 = scmp.eq.s32.totalorder %s24, 0
      %p192 = por %p190, %p191
      %p193 = scmp.ne.s32.totalorder %s181, %s182
      %p194 = scmp.eq.s32.totalorder %s25, 1
      %p195 = por %p193, %p194
      %p197 = scmp.ne.s32.totalorder %s182, %s196
      %p198 = scmp.eq.s32.totalorder %s25, 0
      %p199 = por %p197, %p198
      %s200 = ssub.s32 %s19, %s26
      %p201 = scmp.eq.s32.totalorder %s200, 0
      %s203 = sadd.s32 %s202, 1
      %s204 = scalar_select %p201, %s202, %s203
      %p207 = pneg %p201
      %p208 = scmp.eq.s32.totalorder %s19, 1
      %p209 = por %p207, %p208
      %p210 = scmp.ne.s32.totalorder %s202, %s205
      %p211 = scmp.eq.s32.totalorder %s19, 0
      %p212 = por %p210, %p211
      %p213 = scmp.ne.s32.totalorder %s202, %s205
      %p214 = scmp.eq.s32.totalorder %s24, 1
      %p215 = por %p213, %p214
      %p216 = scmp.ne.s32.totalorder %s205, %s206
      %p217 = scmp.eq.s32.totalorder %s24, 0
      %p218 = por %p216, %p217
      %p219 = scmp.ne.s32.totalorder %s205, %s206
      %p220 = scmp.eq.s32.totalorder %s25, 1
      %p221 = por %p219, %p220
      %p223 = scmp.ne.s32.totalorder %s206, %s222
      %p224 = scmp.eq.s32.totalorder %s25, 0
      %p225 = por %p223, %p224
      %p226 = scmp.le.s32.totalorder 1, %s19
      %p227 = scmp.lt.s32.totalorder %s19, 3
      %p228 = pnand %p226, %p227
      %p229 = pneg %p228
      // Predicated region
      $region9: #{tpu_custom_call.1} parent=5 // pred_check
        _
      $region10: #{tpu_custom_call.1} parent=5 // pred_check_branch
        %231 = sbr.rel (%p228) target = $region12
      $region11: #{tpu_custom_call.1} parent=5 // pred_region
        %s232 = ssub.s32 %s19, 1
        // Predicated region
        $region13: #{tpu_custom_call.1} parent=11 // pred_check
          %p233 = pneg %p66
        $region14: #{tpu_custom_call.1} parent=11 // pred_check_branch
          %235 = sbr.rel (%p233) target = $region16
        $region15: #{tpu_custom_call.1} parent=11 // pred_region
          %s237 = ssub.s32 2048, 2048
          %238 = vsyncadd [#allocation3], %s237
          %s239 = sshll.u32 [#allocation2], 4
          %s240 = int_to_ptr.vmem [resolvable:$true] %s239
          %245 = dma.hbm_to_vmem [thread:$0]  %s1, 2048, %s240, [#allocation3], 128, 128, 8
        $region16: #{tpu_custom_call.1} parent=11 // pred_fallthru
          _
        // Predicated region
        $region17: #{tpu_custom_call.1} parent=11 // pred_check
          %p246 = pneg %p87
        $region18: #{tpu_custom_call.1} parent=11 // pred_check_branch
          %248 = sbr.rel (%p246) target = $region20
        $region19: #{tpu_custom_call.1} parent=11 // pred_region
          _
        $region20: #{tpu_custom_call.1} parent=11 // pred_fallthru
          _
        // Predicated region
        $region21: #{tpu_custom_call.1} parent=11 // pred_check
          %p249 = pneg %p108
        $region22: #{tpu_custom_call.1} parent=11 // pred_check_branch
          %251 = sbr.rel (%p249) target = $region24
        $region23: #{tpu_custom_call.1} parent=11 // pred_region
          _
        $region24: #{tpu_custom_call.1} parent=11 // pred_fallthru
          _
        // Predicated region
        $region25: #{tpu_custom_call.1} parent=11 // pred_check
          %p252 = pneg %p129
        $region26: #{tpu_custom_call.1} parent=11 // pred_check_branch
          %254 = sbr.rel (%p252) target = $region28
        $region27: #{tpu_custom_call.1} parent=11 // pred_region
          %s256 = ssub.s32 512, 512
          %257 = vsyncadd [#allocation6], %s256
          %s258 = sshll.u32 [#allocation5], 4
          %s259 = int_to_ptr.vmem [resolvable:$true] %s258
          %264 = dma.hbm_to_vmem [thread:$0]  %s4, 512, %s259, [#allocation6], 128, 128, 8
        $region28: #{tpu_custom_call.1} parent=11 // pred_fallthru
          _
        // Predicated region
        $region29: #{tpu_custom_call.1} parent=11 // pred_check
          %p265 = pneg %p150
        $region30: #{tpu_custom_call.1} parent=11 // pred_check_branch
          %267 = sbr.rel (%p265) target = $region32
        $region31: #{tpu_custom_call.1} parent=11 // pred_region
          _
        $region32: #{tpu_custom_call.1} parent=11 // pred_fallthru
          _
        // Predicated region
        $region33: #{tpu_custom_call.1} parent=11 // pred_check
          %p268 = pneg %p171
        $region34: #{tpu_custom_call.1} parent=11 // pred_check_branch
          %270 = sbr.rel (%p268) target = $region36
        $region35: #{tpu_custom_call.1} parent=11 // pred_region
          _
        $region36: #{tpu_custom_call.1} parent=11 // pred_fallthru
          _
        // Predicated region
        $region37: #{tpu_custom_call.1} parent=11 // pred_check
          %p271 = pneg %p192
        $region38: #{tpu_custom_call.1} parent=11 // pred_check_branch
          %273 = sbr.rel (%p271) target = $region40
        $region39: #{tpu_custom_call.1} parent=11 // pred_region
          %s275 = ssub.s32 1024, 1024
          %276 = vsyncadd [#allocation6], %s275
          %s277 = sshll.u32 [#allocation7], 4
          %s278 = int_to_ptr.vmem [resolvable:$true] %s277
          %283 = dma.hbm_to_vmem [thread:$0]  %s7, 1024, %s278, [#allocation6], 256, 256, 16
        $region40: #{tpu_custom_call.1} parent=11 // pred_fallthru
          _
      $region12: #{tpu_custom_call.1} parent=5 // pred_fallthru
        _
      %p284 = scmp.lt.s32.totalorder %s19, 2
      // Predicated region
      $region41: #{tpu_custom_call.1} parent=5 // pred_check
        %p285 = pneg %p284
      $region42: #{tpu_custom_call.1} parent=5 // pred_check_branch
        %287 = sbr.rel (%p285) target = $region44
      $region43: #{tpu_custom_call.1} parent=5 // pred_region
        // Predicated region
        $region45: #{tpu_custom_call.1} parent=43 // pred_check
          %p288 = pneg %p39
        $region46: #{tpu_custom_call.1} parent=43 // pred_check_branch
          %290 = sbr.rel (%p288) target = $region48
        $region47: #{tpu_custom_call.1} parent=43 // pred_region
          %s291 = smul.u32 4, %s19
          %p292 = scmp.lt.s32.totalorder %s291, 7
          %s293 = scalar_select %p292, %s291, 7
          %s294 = smul.addr %s293, 8
          %s295 = scalar_lea.vmem %s0, %s294
          %s296 = smul.u32 4, %s19
        $region48: #{tpu_custom_call.1} parent=43 // pred_fallthru
          _
      $region44: #{tpu_custom_call.1} parent=5 // pred_fallthru
        _
      %p297 = scmp.le.s32.totalorder 1, %s19
      %p298 = scmp.lt.s32.totalorder %s19, 3
      %p299 = pnand %p297, %p298
      %p300 = pneg %p299
      // Predicated region
      $region49: #{tpu_custom_call.1} parent=5 // pred_check
        _
      $region50: #{tpu_custom_call.1} parent=5 // pred_check_branch
        %302 = sbr.rel (%p299) target = $region52
      $region51: #{tpu_custom_call.1} parent=5 // pred_region
        %s303 = ssub.s32 %s19, 1
        // Predicated region
        $region53: #{tpu_custom_call.1} parent=51 // pred_check
          %p304 = pneg %p66
        $region54: #{tpu_custom_call.1} parent=51 // pred_check_branch
          %306 = sbr.rel (%p304) target = $region56
        $region55: #{tpu_custom_call.1} parent=51 // pred_region
          %307 = dma.done [#allocation3], 2048
        $region56: #{tpu_custom_call.1} parent=51 // pred_fallthru
          _
        // Predicated region
        $region57: #{tpu_custom_call.1} parent=51 // pred_check
          %p308 = pneg %p129
        $region58: #{tpu_custom_call.1} parent=51 // pred_check_branch
          %310 = sbr.rel (%p308) target = $region60
        $region59: #{tpu_custom_call.1} parent=51 // pred_region
          %311 = dma.done [#allocation6], 512
        $region60: #{tpu_custom_call.1} parent=51 // pred_fallthru
          _
        // Predicated region
        $region61: #{tpu_custom_call.1} parent=51 // pred_check
          %p312 = pneg %p192
        $region62: #{tpu_custom_call.1} parent=51 // pred_check_branch
          %314 = sbr.rel (%p312) target = $region64
        $region63: #{tpu_custom_call.1} parent=51 // pred_region
          %315 = dma.done [#allocation6], 1024
        $region64: #{tpu_custom_call.1} parent=51 // pred_fallthru
          _
        %s316 = smul.u32 4, %s24
        %p317 = scmp.lt.s32.totalorder %s316, 7
        %s318 = scalar_select %p317, %s316, 7
        %s319 = smul.addr %s318, 8
        %s320 = scalar_lea.vmem %s0, %s319
        %p321 = pneg %p45
        %p322 = pneg %p42
        %p323 = pneg %p66
        %p324 = pneg %p63
        %p325 = pneg %p87
        %p326 = pneg %p84
        %p327 = pneg %p108
        %p328 = pneg %p105
        %p329 = pneg %p129
        %p330 = pneg %p126
        %p331 = pneg %p150
        %p332 = pneg %p147
        %p333 = pneg %p171
        %p334 = pneg %p168
        %p335 = pneg %p192
        %p336 = pneg %p189
        %p337 = pneg %p218
        %p338 = pneg %p215
        %s339 = sand.u32 %s205, 1
        %s340 = scalar_lea.sflag [#allocation4], %s339
        %s341 = sand.u32 %s205, 1
        %s342 = smul.addr %s341, 64
        %s343 = scalar_lea.vmem [#allocation8], %s342
        %s344 = smul.u32 4, %s24
        %p345 = scmp.lt.s32.totalorder %s344, 7
        %s346 = scalar_select %p345, %s344, 7
        %s347 = smul.addr %s346, 8
        %s348 = scalar_lea.vmem %s0, %s347
        %s349 = smul.u32 4, %s24
        %s350 = smul.u32 4, %s24
        %v351 = vld [vmem:[%s348] sm:$0xff]
        %v352 = vld [vmem:[%s348 + $0x8] sm:$0xff]
        %v353 = vld [vmem:[%s348 + $0x10] sm:$0xff]
        %v354 = vld [vmem:[%s348 + $0x18] sm:$0xff]
        %v355 = vld [vmem:[%s2] sm:$0xff]
        %v356 = vld [vmem:[%s2 + $0x8] sm:$0xff]
        %v357 = vld [vmem:[%s2 + $0x10] sm:$0xff]
        %v358 = vld [vmem:[%s2 + $0x18] sm:$0xff]
        %v359 = vld [vmem:[%s2 + $0x20] sm:$0xff]
        %v360 = vld [vmem:[%s2 + $0x28] sm:$0xff]
        %v361 = vld [vmem:[%s2 + $0x30] sm:$0xff]
        %v362 = vld [vmem:[%s2 + $0x38] sm:$0xff]
        %v363 = vld [vmem:[%s2 + $0x40] sm:$0xff]
        %v364 = vld [vmem:[%s2 + $0x48] sm:$0xff]
        %v365 = vld [vmem:[%s2 + $0x50] sm:$0xff]
        %v366 = vld [vmem:[%s2 + $0x58] sm:$0xff]
        %v367 = vld [vmem:[%s2 + $0x60] sm:$0xff]
        %v368 = vld [vmem:[%s2 + $0x68] sm:$0xff]
        %v369 = vld [vmem:[%s2 + $0x70] sm:$0xff]
        %v370 = vld [vmem:[%s2 + $0x78] sm:$0xff]
        %v371 = vld [vmem:[%s2 + $0x80] sm:$0xff]
        %v372 = vld [vmem:[%s2 + $0x88] sm:$0xff]
        %v373 = vld [vmem:[%s2 + $0x90] sm:$0xff]
        %v374 = vld [vmem:[%s2 + $0x98] sm:$0xff]
        %v375 = vld [vmem:[%s2 + $0xa0] sm:$0xff]
        %v376 = vld [vmem:[%s2 + $0xa8] sm:$0xff]
        %v377 = vld [vmem:[%s2 + $0xb0] sm:$0xff]
        %v378 = vld [vmem:[%s2 + $0xb8] sm:$0xff]
        %v379 = vld [vmem:[%s2 + $0xc0] sm:$0xff]
        %v380 = vld [vmem:[%s2 + $0xc8] sm:$0xff]
        %v381 = vld [vmem:[%s2 + $0xd0] sm:$0xff]
        %v382 = vld [vmem:[%s2 + $0xd8] sm:$0xff]
        %v383 = vld [vmem:[%s2 + $0xe0] sm:$0xff]
        %v384 = vld [vmem:[%s2 + $0xe8] sm:$0xff]
        %v385 = vld [vmem:[%s2 + $0xf0] sm:$0xff]
        %v386 = vld [vmem:[%s2 + $0xf8] sm:$0xff]
        %v387 = vld [vmem:[%s3] sm:$0x3]
        %v389 = vlaneseq
        %v390 = vshrl.u32 %v389, 7
        %v391 = vsub.s32 0, %v390
        %v392 = vrot.slane %v387, %v391
        %v393 = vlaneseq
        %v394 = vshrl.u32 %v393, 7
        %v395 = vsub.s32 1, %v394
        %v396 = vrot.slane %v387, %v395
        %399 = vmatprep.subr.mxu0 %v356
        %400 = vmatpush1.msra.mxu0 %v355
        %401 = vmatprep.subr.mxu0 %v358
        %402 = vmatpush1.msra.mxu0 %v357
        %403 = vmatprep.subr.mxu0 %v360
        %404 = vmatpush1.msra.mxu0 %v359
        %405 = vmatprep.subr.mxu0 %v362
        %406 = vmatpush1.msra.mxu0 %v361
        %407 = vmatprep.subr.mxu0 %v364
        %408 = vmatpush1.msra.mxu0 %v363
        %409 = vmatprep.subr.mxu0 %v366
        %410 = vmatpush1.msra.mxu0 %v365
        %411 = vmatprep.subr.mxu0 %v368
        %412 = vmatpush1.msra.mxu0 %v367
        %413 = vmatprep.subr.mxu0 %v370
        %414 = vmatpush1.msra.mxu0 %v369
        %415 = vmatprep.subr.mxu0 %v372
        %416 = vmatpush1.msra.mxu0 %v371
        %417 = vmatprep.subr.mxu0 %v374
        %418 = vmatpush1.msra.mxu0 %v373
        %419 = vmatprep.subr.mxu0 %v376
        %420 = vmatpush1.msra.mxu0 %v375
        %421 = vmatprep.subr.mxu0 %v378
        %422 = vmatpush1.msra.mxu0 %v377
        %423 = vmatprep.subr.mxu0 %v380
        %424 = vmatpush1.msra.mxu0 %v379
        %425 = vmatprep.subr.mxu0 %v382
        %426 = vmatpush1.msra.mxu0 %v381
        %427 = vmatprep.subr.mxu0 %v384
        %428 = vmatpush1.msra.mxu0 %v383
        %429 = vmatprep.subr.mxu0 %v386
        %430 = vmatpush1.msra.mxu0 %v385
        %431 = vmatprep.subr.mxu0 0.0
        %432 = vmatpush1.msra.mxu0 0.0
        %433 = vmatprep.subr.mxu0 0.0
        %434 = vmatpush1.msra.mxu0 0.0
        %435 = vmatprep.subr.mxu0 0.0
        %436 = vmatpush1.msra.mxu0 0.0
        %437 = vmatprep.subr.mxu0 0.0
        %438 = vmatpush1.msra.mxu0 0.0
        %439 = vmatprep.subr.mxu0 0.0
        %440 = vmatpush1.msra.mxu0 0.0
        %441 = vmatprep.subr.mxu0 0.0
        %442 = vmatpush1.msra.mxu0 0.0
        %443 = vmatprep.subr.mxu0 0.0
        %444 = vmatpush1.msra.mxu0 0.0
        %445 = vmatprep.subr.mxu0 0.0
        %446 = vmatpush1.msra.mxu0 0.0
        %447 = vmatprep.subr.mxu0 0.0
        %448 = vmatpush1.msra.mxu0 0.0
        %449 = vmatprep.subr.mxu0 0.0
        %450 = vmatpush1.msra.mxu0 0.0
        %451 = vmatprep.subr.mxu0 0.0
        %452 = vmatpush1.msra.mxu0 0.0
        %453 = vmatprep.subr.mxu0 0.0
        %454 = vmatpush1.msra.mxu0 0.0
        %455 = vmatprep.subr.mxu0 0.0
        %456 = vmatpush1.msra.mxu0 0.0
        %457 = vmatprep.subr.mxu0 0.0
        %458 = vmatpush1.msra.mxu0 0.0
        %459 = vmatprep.subr.mxu0 0.0
        %460 = vmatpush1.msra.mxu0 0.0
        %461 = vmatprep.subr.mxu0 0.0
        %462 = vmatpush1.msra.mxu0 0.0
        %463 = vmatprep.mubr.f32.mxu0 0.0
        %464 = vmatmul.mubr.f32.gmra.mrb[0].mxu0 %v351
        %v465 = vpop.f32.mrb[0].mxu0
        %v466 = vadd.f32 %v392, %v465
        %v467 = vpop.f32.mrb[0].mxu0
        %v468 = vadd.f32 %v396, %v467
        %469 = vmatprep.mubr.f32.mxu0 0.0
        %470 = vmatmul.mubr.f32.gmra.mrb[0].mxu0 %v352
        %v471 = vpop.f32.mrb[0].mxu0
        %v472 = vadd.f32 %v392, %v471
        %v473 = vpop.f32.mrb[0].mxu0
        %v474 = vadd.f32 %v396, %v473
        %475 = vmatprep.mubr.f32.mxu0 0.0
        %476 = vmatmul.mubr.f32.gmra.mrb[0].mxu0 %v353
        %v477 = vpop.f32.mrb[0].mxu0
        %v478 = vadd.f32 %v392, %v477
        %v479 = vpop.f32.mrb[0].mxu0
        %v480 = vadd.f32 %v396, %v479
        %481 = vmatprep.mubr.f32.mxu0 0.0
        %482 = vmatmul.mubr.f32.gmra.mrb[0].mxu0 %v354
        %v483 = vpop.f32.mrb[0].mxu0
        %v484 = vadd.f32 %v392, %v483
        %v485 = vpop.f32.mrb[0].mxu0
        %v486 = vadd.f32 %v396, %v485
        %487 = vdwg.mxu0
        %v488 = vld [vmem:[#allocation2] sm:$0xff]
        %v489 = vld [vmem:[#allocation2 + $0x8] sm:$0xff]
        %v490 = vld [vmem:[#allocation2 + $0x10] sm:$0xff]
        %v491 = vld [vmem:[#allocation2 + $0x18] sm:$0xff]
        %v492 = vld [vmem:[#allocation2 + $0x20] sm:$0xff]
        %v493 = vld [vmem:[#allocation2 + $0x28] sm:$0xff]
        %v494 = vld [vmem:[#allocation2 + $0x30] sm:$0xff]
        %v495 = vld [vmem:[#allocation2 + $0x38] sm:$0xff]
        %v496 = vld [vmem:[#allocation2 + $0x40] sm:$0xff]
        %v497 = vld [vmem:[#allocation2 + $0x48] sm:$0xff]
        %v498 = vld [vmem:[#allocation2 + $0x50] sm:$0xff]
        %v499 = vld [vmem:[#allocation2 + $0x58] sm:$0xff]
        %v500 = vld [vmem:[#allocation2 + $0x60] sm:$0xff]
        %v501 = vld [vmem:[#allocation2 + $0x68] sm:$0xff]
        %v502 = vld [vmem:[#allocation2 + $0x70] sm:$0xff]
        %v503 = vld [vmem:[#allocation2 + $0x78] sm:$0xff]
        %504 = vmatprep.subr.mxu0 0.0
        %505 = vmatpush1.msra.mxu0 %v488
        %506 = vmatprep.subr.mxu0 0.0
        %507 = vmatpush1.msra.mxu0 %v489
        %508 = vmatprep.subr.mxu0 0.0
        %509 = vmatpush1.msra.mxu0 %v490
        %510 = vmatprep.subr.mxu0 0.0
        %511 = vmatpush1.msra.mxu0 %v491
        %512 = vmatprep.subr.mxu0 0.0
        %513 = vmatpush1.msra.mxu0 %v492
        %514 = vmatprep.subr.mxu0 0.0
        %515 = vmatpush1.msra.mxu0 %v493
        %516 = vmatprep.subr.mxu0 0.0
        %517 = vmatpush1.msra.mxu0 %v494
        %518 = vmatprep.subr.mxu0 0.0
        %519 = vmatpush1.msra.mxu0 %v495
        %520 = vmatprep.subr.mxu0 0.0
        %521 = vmatpush1.msra.mxu0 %v496
        %522 = vmatprep.subr.mxu0 0.0
        %523 = vmatpush1.msra.mxu0 %v497
        %524 = vmatprep.subr.mxu0 0.0
        %525 = vmatpush1.msra.mxu0 %v498
        %526 = vmatprep.subr.mxu0 0.0
        %527 = vmatpush1.msra.mxu0 %v499
        %528 = vmatprep.subr.mxu0 0.0
        %529 = vmatpush1.msra.mxu0 %v500
        %530 = vmatprep.subr.mxu0 0.0
        %531 = vmatpush1.msra.mxu0 %v501
        %532 = vmatprep.subr.mxu0 0.0
        %533 = vmatpush1.msra.mxu0 %v502
        %534 = vmatprep.subr.mxu0 0.0
        %535 = vmatpush1.msra.mxu0 %v503
        %536 = vmatprep.subr.mxu0 0.0
        %537 = vmatpush1.msra.mxu0 0.0
        %538 = vmatprep.subr.mxu0 0.0
        %539 = vmatpush1.msra.mxu0 0.0
        %540 = vmatprep.subr.mxu0 0.0
        %541 = vmatpush1.msra.mxu0 0.0
        %542 = vmatprep.subr.mxu0 0.0
        %543 = vmatpush1.msra.mxu0 0.0
        %544 = vmatprep.subr.mxu0 0.0
        %545 = vmatpush1.msra.mxu0 0.0
        %546 = vmatprep.subr.mxu0 0.0
        %547 = vmatpush1.msra.mxu0 0.0
        %548 = vmatprep.subr.mxu0 0.0
        %549 = vmatpush1.msra.mxu0 0.0
        %550 = vmatprep.subr.mxu0 0.0
        %551 = vmatpush1.msra.mxu0 0.0
        %552 = vmatprep.subr.mxu0 0.0
        %553 = vmatpush1.msra.mxu0 0.0
        %554 = vmatprep.subr.mxu0 0.0
        %555 = vmatpush1.msra.mxu0 0.0
        %556 = vmatprep.subr.mxu0 0.0
        %557 = vmatpush1.msra.mxu0 0.0
        %558 = vmatprep.subr.mxu0 0.0
        %559 = vmatpush1.msra.mxu0 0.0
        %560 = vmatprep.subr.mxu0 0.0
        %561 = vmatpush1.msra.mxu0 0.0
        %562 = vmatprep.subr.mxu0 0.0
        %563 = vmatpush1.msra.mxu0 0.0
        %564 = vmatprep.subr.mxu0 0.0
        %565 = vmatpush1.msra.mxu0 0.0
        %566 = vmatprep.subr.mxu0 0.0
        %567 = vmatpush1.msra.mxu0 0.0
        %568 = vmatprep.mubr.f32.mxu0 0.0
        %569 = vmatmul.mubr.f32.gmra.mrb[0].mxu0 %v351
        %v570 = vpop.f32.mrb[0].mxu0
        %v571 = vadd.f32 0.0, %v570
        %v572 = vpop.f32.mrb[0].mxu0
        %573 = vmatprep.mubr.f32.mxu0 0.0
        %574 = vmatmul.mubr.f32.gmra.mrb[0].mxu0 %v352
        %v575 = vpop.f32.mrb[0].mxu0
        %v576 = vadd.f32 0.0, %v575
        %v577 = vpop.f32.mrb[0].mxu0
        %578 = vmatprep.mubr.f32.mxu0 0.0
        %579 = vmatmul.mubr.f32.gmra.mrb[0].mxu0 %v353
        %v580 = vpop.f32.mrb[0].mxu0
        %v581 = vadd.f32 0.0, %v580
        %v582 = vpop.f32.mrb[0].mxu0
        %583 = vmatprep.mubr.f32.mxu0 0.0
        %584 = vmatmul.mubr.f32.gmra.mrb[0].mxu0 %v354
        %v585 = vpop.f32.mrb[0].mxu0
        %v586 = vadd.f32 0.0, %v585
        %v587 = vpop.f32.mrb[0].mxu0
        %588 = vdwg.mxu0
        %v589 = vld [vmem:[#allocation5] sm:$0xff]
        %s590 = scalar_lea.vmem [#allocation5], 8
        %v591 = vld [vmem:[%s590] sm:$0xff]
        %s592 = scalar_lea.vmem [#allocation5], 16
        %v593 = vld [vmem:[%s592] sm:$0xff]
        %s594 = scalar_lea.vmem [#allocation5], 24
        %v595 = vld [vmem:[%s594] sm:$0xff]
        %v596 = vld [vmem:[%s5] sm:$0xff]
        %v597 = vld [vmem:[%s5 + $0x8] sm:$0xff]
        %v598 = vld [vmem:[%s5 + $0x10] sm:$0xff]
        %v599 = vld [vmem:[%s5 + $0x18] sm:$0xff]
        %s600 = scalar_lea.vmem %s5, 32
        %v601 = vld [vmem:[%s600] sm:$0xff]
        %v602 = vld [vmem:[%s600 + $0x8] sm:$0xff]
        %v603 = vld [vmem:[%s600 + $0x10] sm:$0xff]
        %v604 = vld [vmem:[%s600 + $0x18] sm:$0xff]
        %s605 = scalar_lea.vmem %s5, 64
        %v606 = vld [vmem:[%s605] sm:$0xff]
        %v607 = vld [vmem:[%s605 + $0x8] sm:$0xff]
        %v608 = vld [vmem:[%s605 + $0x10] sm:$0xff]
        %v609 = vld [vmem:[%s605 + $0x18] sm:$0xff]
        %s610 = scalar_lea.vmem %s5, 96
        %v611 = vld [vmem:[%s610] sm:$0xff]
        %v612 = vld [vmem:[%s610 + $0x8] sm:$0xff]
        %v613 = vld [vmem:[%s610 + $0x10] sm:$0xff]
        %v614 = vld [vmem:[%s610 + $0x18] sm:$0xff]
        %v615 = vld [vmem:[%s6] sm:$0xff]
        %v616 = vld [vmem:[%s6 + $0x8] sm:$0xff]
        %v617 = vld [vmem:[%s6 + $0x10] sm:$0xff]
        %v618 = vld [vmem:[%s6 + $0x18] sm:$0xff]
        %s619 = scalar_lea.vmem %s6, 32
        %v620 = vld [vmem:[%s619] sm:$0xff]
        %v621 = vld [vmem:[%s619 + $0x8] sm:$0xff]
        %v622 = vld [vmem:[%s619 + $0x10] sm:$0xff]
        %v623 = vld [vmem:[%s619 + $0x18] sm:$0xff]
        %s624 = scalar_lea.vmem %s6, 64
        %v625 = vld [vmem:[%s624] sm:$0xff]
        %v626 = vld [vmem:[%s624 + $0x8] sm:$0xff]
        %v627 = vld [vmem:[%s624 + $0x10] sm:$0xff]
        %v628 = vld [vmem:[%s624 + $0x18] sm:$0xff]
        %s629 = scalar_lea.vmem %s6, 96
        %v630 = vld [vmem:[%s629] sm:$0xff]
        %v631 = vld [vmem:[%s629 + $0x8] sm:$0xff]
        %v632 = vld [vmem:[%s629 + $0x10] sm:$0xff]
        %v633 = vld [vmem:[%s629 + $0x18] sm:$0xff]
        %v634 = vld [vmem:[#allocation7] sm:$0xff]
        %v635 = vld [vmem:[#allocation7 + $0x8] sm:$0xff]
        %s636 = scalar_lea.vmem [#allocation7], 16
        %v637 = vld [vmem:[%s636] sm:$0xff]
        %v638 = vld [vmem:[%s636 + $0x8] sm:$0xff]
        %s639 = scalar_lea.vmem [#allocation7], 32
        %v640 = vld [vmem:[%s639] sm:$0xff]
        %v641 = vld [vmem:[%s639 + $0x8] sm:$0xff]
        %s642 = scalar_lea.vmem [#allocation7], 48
        %v643 = vld [vmem:[%s642] sm:$0xff]
        %v644 = vld [vmem:[%s642 + $0x8] sm:$0xff]
        %vm645 = vcmask 261120
        %v647 = vsel %vm645, %v589, 0
        %649 = vmatprep.subr.mxu0 0.0
        %650 = vmatpush1.msra.mxu0 %v571
        %651 = vmatprep.subr.mxu0 0.0
        %652 = vmatpush1.msra.mxu0 %v576
        %653 = vmatprep.subr.mxu0 0.0
        %654 = vmatpush1.msra.mxu0 %v581
        %655 = vmatprep.subr.mxu0 0.0
        %656 = vmatpush1.msra.mxu0 %v586
        %657 = vmatprep.subr.mxu0 0.0
        %658 = vmatpush1.msra.mxu0 0.0
        %659 = vmatprep.subr.mxu0 0.0
        %660 = vmatpush1.msra.mxu0 0.0
        %661 = vmatprep.subr.mxu0 0.0
        %662 = vmatpush1.msra.mxu0 0.0
        %663 = vmatprep.subr.mxu0 0.0
        %664 = vmatpush1.msra.mxu0 0.0
        %665 = vmatprep.subr.mxu0 0.0
        %666 = vmatpush1.msra.mxu0 0.0
        %667 = vmatprep.subr.mxu0 0.0
        %668 = vmatpush1.msra.mxu0 0.0
        %669 = vmatprep.subr.mxu0 0.0
        %670 = vmatpush1.msra.mxu0 0.0
        %671 = vmatprep.subr.mxu0 0.0
        %672 = vmatpush1.msra.mxu0 0.0
        %673 = vmatprep.subr.mxu0 0.0
        %674 = vmatpush1.msra.mxu0 0.0
        %675 = vmatprep.subr.mxu0 0.0
        %676 = vmatpush1.msra.mxu0 0.0
        %677 = vmatprep.subr.mxu0 0.0
        %678 = vmatpush1.msra.mxu0 0.0
        %679 = vmatprep.subr.mxu0 0.0
        %680 = vmatpush1.msra.mxu0 0.0
        %681 = vmatprep.subr.mxu0 0.0
        %682 = vmatpush1.msra.mxu0 0.0
        %683 = vmatprep.subr.mxu0 0.0
        %684 = vmatpush1.msra.mxu0 0.0
        %685 = vmatprep.subr.mxu0 0.0
        %686 = vmatpush1.msra.mxu0 0.0
        %687 = vmatprep.subr.mxu0 0.0
        %688 = vmatpush1.msra.mxu0 0.0
        %689 = vmatprep.subr.mxu0 0.0
        %690 = vmatpush1.msra.mxu0 0.0
        %691 = vmatprep.subr.mxu0 0.0
        %692 = vmatpush1.msra.mxu0 0.0
        %693 = vmatprep.subr.mxu0 0.0
        %694 = vmatpush1.msra.mxu0 0.0
        %695 = vmatprep.subr.mxu0 0.0
        %696 = vmatpush1.msra.mxu0 0.0
        %697 = vmatprep.subr.mxu0 0.0
        %698 = vmatpush1.msra.mxu0 0.0
        %699 = vmatprep.subr.mxu0 0.0
        %700 = vmatpush1.msra.mxu0 0.0
        %701 = vmatprep.subr.mxu0 0.0
        %702 = vmatpush1.msra.mxu0 0.0
        %703 = vmatprep.subr.mxu0 0.0
        %704 = vmatpush1.msra.mxu0 0.0
        %705 = vmatprep.subr.mxu0 0.0
        %706 = vmatpush1.msra.mxu0 0.0
        %707 = vmatprep.subr.mxu0 0.0
        %708 = vmatpush1.msra.mxu0 0.0
        %709 = vmatprep.subr.mxu0 0.0
        %710 = vmatpush1.msra.mxu0 0.0
        %711 = vmatprep.subr.mxu0 0.0
        %712 = vmatpush1.msra.mxu0 0.0
        %713 = vmatprep.mubr.f32.mxu0 0.0
        %714 = vmatmul.mubr.f32.gmra.mrb[0].mxu0 %v647
        %v715 = vpop.f32.mrb[0].mxu0
        %v716 = vadd.f32 0.0, %v715
        %v717 = vpop.f32.mrb[0].mxu0
        %718 = vdwg.mxu0
        %v720 = vsel %vm645, %v716, 0
        %722 = vmatprep.subr.mxu0 0.0
        %723 = vmatpush1.msra.mxu0 %v596
        %724 = vmatprep.subr.mxu0 0.0
        %725 = vmatpush1.msra.mxu0 %v597
        %726 = vmatprep.subr.mxu0 0.0
        %727 = vmatpush1.msra.mxu0 %v598
        %728 = vmatprep.subr.mxu0 0.0
        %729 = vmatpush1.msra.mxu0 %v599
        %730 = vmatprep.subr.mxu0 0.0
        %731 = vmatpush1.msra.mxu0 0.0
        %732 = vmatprep.subr.mxu0 0.0
        %733 = vmatpush1.msra.mxu0 0.0
        %734 = vmatprep.subr.mxu0 0.0
        %735 = vmatpush1.msra.mxu0 0.0
        %736 = vmatprep.subr.mxu0 0.0
        %737 = vmatpush1.msra.mxu0 0.0
        %738 = vmatprep.subr.mxu0 0.0
        %739 = vmatpush1.msra.mxu0 0.0
        %740 = vmatprep.subr.mxu0 0.0
        %741 = vmatpush1.msra.mxu0 0.0
        %742 = vmatprep.subr.mxu0 0.0
        %743 = vmatpush1.msra.mxu0 0.0
        %744 = vmatprep.subr.mxu0 0.0
        %745 = vmatpush1.msra.mxu0 0.0
        %746 = vmatprep.subr.mxu0 0.0
        %747 = vmatpush1.msra.mxu0 0.0
        %748 = vmatprep.subr.mxu0 0.0
        %749 = vmatpush1.msra.mxu0 0.0
        %750 = vmatprep.subr.mxu0 0.0
        %751 = vmatpush1.msra.mxu0 0.0
        %752 = vmatprep.subr.mxu0 0.0
        %753 = vmatpush1.msra.mxu0 0.0
        %754 = vmatprep.subr.mxu0 0.0
        %755 = vmatpush1.msra.mxu0 0.0
        %756 = vmatprep.subr.mxu0 0.0
        %757 = vmatpush1.msra.mxu0 0.0
        %758 = vmatprep.subr.mxu0 0.0
        %759 = vmatpush1.msra.mxu0 0.0
        %760 = vmatprep.subr.mxu0 0.0
        %761 = vmatpush1.msra.mxu0 0.0
        %762 = vmatprep.subr.mxu0 0.0
        %763 = vmatpush1.msra.mxu0 0.0
        %764 = vmatprep.subr.mxu0 0.0
        %765 = vmatpush1.msra.mxu0 0.0
        %766 = vmatprep.subr.mxu0 0.0
        %767 = vmatpush1.msra.mxu0 0.0
        %768 = vmatprep.subr.mxu0 0.0
        %769 = vmatpush1.msra.mxu0 0.0
        %770 = vmatprep.subr.mxu0 0.0
        %771 = vmatpush1.msra.mxu0 0.0
        %772 = vmatprep.subr.mxu0 0.0
        %773 = vmatpush1.msra.mxu0 0.0
        %774 = vmatprep.subr.mxu0 0.0
        %775 = vmatpush1.msra.mxu0 0.0
        %776 = vmatprep.subr.mxu0 0.0
        %777 = vmatpush1.msra.mxu0 0.0
        %778 = vmatprep.subr.mxu0 0.0
        %779 = vmatpush1.msra.mxu0 0.0
        %780 = vmatprep.subr.mxu0 0.0
        %781 = vmatpush1.msra.mxu0 0.0
        %782 = vmatprep.subr.mxu0 0.0
        %783 = vmatpush1.msra.mxu0 0.0
        %784 = vmatprep.subr.mxu0 0.0
        %785 = vmatpush1.msra.mxu0 0.0
        %786 = vmatprep.mubr.f32.mxu0 0.0
        %787 = vmatmul.mubr.f32.gmra.mrb[0].mxu0 %v720
        %v788 = vpop.f32.mrb[0].mxu0
        %v789 = vadd.f32 0.0, %v788
        %v790 = vpop.f32.mrb[0].mxu0
        %791 = vdwg.mxu0
        %vm792 = vcmp.ge.f32.partialorder %v789, 0.0
        %v793 = vmul.f32 %v789, 0.2
        %v794 = vsel %vm792, %v789, %v793
        %vm795 = vcmask 64512
        %v797 = vsel %vm795, %v794, 0
        %799 = vmatprep.subr.mxu0 %v635
        %800 = vmatpush1.msra.mxu0 %v634
        %801 = vmatprep.subr.mxu0 0.0
        %802 = vmatpush1.msra.mxu0 0.0
        %803 = vmatprep.subr.mxu0 0.0
        %804 = vmatpush1.msra.mxu0 0.0
        %805 = vmatprep.subr.mxu0 0.0
        %806 = vmatpush1.msra.mxu0 0.0
        %807 = vmatprep.subr.mxu0 0.0
        %808 = vmatpush1.msra.mxu0 0.0
        %809 = vmatprep.subr.mxu0 0.0
        %810 = vmatpush1.msra.mxu0 0.0
        %811 = vmatprep.subr.mxu0 0.0
        %812 = vmatpush1.msra.mxu0 0.0
        %813 = vmatprep.subr.mxu0 0.0
        %814 = vmatpush1.msra.mxu0 0.0
        %815 = vmatprep.subr.mxu0 0.0
        %816 = vmatpush1.msra.mxu0 0.0
        %817 = vmatprep.subr.mxu0 0.0
        %818 = vmatpush1.msra.mxu0 0.0
        %819 = vmatprep.subr.mxu0 0.0
        %820 = vmatpush1.msra.mxu0 0.0
        %821 = vmatprep.subr.mxu0 0.0
        %822 = vmatpush1.msra.mxu0 0.0
        %823 = vmatprep.subr.mxu0 0.0
        %824 = vmatpush1.msra.mxu0 0.0
        %825 = vmatprep.subr.mxu0 0.0
        %826 = vmatpush1.msra.mxu0 0.0
        %827 = vmatprep.subr.mxu0 0.0
        %828 = vmatpush1.msra.mxu0 0.0
        %829 = vmatprep.subr.mxu0 0.0
        %830 = vmatpush1.msra.mxu0 0.0
        %831 = vmatprep.subr.mxu0 0.0
        %832 = vmatpush1.msra.mxu0 0.0
        %833 = vmatprep.subr.mxu0 0.0
        %834 = vmatpush1.msra.mxu0 0.0
        %835 = vmatprep.subr.mxu0 0.0
        %836 = vmatpush1.msra.mxu0 0.0
        %837 = vmatprep.subr.mxu0 0.0
        %838 = vmatpush1.msra.mxu0 0.0
        %839 = vmatprep.subr.mxu0 0.0
        %840 = vmatpush1.msra.mxu0 0.0
        %841 = vmatprep.subr.mxu0 0.0
        %842 = vmatpush1.msra.mxu0 0.0
        %843 = vmatprep.subr.mxu0 0.0
        %844 = vmatpush1.msra.mxu0 0.0
        %845 = vmatprep.subr.mxu0 0.0
        %846 = vmatpush1.msra.mxu0 0.0
        %847 = vmatprep.subr.mxu0 0.0
        %848 = vmatpush1.msra.mxu0 0.0
        %849 = vmatprep.subr.mxu0 0.0
        %850 = vmatpush1.msra.mxu0 0.0
        %851 = vmatprep.subr.mxu0 0.0
        %852 = vmatpush1.msra.mxu0 0.0
        %853 = vmatprep.subr.mxu0 0.0
        %854 = vmatpush1.msra.mxu0 0.0
        %855 = vmatprep.subr.mxu0 0.0
        %856 = vmatpush1.msra.mxu0 0.0
        %857 = vmatprep.subr.mxu0 0.0
        %858 = vmatpush1.msra.mxu0 0.0
        %859 = vmatprep.subr.mxu0 0.0
        %860 = vmatpush1.msra.mxu0 0.0
        %861 = vmatprep.subr.mxu0 0.0
        %862 = vmatpush1.msra.mxu0 0.0
        %863 = vmatprep.mubr.f32.mxu0 0.0
        %864 = vmatmul.mubr.f32.gmra.mrb[0].mxu0 %v797
        %v865 = vpop.f32.mrb[0].mxu0
        %v866 = vadd.f32 0.0, %v865
        %v867 = vpop.f32.mrb[0].mxu0
        %v868 = vadd.f32 0.0, %v867
        %869 = vdwg.mxu0
        %v871 = vsel %vm795, %v615, 0
        %v874 = vsel %vm795, %v616, 0
        %v877 = vsel %vm795, %v617, 0
        %v880 = vsel %vm795, %v618, 0
        %882 = vmatprep.subr.mxu0 %v868
        %883 = vmatpush1.msra.mxu0 %v866
        %884 = vmatprep.subr.mxu0 0.0
        %885 = vmatpush1.msra.mxu0 0.0
        %886 = vmatprep.subr.mxu0 0.0
        %887 = vmatpush1.msra.mxu0 0.0
        %888 = vmatprep.subr.mxu0 0.0
        %889 = vmatpush1.msra.mxu0 0.0
        %890 = vmatprep.subr.mxu0 0.0
        %891 = vmatpush1.msra.mxu0 0.0
        %892 = vmatprep.subr.mxu0 0.0
        %893 = vmatpush1.msra.mxu0 0.0
        %894 = vmatprep.subr.mxu0 0.0
        %895 = vmatpush1.msra.mxu0 0.0
        %896 = vmatprep.subr.mxu0 0.0
        %897 = vmatpush1.msra.mxu0 0.0
        %898 = vmatprep.subr.mxu0 0.0
        %899 = vmatpush1.msra.mxu0 0.0
        %900 = vmatprep.subr.mxu0 0.0
        %901 = vmatpush1.msra.mxu0 0.0
        %902 = vmatprep.subr.mxu0 0.0
        %903 = vmatpush1.msra.mxu0 0.0
        %904 = vmatprep.subr.mxu0 0.0
        %905 = vmatpush1.msra.mxu0 0.0
        %906 = vmatprep.subr.mxu0 0.0
        %907 = vmatpush1.msra.mxu0 0.0
        %908 = vmatprep.subr.mxu0 0.0
        %909 = vmatpush1.msra.mxu0 0.0
        %910 = vmatprep.subr.mxu0 0.0
        %911 = vmatpush1.msra.mxu0 0.0
        %912 = vmatprep.subr.mxu0 0.0
        %913 = vmatpush1.msra.mxu0 0.0
        %914 = vmatprep.subr.mxu0 0.0
        %915 = vmatpush1.msra.mxu0 0.0
        %916 = vmatprep.subr.mxu0 0.0
        %917 = vmatpush1.msra.mxu0 0.0
        %918 = vmatprep.subr.mxu0 0.0
        %919 = vmatpush1.msra.mxu0 0.0
        %920 = vmatprep.subr.mxu0 0.0
        %921 = vmatpush1.msra.mxu0 0.0
        %922 = vmatprep.subr.mxu0 0.0
        %923 = vmatpush1.msra.mxu0 0.0
        %924 = vmatprep.subr.mxu0 0.0
        %925 = vmatpush1.msra.mxu0 0.0
        %926 = vmatprep.subr.mxu0 0.0
        %927 = vmatpush1.msra.mxu0 0.0
        %928 = vmatprep.subr.mxu0 0.0
        %929 = vmatpush1.msra.mxu0 0.0
        %930 = vmatprep.subr.mxu0 0.0
        %931 = vmatpush1.msra.mxu0 0.0
        %932 = vmatprep.subr.mxu0 0.0
        %933 = vmatpush1.msra.mxu0 0.0
        %934 = vmatprep.subr.mxu0 0.0
        %935 = vmatpush1.msra.mxu0 0.0
        %936 = vmatprep.subr.mxu0 0.0
        %937 = vmatpush1.msra.mxu0 0.0
        %938 = vmatprep.subr.mxu0 0.0
        %939 = vmatpush1.msra.mxu0 0.0
        %940 = vmatprep.subr.mxu0 0.0
        %941 = vmatpush1.msra.mxu0 0.0
        %942 = vmatprep.subr.mxu0 0.0
        %943 = vmatpush1.msra.mxu0 0.0
        %944 = vmatprep.subr.mxu0 0.0
        %945 = vmatpush1.msra.mxu0 0.0
        %946 = vmatprep.mubr.f32.mxu0 0.0
        %947 = vmatmul.mubr.f32.gmra.mrb[0].mxu0 %v871
        %v948 = vpop.f32.mrb[0].mxu0
        %v949 = vadd.f32 0.0, %v948
        %v950 = vpop.f32.mrb[0].mxu0
        %v951 = vadd.f32 0.0, %v950
        %952 = vmatprep.mubr.f32.mxu0 0.0
        %953 = vmatmul.mubr.f32.gmra.mrb[0].mxu0 %v874
        %v954 = vpop.f32.mrb[0].mxu0
        %v955 = vadd.f32 0.0, %v954
        %v956 = vpop.f32.mrb[0].mxu0
        %v957 = vadd.f32 0.0, %v956
        %958 = vmatprep.mubr.f32.mxu0 0.0
        %959 = vmatmul.mubr.f32.gmra.mrb[0].mxu0 %v877
        %v960 = vpop.f32.mrb[0].mxu0
        %v961 = vadd.f32 0.0, %v960
        %v962 = vpop.f32.mrb[0].mxu0
        %v963 = vadd.f32 0.0, %v962
        %964 = vmatprep.mubr.f32.mxu0 0.0
        %965 = vmatmul.mubr.f32.gmra.mrb[0].mxu0 %v880
        %v966 = vpop.f32.mrb[0].mxu0
        %v967 = vadd.f32 0.0, %v966
        %v968 = vpop.f32.mrb[0].mxu0
        %v969 = vadd.f32 0.0, %v968
        %970 = vdwg.mxu0
        %v971 = vadd.f32 %v466, %v949
        %v972 = vadd.f32 %v468, %v951
        %v973 = vadd.f32 %v472, %v955
        %v974 = vadd.f32 %v474, %v957
        %v975 = vadd.f32 %v478, %v961
        %v976 = vadd.f32 %v480, %v963
        %v977 = vadd.f32 %v484, %v967
        %v978 = vadd.f32 %v486, %v969
        %983 = vrot.lane.b32.xlu0 %v571, 96
        %v984 = vpop.permute.xlu0 %983
        %985 = vrot.lane.b32.xlu0 %v576, 96
        %v986 = vpop.permute.xlu0 %985
        %987 = vrot.lane.b32.xlu0 %v581, 96
        %v988 = vpop.permute.xlu0 %987
        %989 = vrot.lane.b32.xlu0 %v586, 96
        %v990 = vpop.permute.xlu0 %989
        %v996 = vsel %vm645, %v591, 0
        %998 = vmatprep.subr.mxu0 0.0
        %999 = vmatpush1.msra.mxu0 %v984
        %1000 = vmatprep.subr.mxu0 0.0
        %1001 = vmatpush1.msra.mxu0 %v986
        %1002 = vmatprep.subr.mxu0 0.0
        %1003 = vmatpush1.msra.mxu0 %v988
        %1004 = vmatprep.subr.mxu0 0.0
        %1005 = vmatpush1.msra.mxu0 %v990
        %1006 = vmatprep.subr.mxu0 0.0
        %1007 = vmatpush1.msra.mxu0 0.0
        %1008 = vmatprep.subr.mxu0 0.0
        %1009 = vmatpush1.msra.mxu0 0.0
        %1010 = vmatprep.subr.mxu0 0.0
        %1011 = vmatpush1.msra.mxu0 0.0
        %1012 = vmatprep.subr.mxu0 0.0
        %1013 = vmatpush1.msra.mxu0 0.0
        %1014 = vmatprep.subr.mxu0 0.0
        %1015 = vmatpush1.msra.mxu0 0.0
        %1016 = vmatprep.subr.mxu0 0.0
        %1017 = vmatpush1.msra.mxu0 0.0
        %1018 = vmatprep.subr.mxu0 0.0
        %1019 = vmatpush1.msra.mxu0 0.0
        %1020 = vmatprep.subr.mxu0 0.0
        %1021 = vmatpush1.msra.mxu0 0.0
        %1022 = vmatprep.subr.mxu0 0.0
        %1023 = vmatpush1.msra.mxu0 0.0
        %1024 = vmatprep.subr.mxu0 0.0
        %1025 = vmatpush1.msra.mxu0 0.0
        %1026 = vmatprep.subr.mxu0 0.0
        %1027 = vmatpush1.msra.mxu0 0.0
        %1028 = vmatprep.subr.mxu0 0.0
        %1029 = vmatpush1.msra.mxu0 0.0
        %1030 = vmatprep.subr.mxu0 0.0
        %1031 = vmatpush1.msra.mxu0 0.0
        %1032 = vmatprep.subr.mxu0 0.0
        %1033 = vmatpush1.msra.mxu0 0.0
        %1034 = vmatprep.subr.mxu0 0.0
        %1035 = vmatpush1.msra.mxu0 0.0
        %1036 = vmatprep.subr.mxu0 0.0
        %1037 = vmatpush1.msra.mxu0 0.0
        %1038 = vmatprep.subr.mxu0 0.0
        %1039 = vmatpush1.msra.mxu0 0.0
        %1040 = vmatprep.subr.mxu0 0.0
        %1041 = vmatpush1.msra.mxu0 0.0
        %1042 = vmatprep.subr.mxu0 0.0
        %1043 = vmatpush1.msra.mxu0 0.0
        %1044 = vmatprep.subr.mxu0 0.0
        %1045 = vmatpush1.msra.mxu0 0.0
        %1046 = vmatprep.subr.mxu0 0.0
        %1047 = vmatpush1.msra.mxu0 0.0
        %1048 = vmatprep.subr.mxu0 0.0
        %1049 = vmatpush1.msra.mxu0 0.0
        %1050 = vmatprep.subr.mxu0 0.0
        %1051 = vmatpush1.msra.mxu0 0.0
        %1052 = vmatprep.subr.mxu0 0.0
        %1053 = vmatpush1.msra.mxu0 0.0
        %1054 = vmatprep.subr.mxu0 0.0
        %1055 = vmatpush1.msra.mxu0 0.0
        %1056 = vmatprep.subr.mxu0 0.0
        %1057 = vmatpush1.msra.mxu0 0.0
        %1058 = vmatprep.subr.mxu0 0.0
        %1059 = vmatpush1.msra.mxu0 0.0
        %1060 = vmatprep.subr.mxu0 0.0
        %1061 = vmatpush1.msra.mxu0 0.0
        %1062 = vmatprep.mubr.f32.mxu0 0.0
        %1063 = vmatmul.mubr.f32.gmra.mrb[0].mxu0 %v996
        %v1064 = vpop.f32.mrb[0].mxu0
        %v1065 = vadd.f32 0.0, %v1064
        %v1066 = vpop.f32.mrb[0].mxu0
        %1067 = vdwg.mxu0
        %v1069 = vsel %vm645, %v1065, 0
        %1071 = vmatprep.subr.mxu0 0.0
        %1072 = vmatpush1.msra.mxu0 %v601
        %1073 = vmatprep.subr.mxu0 0.0
        %1074 = vmatpush1.msra.mxu0 %v602
        %1075 = vmatprep.subr.mxu0 0.0
        %1076 = vmatpush1.msra.mxu0 %v603
        %1077 = vmatprep.subr.mxu0 0.0
        %1078 = vmatpush1.msra.mxu0 %v604
        %1079 = vmatprep.subr.mxu0 0.0
        %1080 = vmatpush1.msra.mxu0 0.0
        %1081 = vmatprep.subr.mxu0 0.0
        %1082 = vmatpush1.msra.mxu0 0.0
        %1083 = vmatprep.subr.mxu0 0.0
        %1084 = vmatpush1.msra.mxu0 0.0
        %1085 = vmatprep.subr.mxu0 0.0
        %1086 = vmatpush1.msra.mxu0 0.0
        %1087 = vmatprep.subr.mxu0 0.0
        %1088 = vmatpush1.msra.mxu0 0.0
        %1089 = vmatprep.subr.mxu0 0.0
        %1090 = vmatpush1.msra.mxu0 0.0
        %1091 = vmatprep.subr.mxu0 0.0
        %1092 = vmatpush1.msra.mxu0 0.0
        %1093 = vmatprep.subr.mxu0 0.0
        %1094 = vmatpush1.msra.mxu0 0.0
        %1095 = vmatprep.subr.mxu0 0.0
        %1096 = vmatpush1.msra.mxu0 0.0
        %1097 = vmatprep.subr.mxu0 0.0
        %1098 = vmatpush1.msra.mxu0 0.0
        %1099 = vmatprep.subr.mxu0 0.0
        %1100 = vmatpush1.msra.mxu0 0.0
        %1101 = vmatprep.subr.mxu0 0.0
        %1102 = vmatpush1.msra.mxu0 0.0
        %1103 = vmatprep.subr.mxu0 0.0
        %1104 = vmatpush1.msra.mxu0 0.0
        %1105 = vmatprep.subr.mxu0 0.0
        %1106 = vmatpush1.msra.mxu0 0.0
        %1107 = vmatprep.subr.mxu0 0.0
        %1108 = vmatpush1.msra.mxu0 0.0
        %1109 = vmatprep.subr.mxu0 0.0
        %1110 = vmatpush1.msra.mxu0 0.0
        %1111 = vmatprep.subr.mxu0 0.0
        %1112 = vmatpush1.msra.mxu0 0.0
        %1113 = vmatprep.subr.mxu0 0.0
        %1114 = vmatpush1.msra.mxu0 0.0
        %1115 = vmatprep.subr.mxu0 0.0
        %1116 = vmatpush1.msra.mxu0 0.0
        %1117 = vmatprep.subr.mxu0 0.0
        %1118 = vmatpush1.msra.mxu0 0.0
        %1119 = vmatprep.subr.mxu0 0.0
        %1120 = vmatpush1.msra.mxu0 0.0
        %1121 = vmatprep.subr.mxu0 0.0
        %1122 = vmatpush1.msra.mxu0 0.0
        %1123 = vmatprep.subr.mxu0 0.0
        %1124 = vmatpush1.msra.mxu0 0.0
        %1125 = vmatprep.subr.mxu0 0.0
        %1126 = vmatpush1.msra.mxu0 0.0
        %1127 = vmatprep.subr.mxu0 0.0
        %1128 = vmatpush1.msra.mxu0 0.0
        %1129 = vmatprep.subr.mxu0 0.0
        %1130 = vmatpush1.msra.mxu0 0.0
        %1131 = vmatprep.subr.mxu0 0.0
        %1132 = vmatpush1.msra.mxu0 0.0
        %1133 = vmatprep.subr.mxu0 0.0
        %1134 = vmatpush1.msra.mxu0 0.0
        %1135 = vmatprep.mubr.f32.mxu0 0.0
        %1136 = vmatmul.mubr.f32.gmra.mrb[0].mxu0 %v1069
        %v1137 = vpop.f32.mrb[0].mxu0
        %v1138 = vadd.f32 0.0, %v1137
        %v1139 = vpop.f32.mrb[0].mxu0
        %1140 = vdwg.mxu0
        %vm1141 = vcmp.ge.f32.partialorder %v1138, 0.0
        %v1142 = vmul.f32 %v1138, 0.2
        %v1143 = vsel %vm1141, %v1138, %v1142
        %v1145 = vsel %vm795, %v1143, 0
        %1147 = vmatprep.subr.mxu0 %v638
        %1148 = vmatpush1.msra.mxu0 %v637
        %1149 = vmatprep.subr.mxu0 0.0
        %1150 = vmatpush1.msra.mxu0 0.0
        %1151 = vmatprep.subr.mxu0 0.0
        %1152 = vmatpush1.msra.mxu0 0.0
        %1153 = vmatprep.subr.mxu0 0.0
        %1154 = vmatpush1.msra.mxu0 0.0
        %1155 = vmatprep.subr.mxu0 0.0
        %1156 = vmatpush1.msra.mxu0 0.0
        %1157 = vmatprep.subr.mxu0 0.0
        %1158 = vmatpush1.msra.mxu0 0.0
        %1159 = vmatprep.subr.mxu0 0.0
        %1160 = vmatpush1.msra.mxu0 0.0
        %1161 = vmatprep.subr.mxu0 0.0
        %1162 = vmatpush1.msra.mxu0 0.0
        %1163 = vmatprep.subr.mxu0 0.0
        %1164 = vmatpush1.msra.mxu0 0.0
        %1165 = vmatprep.subr.mxu0 0.0
        %1166 = vmatpush1.msra.mxu0 0.0
        %1167 = vmatprep.subr.mxu0 0.0
        %1168 = vmatpush1.msra.mxu0 0.0
        %1169 = vmatprep.subr.mxu0 0.0
        %1170 = vmatpush1.msra.mxu0 0.0
        %1171 = vmatprep.subr.mxu0 0.0
        %1172 = vmatpush1.msra.mxu0 0.0
        %1173 = vmatprep.subr.mxu0 0.0
        %1174 = vmatpush1.msra.mxu0 0.0
        %1175 = vmatprep.subr.mxu0 0.0
        %1176 = vmatpush1.msra.mxu0 0.0
        %1177 = vmatprep.subr.mxu0 0.0
        %1178 = vmatpush1.msra.mxu0 0.0
        %1179 = vmatprep.subr.mxu0 0.0
        %1180 = vmatpush1.msra.mxu0 0.0
        %1181 = vmatprep.subr.mxu0 0.0
        %1182 = vmatpush1.msra.mxu0 0.0
        %1183 = vmatprep.subr.mxu0 0.0
        %1184 = vmatpush1.msra.mxu0 0.0
        %1185 = vmatprep.subr.mxu0 0.0
        %1186 = vmatpush1.msra.mxu0 0.0
        %1187 = vmatprep.subr.mxu0 0.0
        %1188 = vmatpush1.msra.mxu0 0.0
        %1189 = vmatprep.subr.mxu0 0.0
        %1190 = vmatpush1.msra.mxu0 0.0
        %1191 = vmatprep.subr.mxu0 0.0
        %1192 = vmatpush1.msra.mxu0 0.0
        %1193 = vmatprep.subr.mxu0 0.0
        %1194 = vmatpush1.msra.mxu0 0.0
        %1195 = vmatprep.subr.mxu0 0.0
        %1196 = vmatpush1.msra.mxu0 0.0
        %1197 = vmatprep.subr.mxu0 0.0
        %1198 = vmatpush1.msra.mxu0 0.0
        %1199 = vmatprep.subr.mxu0 0.0
        %1200 = vmatpush1.msra.mxu0 0.0
        %1201 = vmatprep.subr.mxu0 0.0
        %1202 = vmatpush1.msra.mxu0 0.0
        %1203 = vmatprep.subr.mxu0 0.0
        %1204 = vmatpush1.msra.mxu0 0.0
        %1205 = vmatprep.subr.mxu0 0.0
        %1206 = vmatpush1.msra.mxu0 0.0
        %1207 = vmatprep.subr.mxu0 0.0
        %1208 = vmatpush1.msra.mxu0 0.0
        %1209 = vmatprep.subr.mxu0 0.0
        %1210 = vmatpush1.msra.mxu0 0.0
        %1211 = vmatprep.mubr.f32.mxu0 0.0
        %1212 = vmatmul.mubr.f32.gmra.mrb[0].mxu0 %v1145
        %v1213 = vpop.f32.mrb[0].mxu0
        %v1214 = vadd.f32 0.0, %v1213
        %v1215 = vpop.f32.mrb[0].mxu0
        %v1216 = vadd.f32 0.0, %v1215
        %1217 = vdwg.mxu0
        %v1219 = vsel %vm795, %v620, 0
        %v1222 = vsel %vm795, %v621, 0
        %v1225 = vsel %vm795, %v622, 0
        %v1228 = vsel %vm795, %v623, 0
        %1230 = vmatprep.subr.mxu0 %v1216
        %1231 = vmatpush1.msra.mxu0 %v1214
        %1232 = vmatprep.subr.mxu0 0.0
        %1233 = vmatpush1.msra.mxu0 0.0
        %1234 = vmatprep.subr.mxu0 0.0
        %1235 = vmatpush1.msra.mxu0 0.0
        %1236 = vmatprep.subr.mxu0 0.0
        %1237 = vmatpush1.msra.mxu0 0.0
        %1238 = vmatprep.subr.mxu0 0.0
        %1239 = vmatpush1.msra.mxu0 0.0
        %1240 = vmatprep.subr.mxu0 0.0
        %1241 = vmatpush1.msra.mxu0 0.0
        %1242 = vmatprep.subr.mxu0 0.0
        %1243 = vmatpush1.msra.mxu0 0.0
        %1244 = vmatprep.subr.mxu0 0.0
        %1245 = vmatpush1.msra.mxu0 0.0
        %1246 = vmatprep.subr.mxu0 0.0
        %1247 = vmatpush1.msra.mxu0 0.0
        %1248 = vmatprep.subr.mxu0 0.0
        %1249 = vmatpush1.msra.mxu0 0.0
        %1250 = vmatprep.subr.mxu0 0.0
        %1251 = vmatpush1.msra.mxu0 0.0
        %1252 = vmatprep.subr.mxu0 0.0
        %1253 = vmatpush1.msra.mxu0 0.0
        %1254 = vmatprep.subr.mxu0 0.0
        %1255 = vmatpush1.msra.mxu0 0.0
        %1256 = vmatprep.subr.mxu0 0.0
        %1257 = vmatpush1.msra.mxu0 0.0
        %1258 = vmatprep.subr.mxu0 0.0
        %1259 = vmatpush1.msra.mxu0 0.0
        %1260 = vmatprep.subr.mxu0 0.0
        %1261 = vmatpush1.msra.mxu0 0.0
        %1262 = vmatprep.subr.mxu0 0.0
        %1263 = vmatpush1.msra.mxu0 0.0
        %1264 = vmatprep.subr.mxu0 0.0
        %1265 = vmatpush1.msra.mxu0 0.0
        %1266 = vmatprep.subr.mxu0 0.0
        %1267 = vmatpush1.msra.mxu0 0.0
        %1268 = vmatprep.subr.mxu0 0.0
        %1269 = vmatpush1.msra.mxu0 0.0
        %1270 = vmatprep.subr.mxu0 0.0
        %1271 = vmatpush1.msra.mxu0 0.0
        %1272 = vmatprep.subr.mxu0 0.0
        %1273 = vmatpush1.msra.mxu0 0.0
        %1274 = vmatprep.subr.mxu0 0.0
        %1275 = vmatpush1.msra.mxu0 0.0
        %1276 = vmatprep.subr.mxu0 0.0
        %1277 = vmatpush1.msra.mxu0 0.0
        %1278 = vmatprep.subr.mxu0 0.0
        %1279 = vmatpush1.msra.mxu0 0.0
        %1280 = vmatprep.subr.mxu0 0.0
        %1281 = vmatpush1.msra.mxu0 0.0
        %1282 = vmatprep.subr.mxu0 0.0
        %1283 = vmatpush1.msra.mxu0 0.0
        %1284 = vmatprep.subr.mxu0 0.0
        %1285 = vmatpush1.msra.mxu0 0.0
        %1286 = vmatprep.subr.mxu0 0.0
        %1287 = vmatpush1.msra.mxu0 0.0
        %1288 = vmatprep.subr.mxu0 0.0
        %1289 = vmatpush1.msra.mxu0 0.0
        %1290 = vmatprep.subr.mxu0 0.0
        %1291 = vmatpush1.msra.mxu0 0.0
        %1292 = vmatprep.subr.mxu0 0.0
        %1293 = vmatpush1.msra.mxu0 0.0
        %1294 = vmatprep.mubr.f32.mxu0 0.0
        %1295 = vmatmul.mubr.f32.gmra.mrb[0].mxu0 %v1219
        %v1296 = vpop.f32.mrb[0].mxu0
        %v1297 = vadd.f32 0.0, %v1296
        %v1298 = vpop.f32.mrb[0].mxu0
        %v1299 = vadd.f32 0.0, %v1298
        %1300 = vmatprep.mubr.f32.mxu0 0.0
        %1301 = vmatmul.mubr.f32.gmra.mrb[0].mxu0 %v1222
        %v1302 = vpop.f32.mrb[0].mxu0
        %v1303 = vadd.f32 0.0, %v1302
        %v1304 = vpop.f32.mrb[0].mxu0
        %v1305 = vadd.f32 0.0, %v1304
        %1306 = vmatprep.mubr.f32.mxu0 0.0
        %1307 = vmatmul.mubr.f32.gmra.mrb[0].mxu0 %v1225
        %v1308 = vpop.f32.mrb[0].mxu0
        %v1309 = vadd.f32 0.0, %v1308
        %v1310 = vpop.f32.mrb[0].mxu0
        %v1311 = vadd.f32 0.0, %v1310
        %1312 = vmatprep.mubr.f32.mxu0 0.0
        %1313 = vmatmul.mubr.f32.gmra.mrb[0].mxu0 %v1228
        %v1314 = vpop.f32.mrb[0].mxu0
        %v1315 = vadd.f32 0.0, %v1314
        %v1316 = vpop.f32.mrb[0].mxu0
        %v1317 = vadd.f32 0.0, %v1316
        %1318 = vdwg.mxu0
        %v1319 = vadd.f32 %v971, %v1297
        %v1320 = vadd.f32 %v972, %v1299
        %v1321 = vadd.f32 %v973, %v1303
        %v1322 = vadd.f32 %v974, %v1305
        %v1323 = vadd.f32 %v975, %v1309
        %v1324 = vadd.f32 %v976, %v1311
        %v1325 = vadd.f32 %v977, %v1315
        %v1326 = vadd.f32 %v978, %v1317
        %1327 = vrot.lane.b32.xlu0 %v571, 64
        %v1328 = vpop.permute.xlu0 %1327
        %1329 = vrot.lane.b32.xlu0 %v576, 64
        %v1330 = vpop.permute.xlu0 %1329
        %1331 = vrot.lane.b32.xlu0 %v581, 64
        %v1332 = vpop.permute.xlu0 %1331
        %1333 = vrot.lane.b32.xlu0 %v586, 64
        %v1334 = vpop.permute.xlu0 %1333
        %v1340 = vsel %vm645, %v593, 0
        %1342 = vmatprep.subr.mxu0 0.0
        %1343 = vmatpush1.msra.mxu0 %v1328
        %1344 = vmatprep.subr.mxu0 0.0
        %1345 = vmatpush1.msra.mxu0 %v1330
        %1346 = vmatprep.subr.mxu0 0.0
        %1347 = vmatpush1.msra.mxu0 %v1332
        %1348 = vmatprep.subr.mxu0 0.0
        %1349 = vmatpush1.msra.mxu0 %v1334
        %1350 = vmatprep.subr.mxu0 0.0
        %1351 = vmatpush1.msra.mxu0 0.0
        %1352 = vmatprep.subr.mxu0 0.0
        %1353 = vmatpush1.msra.mxu0 0.0
        %1354 = vmatprep.subr.mxu0 0.0
        %1355 = vmatpush1.msra.mxu0 0.0
        %1356 = vmatprep.subr.mxu0 0.0
        %1357 = vmatpush1.msra.mxu0 0.0
        %1358 = vmatprep.subr.mxu0 0.0
        %1359 = vmatpush1.msra.mxu0 0.0
        %1360 = vmatprep.subr.mxu0 0.0
        %1361 = vmatpush1.msra.mxu0 0.0
        %1362 = vmatprep.subr.mxu0 0.0
        %1363 = vmatpush1.msra.mxu0 0.0
        %1364 = vmatprep.subr.mxu0 0.0
        %1365 = vmatpush1.msra.mxu0 0.0
        %1366 = vmatprep.subr.mxu0 0.0
        %1367 = vmatpush1.msra.mxu0 0.0
        %1368 = vmatprep.subr.mxu0 0.0
        %1369 = vmatpush1.msra.mxu0 0.0
        %1370 = vmatprep.subr.mxu0 0.0
        %1371 = vmatpush1.msra.mxu0 0.0
        %1372 = vmatprep.subr.mxu0 0.0
        %1373 = vmatpush1.msra.mxu0 0.0
        %1374 = vmatprep.subr.mxu0 0.0
        %1375 = vmatpush1.msra.mxu0 0.0
        %1376 = vmatprep.subr.mxu0 0.0
        %1377 = vmatpush1.msra.mxu0 0.0
        %1378 = vmatprep.subr.mxu0 0.0
        %1379 = vmatpush1.msra.mxu0 0.0
        %1380 = vmatprep.subr.mxu0 0.0
        %1381 = vmatpush1.msra.mxu0 0.0
        %1382 = vmatprep.subr.mxu0 0.0
        %1383 = vmatpush1.msra.mxu0 0.0
        %1384 = vmatprep.subr.mxu0 0.0
        %1385 = vmatpush1.msra.mxu0 0.0
        %1386 = vmatprep.subr.mxu0 0.0
        %1387 = vmatpush1.msra.mxu0 0.0
        %1388 = vmatprep.subr.mxu0 0.0
        %1389 = vmatpush1.msra.mxu0 0.0
        %1390 = vmatprep.subr.mxu0 0.0
        %1391 = vmatpush1.msra.mxu0 0.0
        %1392 = vmatprep.subr.mxu0 0.0
        %1393 = vmatpush1.msra.mxu0 0.0
        %1394 = vmatprep.subr.mxu0 0.0
        %1395 = vmatpush1.msra.mxu0 0.0
        %1396 = vmatprep.subr.mxu0 0.0
        %1397 = vmatpush1.msra.mxu0 0.0
        %1398 = vmatprep.subr.mxu0 0.0
        %1399 = vmatpush1.msra.mxu0 0.0
        %1400 = vmatprep.subr.mxu0 0.0
        %1401 = vmatpush1.msra.mxu0 0.0
        %1402 = vmatprep.subr.mxu0 0.0
        %1403 = vmatpush1.msra.mxu0 0.0
        %1404 = vmatprep.subr.mxu0 0.0
        %1405 = vmatpush1.msra.mxu0 0.0
        %1406 = vmatprep.mubr.f32.mxu0 0.0
        %1407 = vmatmul.mubr.f32.gmra.mrb[0].mxu0 %v1340
        %v1408 = vpop.f32.mrb[0].mxu0
        %v1409 = vadd.f32 0.0, %v1408
        %v1410 = vpop.f32.mrb[0].mxu0
        %1411 = vdwg.mxu0
        %v1413 = vsel %vm645, %v1409, 0
        %1415 = vmatprep.subr.mxu0 0.0
        %1416 = vmatpush1.msra.mxu0 %v606
        %1417 = vmatprep.subr.mxu0 0.0
        %1418 = vmatpush1.msra.mxu0 %v607
        %1419 = vmatprep.subr.mxu0 0.0
        %1420 = vmatpush1.msra.mxu0 %v608
        %1421 = vmatprep.subr.mxu0 0.0
        %1422 = vmatpush1.msra.mxu0 %v609
        %1423 = vmatprep.subr.mxu0 0.0
        %1424 = vmatpush1.msra.mxu0 0.0
        %1425 = vmatprep.subr.mxu0 0.0
        %1426 = vmatpush1.msra.mxu0 0.0
        %1427 = vmatprep.subr.mxu0 0.0
        %1428 = vmatpush1.msra.mxu0 0.0
        %1429 = vmatprep.subr.mxu0 0.0
        %1430 = vmatpush1.msra.mxu0 0.0
        %1431 = vmatprep.subr.mxu0 0.0
        %1432 = vmatpush1.msra.mxu0 0.0
        %1433 = vmatprep.subr.mxu0 0.0
        %1434 = vmatpush1.msra.mxu0 0.0
        %1435 = vmatprep.subr.mxu0 0.0
        %1436 = vmatpush1.msra.mxu0 0.0
        %1437 = vmatprep.subr.mxu0 0.0
        %1438 = vmatpush1.msra.mxu0 0.0
        %1439 = vmatprep.subr.mxu0 0.0
        %1440 = vmatpush1.msra.mxu0 0.0
        %1441 = vmatprep.subr.mxu0 0.0
        %1442 = vmatpush1.msra.mxu0 0.0
        %1443 = vmatprep.subr.mxu0 0.0
        %1444 = vmatpush1.msra.mxu0 0.0
        %1445 = vmatprep.subr.mxu0 0.0
        %1446 = vmatpush1.msra.mxu0 0.0
        %1447 = vmatprep.subr.mxu0 0.0
        %1448 = vmatpush1.msra.mxu0 0.0
        %1449 = vmatprep.subr.mxu0 0.0
        %1450 = vmatpush1.msra.mxu0 0.0
        %1451 = vmatprep.subr.mxu0 0.0
        %1452 = vmatpush1.msra.mxu0 0.0
        %1453 = vmatprep.subr.mxu0 0.0
        %1454 = vmatpush1.msra.mxu0 0.0
        %1455 = vmatprep.subr.mxu0 0.0
        %1456 = vmatpush1.msra.mxu0 0.0
        %1457 = vmatprep.subr.mxu0 0.0
        %1458 = vmatpush1.msra.mxu0 0.0
        %1459 = vmatprep.subr.mxu0 0.0
        %1460 = vmatpush1.msra.mxu0 0.0
        %1461 = vmatprep.subr.mxu0 0.0
        %1462 = vmatpush1.msra.mxu0 0.0
        %1463 = vmatprep.subr.mxu0 0.0
        %1464 = vmatpush1.msra.mxu0 0.0
        %1465 = vmatprep.subr.mxu0 0.0
        %1466 = vmatpush1.msra.mxu0 0.0
        %1467 = vmatprep.subr.mxu0 0.0
        %1468 = vmatpush1.msra.mxu0 0.0
        %1469 = vmatprep.subr.mxu0 0.0
        %1470 = vmatpush1.msra.mxu0 0.0
        %1471 = vmatprep.subr.mxu0 0.0
        %1472 = vmatpush1.msra.mxu0 0.0
        %1473 = vmatprep.subr.mxu0 0.0
        %1474 = vmatpush1.msra.mxu0 0.0
        %1475 = vmatprep.subr.mxu0 0.0
        %1476 = vmatpush1.msra.mxu0 0.0
        %1477 = vmatprep.subr.mxu0 0.0
        %1478 = vmatpush1.msra.mxu0 0.0
        %1479 = vmatprep.mubr.f32.mxu0 0.0
        %1480 = vmatmul.mubr.f32.gmra.mrb[0].mxu0 %v1413
        %v1481 = vpop.f32.mrb[0].mxu0
        %v1482 = vadd.f32 0.0, %v1481
        %v1483 = vpop.f32.mrb[0].mxu0
        %1484 = vdwg.mxu0
        %vm1485 = vcmp.ge.f32.partialorder %v1482, 0.0
        %v1486 = vmul.f32 %v1482, 0.2
        %v1487 = vsel %vm1485, %v1482, %v1486
        %v1489 = vsel %vm795, %v1487, 0
        %1491 = vmatprep.subr.mxu0 %v641
        %1492 = vmatpush1.msra.mxu0 %v640
        %1493 = vmatprep.subr.mxu0 0.0
        %1494 = vmatpush1.msra.mxu0 0.0
        %1495 = vmatprep.subr.mxu0 0.0
        %1496 = vmatpush1.msra.mxu0 0.0
        %1497 = vmatprep.subr.mxu0 0.0
        %1498 = vmatpush1.msra.mxu0 0.0
        %1499 = vmatprep.subr.mxu0 0.0
        %1500 = vmatpush1.msra.mxu0 0.0
        %1501 = vmatprep.subr.mxu0 0.0
        %1502 = vmatpush1.msra.mxu0 0.0
        %1503 = vmatprep.subr.mxu0 0.0
        %1504 = vmatpush1.msra.mxu0 0.0
        %1505 = vmatprep.subr.mxu0 0.0
        %1506 = vmatpush1.msra.mxu0 0.0
        %1507 = vmatprep.subr.mxu0 0.0
        %1508 = vmatpush1.msra.mxu0 0.0
        %1509 = vmatprep.subr.mxu0 0.0
        %1510 = vmatpush1.msra.mxu0 0.0
        %1511 = vmatprep.subr.mxu0 0.0
        %1512 = vmatpush1.msra.mxu0 0.0
        %1513 = vmatprep.subr.mxu0 0.0
        %1514 = vmatpush1.msra.mxu0 0.0
        %1515 = vmatprep.subr.mxu0 0.0
        %1516 = vmatpush1.msra.mxu0 0.0
        %1517 = vmatprep.subr.mxu0 0.0
        %1518 = vmatpush1.msra.mxu0 0.0
        %1519 = vmatprep.subr.mxu0 0.0
        %1520 = vmatpush1.msra.mxu0 0.0
        %1521 = vmatprep.subr.mxu0 0.0
        %1522 = vmatpush1.msra.mxu0 0.0
        %1523 = vmatprep.subr.mxu0 0.0
        %1524 = vmatpush1.msra.mxu0 0.0
        %1525 = vmatprep.subr.mxu0 0.0
        %1526 = vmatpush1.msra.mxu0 0.0
        %1527 = vmatprep.subr.mxu0 0.0
        %1528 = vmatpush1.msra.mxu0 0.0
        %1529 = vmatprep.subr.mxu0 0.0
        %1530 = vmatpush1.msra.mxu0 0.0
        %1531 = vmatprep.subr.mxu0 0.0
        %1532 = vmatpush1.msra.mxu0 0.0
        %1533 = vmatprep.subr.mxu0 0.0
        %1534 = vmatpush1.msra.mxu0 0.0
        %1535 = vmatprep.subr.mxu0 0.0
        %1536 = vmatpush1.msra.mxu0 0.0
        %1537 = vmatprep.subr.mxu0 0.0
        %1538 = vmatpush1.msra.mxu0 0.0
        %1539 = vmatprep.subr.mxu0 0.0
        %1540 = vmatpush1.msra.mxu0 0.0
        %1541 = vmatprep.subr.mxu0 0.0
        %1542 = vmatpush1.msra.mxu0 0.0
        %1543 = vmatprep.subr.mxu0 0.0
        %1544 = vmatpush1.msra.mxu0 0.0
        %1545 = vmatprep.subr.mxu0 0.0
        %1546 = vmatpush1.msra.mxu0 0.0
        %1547 = vmatprep.subr.mxu0 0.0
        %1548 = vmatpush1.msra.mxu0 0.0
        %1549 = vmatprep.subr.mxu0 0.0
        %1550 = vmatpush1.msra.mxu0 0.0
        %1551 = vmatprep.subr.mxu0 0.0
        %1552 = vmatpush1.msra.mxu0 0.0
        %1553 = vmatprep.subr.mxu0 0.0
        %1554 = vmatpush1.msra.mxu0 0.0
        %1555 = vmatprep.mubr.f32.mxu0 0.0
        %1556 = vmatmul.mubr.f32.gmra.mrb[0].mxu0 %v1489
        %v1557 = vpop.f32.mrb[0].mxu0
        %v1558 = vadd.f32 0.0, %v1557
        %v1559 = vpop.f32.mrb[0].mxu0
        %v1560 = vadd.f32 0.0, %v1559
        %1561 = vdwg.mxu0
        %v1563 = vsel %vm795, %v625, 0
        %v1566 = vsel %vm795, %v626, 0
        %v1569 = vsel %vm795, %v627, 0
        %v1572 = vsel %vm795, %v628, 0
        %1574 = vmatprep.subr.mxu0 %v1560
        %1575 = vmatpush1.msra.mxu0 %v1558
        %1576 = vmatprep.subr.mxu0 0.0
        %1577 = vmatpush1.msra.mxu0 0.0
        %1578 = vmatprep.subr.mxu0 0.0
        %1579 = vmatpush1.msra.mxu0 0.0
        %1580 = vmatprep.subr.mxu0 0.0
        %1581 = vmatpush1.msra.mxu0 0.0
        %1582 = vmatprep.subr.mxu0 0.0
        %1583 = vmatpush1.msra.mxu0 0.0
        %1584 = vmatprep.subr.mxu0 0.0
        %1585 = vmatpush1.msra.mxu0 0.0
        %1586 = vmatprep.subr.mxu0 0.0
        %1587 = vmatpush1.msra.mxu0 0.0
        %1588 = vmatprep.subr.mxu0 0.0
        %1589 = vmatpush1.msra.mxu0 0.0
        %1590 = vmatprep.subr.mxu0 0.0
        %1591 = vmatpush1.msra.mxu0 0.0
        %1592 = vmatprep.subr.mxu0 0.0
        %1593 = vmatpush1.msra.mxu0 0.0
        %1594 = vmatprep.subr.mxu0 0.0
        %1595 = vmatpush1.msra.mxu0 0.0
        %1596 = vmatprep.subr.mxu0 0.0
        %1597 = vmatpush1.msra.mxu0 0.0
        %1598 = vmatprep.subr.mxu0 0.0
        %1599 = vmatpush1.msra.mxu0 0.0
        %1600 = vmatprep.subr.mxu0 0.0
        %1601 = vmatpush1.msra.mxu0 0.0
        %1602 = vmatprep.subr.mxu0 0.0
        %1603 = vmatpush1.msra.mxu0 0.0
        %1604 = vmatprep.subr.mxu0 0.0
        %1605 = vmatpush1.msra.mxu0 0.0
        %1606 = vmatprep.subr.mxu0 0.0
        %1607 = vmatpush1.msra.mxu0 0.0
        %1608 = vmatprep.subr.mxu0 0.0
        %1609 = vmatpush1.msra.mxu0 0.0
        %1610 = vmatprep.subr.mxu0 0.0
        %1611 = vmatpush1.msra.mxu0 0.0
        %1612 = vmatprep.subr.mxu0 0.0
        %1613 = vmatpush1.msra.mxu0 0.0
        %1614 = vmatprep.subr.mxu0 0.0
        %1615 = vmatpush1.msra.mxu0 0.0
        %1616 = vmatprep.subr.mxu0 0.0
        %1617 = vmatpush1.msra.mxu0 0.0
        %1618 = vmatprep.subr.mxu0 0.0
        %1619 = vmatpush1.msra.mxu0 0.0
        %1620 = vmatprep.subr.mxu0 0.0
        %1621 = vmatpush1.msra.mxu0 0.0
        %1622 = vmatprep.subr.mxu0 0.0
        %1623 = vmatpush1.msra.mxu0 0.0
        %1624 = vmatprep.subr.mxu0 0.0
        %1625 = vmatpush1.msra.mxu0 0.0
        %1626 = vmatprep.subr.mxu0 0.0
        %1627 = vmatpush1.msra.mxu0 0.0
        %1628 = vmatprep.subr.mxu0 0.0
        %1629 = vmatpush1.msra.mxu0 0.0
        %1630 = vmatprep.subr.mxu0 0.0
        %1631 = vmatpush1.msra.mxu0 0.0
        %1632 = vmatprep.subr.mxu0 0.0
        %1633 = vmatpush1.msra.mxu0 0.0
        %1634 = vmatprep.subr.mxu0 0.0
        %1635 = vmatpush1.msra.mxu0 0.0
        %1636 = vmatprep.subr.mxu0 0.0
        %1637 = vmatpush1.msra.mxu0 0.0
        %1638 = vmatprep.mubr.f32.mxu0 0.0
        %1639 = vmatmul.mubr.f32.gmra.mrb[0].mxu0 %v1563
        %v1640 = vpop.f32.mrb[0].mxu0
        %v1641 = vadd.f32 0.0, %v1640
        %v1642 = vpop.f32.mrb[0].mxu0
        %v1643 = vadd.f32 0.0, %v1642
        %1644 = vmatprep.mubr.f32.mxu0 0.0
        %1645 = vmatmul.mubr.f32.gmra.mrb[0].mxu0 %v1566
        %v1646 = vpop.f32.mrb[0].mxu0
        %v1647 = vadd.f32 0.0, %v1646
        %v1648 = vpop.f32.mrb[0].mxu0
        %v1649 = vadd.f32 0.0, %v1648
        %1650 = vmatprep.mubr.f32.mxu0 0.0
        %1651 = vmatmul.mubr.f32.gmra.mrb[0].mxu0 %v1569
        %v1652 = vpop.f32.mrb[0].mxu0
        %v1653 = vadd.f32 0.0, %v1652
        %v1654 = vpop.f32.mrb[0].mxu0
        %v1655 = vadd.f32 0.0, %v1654
        %1656 = vmatprep.mubr.f32.mxu0 0.0
        %1657 = vmatmul.mubr.f32.gmra.mrb[0].mxu0 %v1572
        %v1658 = vpop.f32.mrb[0].mxu0
        %v1659 = vadd.f32 0.0, %v1658
        %v1660 = vpop.f32.mrb[0].mxu0
        %v1661 = vadd.f32 0.0, %v1660
        %1662 = vdwg.mxu0
        %v1663 = vadd.f32 %v1319, %v1641
        %v1664 = vadd.f32 %v1320, %v1643
        %v1665 = vadd.f32 %v1321, %v1647
        %v1666 = vadd.f32 %v1322, %v1649
        %v1667 = vadd.f32 %v1323, %v1653
        %v1668 = vadd.f32 %v1324, %v1655
        %v1669 = vadd.f32 %v1325, %v1659
        %v1670 = vadd.f32 %v1326, %v1661
        %1671 = vrot.lane.b32.xlu0 %v571, 32
        %v1672 = vpop.permute.xlu0 %1671
        %1673 = vrot.lane.b32.xlu0 %v576, 32
        %v1674 = vpop.permute.xlu0 %1673
        %1675 = vrot.lane.b32.xlu0 %v581, 32
        %v1676 = vpop.permute.xlu0 %1675
        %1677 = vrot.lane.b32.xlu0 %v586, 32
        %v1678 = vpop.permute.xlu0 %1677
        %v1684 = vsel %vm645, %v595, 0
        %1686 = vmatprep.subr.mxu0 0.0
        %1687 = vmatpush1.msra.mxu0 %v1672
        %1688 = vmatprep.subr.mxu0 0.0
        %1689 = vmatpush1.msra.mxu0 %v1674
        %1690 = vmatprep.subr.mxu0 0.0
        %1691 = vmatpush1.msra.mxu0 %v1676
        %1692 = vmatprep.subr.mxu0 0.0
        %1693 = vmatpush1.msra.mxu0 %v1678
        %1694 = vmatprep.subr.mxu0 0.0
        %1695 = vmatpush1.msra.mxu0 0.0
        %1696 = vmatprep.subr.mxu0 0.0
        %1697 = vmatpush1.msra.mxu0 0.0
        %1698 = vmatprep.subr.mxu0 0.0
        %1699 = vmatpush1.msra.mxu0 0.0
        %1700 = vmatprep.subr.mxu0 0.0
        %1701 = vmatpush1.msra.mxu0 0.0
        %1702 = vmatprep.subr.mxu0 0.0
        %1703 = vmatpush1.msra.mxu0 0.0
        %1704 = vmatprep.subr.mxu0 0.0
        %1705 = vmatpush1.msra.mxu0 0.0
        %1706 = vmatprep.subr.mxu0 0.0
        %1707 = vmatpush1.msra.mxu0 0.0
        %1708 = vmatprep.subr.mxu0 0.0
        %1709 = vmatpush1.msra.mxu0 0.0
        %1710 = vmatprep.subr.mxu0 0.0
        %1711 = vmatpush1.msra.mxu0 0.0
        %1712 = vmatprep.subr.mxu0 0.0
        %1713 = vmatpush1.msra.mxu0 0.0
        %1714 = vmatprep.subr.mxu0 0.0
        %1715 = vmatpush1.msra.mxu0 0.0
        %1716 = vmatprep.subr.mxu0 0.0
        %1717 = vmatpush1.msra.mxu0 0.0
        %1718 = vmatprep.subr.mxu0 0.0
        %1719 = vmatpush1.msra.mxu0 0.0
        %1720 = vmatprep.subr.mxu0 0.0
        %1721 = vmatpush1.msra.mxu0 0.0
        %1722 = vmatprep.subr.mxu0 0.0
        %1723 = vmatpush1.msra.mxu0 0.0
        %1724 = vmatprep.subr.mxu0 0.0
        %1725 = vmatpush1.msra.mxu0 0.0
        %1726 = vmatprep.subr.mxu0 0.0
        %1727 = vmatpush1.msra.mxu0 0.0
        %1728 = vmatprep.subr.mxu0 0.0
        %1729 = vmatpush1.msra.mxu0 0.0
        %1730 = vmatprep.subr.mxu0 0.0
        %1731 = vmatpush1.msra.mxu0 0.0
        %1732 = vmatprep.subr.mxu0 0.0
        %1733 = vmatpush1.msra.mxu0 0.0
        %1734 = vmatprep.subr.mxu0 0.0
        %1735 = vmatpush1.msra.mxu0 0.0
        %1736 = vmatprep.subr.mxu0 0.0
        %1737 = vmatpush1.msra.mxu0 0.0
        %1738 = vmatprep.subr.mxu0 0.0
        %1739 = vmatpush1.msra.mxu0 0.0
        %1740 = vmatprep.subr.mxu0 0.0
        %1741 = vmatpush1.msra.mxu0 0.0
        %1742 = vmatprep.subr.mxu0 0.0
        %1743 = vmatpush1.msra.mxu0 0.0
        %1744 = vmatprep.subr.mxu0 0.0
        %1745 = vmatpush1.msra.mxu0 0.0
        %1746 = vmatprep.subr.mxu0 0.0
        %1747 = vmatpush1.msra.mxu0 0.0
        %1748 = vmatprep.subr.mxu0 0.0
        %1749 = vmatpush1.msra.mxu0 0.0
        %1750 = vmatprep.mubr.f32.mxu0 0.0
        %1751 = vmatmul.mubr.f32.gmra.mrb[0].mxu0 %v1684
        %v1752 = vpop.f32.mrb[0].mxu0
        %v1753 = vadd.f32 0.0, %v1752
        %v1754 = vpop.f32.mrb[0].mxu0
        %1755 = vdwg.mxu0
        %v1757 = vsel %vm645, %v1753, 0
        %1759 = vmatprep.subr.mxu0 0.0
        %1760 = vmatpush1.msra.mxu0 %v611
        %1761 = vmatprep.subr.mxu0 0.0
        %1762 = vmatpush1.msra.mxu0 %v612
        %1763 = vmatprep.subr.mxu0 0.0
        %1764 = vmatpush1.msra.mxu0 %v613
        %1765 = vmatprep.subr.mxu0 0.0
        %1766 = vmatpush1.msra.mxu0 %v614
        %1767 = vmatprep.subr.mxu0 0.0
        %1768 = vmatpush1.msra.mxu0 0.0
        %1769 = vmatprep.subr.mxu0 0.0
        %1770 = vmatpush1.msra.mxu0 0.0
        %1771 = vmatprep.subr.mxu0 0.0
        %1772 = vmatpush1.msra.mxu0 0.0
        %1773 = vmatprep.subr.mxu0 0.0
        %1774 = vmatpush1.msra.mxu0 0.0
        %1775 = vmatprep.subr.mxu0 0.0
        %1776 = vmatpush1.msra.mxu0 0.0
        %1777 = vmatprep.subr.mxu0 0.0
        %1778 = vmatpush1.msra.mxu0 0.0
        %1779 = vmatprep.subr.mxu0 0.0
        %1780 = vmatpush1.msra.mxu0 0.0
        %1781 = vmatprep.subr.mxu0 0.0
        %1782 = vmatpush1.msra.mxu0 0.0
        %1783 = vmatprep.subr.mxu0 0.0
        %1784 = vmatpush1.msra.mxu0 0.0
        %1785 = vmatprep.subr.mxu0 0.0
        %1786 = vmatpush1.msra.mxu0 0.0
        %1787 = vmatprep.subr.mxu0 0.0
        %1788 = vmatpush1.msra.mxu0 0.0
        %1789 = vmatprep.subr.mxu0 0.0
        %1790 = vmatpush1.msra.mxu0 0.0
        %1791 = vmatprep.subr.mxu0 0.0
        %1792 = vmatpush1.msra.mxu0 0.0
        %1793 = vmatprep.subr.mxu0 0.0
        %1794 = vmatpush1.msra.mxu0 0.0
        %1795 = vmatprep.subr.mxu0 0.0
        %1796 = vmatpush1.msra.mxu0 0.0
        %1797 = vmatprep.subr.mxu0 0.0
        %1798 = vmatpush1.msra.mxu0 0.0
        %1799 = vmatprep.subr.mxu0 0.0
        %1800 = vmatpush1.msra.mxu0 0.0
        %1801 = vmatprep.subr.mxu0 0.0
        %1802 = vmatpush1.msra.mxu0 0.0
        %1803 = vmatprep.subr.mxu0 0.0
        %1804 = vmatpush1.msra.mxu0 0.0
        %1805 = vmatprep.subr.mxu0 0.0
        %1806 = vmatpush1.msra.mxu0 0.0
        %1807 = vmatprep.subr.mxu0 0.0
        %1808 = vmatpush1.msra.mxu0 0.0
        %1809 = vmatprep.subr.mxu0 0.0
        %1810 = vmatpush1.msra.mxu0 0.0
        %1811 = vmatprep.subr.mxu0 0.0
        %1812 = vmatpush1.msra.mxu0 0.0
        %1813 = vmatprep.subr.mxu0 0.0
        %1814 = vmatpush1.msra.mxu0 0.0
        %1815 = vmatprep.subr.mxu0 0.0
        %1816 = vmatpush1.msra.mxu0 0.0
        %1817 = vmatprep.subr.mxu0 0.0
        %1818 = vmatpush1.msra.mxu0 0.0
        %1819 = vmatprep.subr.mxu0 0.0
        %1820 = vmatpush1.msra.mxu0 0.0
        %1821 = vmatprep.subr.mxu0 0.0
        %1822 = vmatpush1.msra.mxu0 0.0
        %1823 = vmatprep.mubr.f32.mxu0 0.0
        %1824 = vmatmul.mubr.f32.gmra.mrb[0].mxu0 %v1757
        %v1825 = vpop.f32.mrb[0].mxu0
        %v1826 = vadd.f32 0.0, %v1825
        %v1827 = vpop.f32.mrb[0].mxu0
        %1828 = vdwg.mxu0
        %vm1829 = vcmp.ge.f32.partialorder %v1826, 0.0
        %v1830 = vmul.f32 %v1826, 0.2
        %v1831 = vsel %vm1829, %v1826, %v1830
        %v1833 = vsel %vm795, %v1831, 0
        %1835 = vmatprep.subr.mxu0 %v644
        %1836 = vmatpush1.msra.mxu0 %v643
        %1837 = vmatprep.subr.mxu0 0.0
        %1838 = vmatpush1.msra.mxu0 0.0
        %1839 = vmatprep.subr.mxu0 0.0
        %1840 = vmatpush1.msra.mxu0 0.0
        %1841 = vmatprep.subr.mxu0 0.0
        %1842 = vmatpush1.msra.mxu0 0.0
        %1843 = vmatprep.subr.mxu0 0.0
        %1844 = vmatpush1.msra.mxu0 0.0
        %1845 = vmatprep.subr.mxu0 0.0
        %1846 = vmatpush1.msra.mxu0 0.0
        %1847 = vmatprep.subr.mxu0 0.0
        %1848 = vmatpush1.msra.mxu0 0.0
        %1849 = vmatprep.subr.mxu0 0.0
        %1850 = vmatpush1.msra.mxu0 0.0
        %1851 = vmatprep.subr.mxu0 0.0
        %1852 = vmatpush1.msra.mxu0 0.0
        %1853 = vmatprep.subr.mxu0 0.0
        %1854 = vmatpush1.msra.mxu0 0.0
        %1855 = vmatprep.subr.mxu0 0.0
        %1856 = vmatpush1.msra.mxu0 0.0
        %1857 = vmatprep.subr.mxu0 0.0
        %1858 = vmatpush1.msra.mxu0 0.0
        %1859 = vmatprep.subr.mxu0 0.0
        %1860 = vmatpush1.msra.mxu0 0.0
        %1861 = vmatprep.subr.mxu0 0.0
        %1862 = vmatpush1.msra.mxu0 0.0
        %1863 = vmatprep.subr.mxu0 0.0
        %1864 = vmatpush1.msra.mxu0 0.0
        %1865 = vmatprep.subr.mxu0 0.0
        %1866 = vmatpush1.msra.mxu0 0.0
        %1867 = vmatprep.subr.mxu0 0.0
        %1868 = vmatpush1.msra.mxu0 0.0
        %1869 = vmatprep.subr.mxu0 0.0
        %1870 = vmatpush1.msra.mxu0 0.0
        %1871 = vmatprep.subr.mxu0 0.0
        %1872 = vmatpush1.msra.mxu0 0.0
        %1873 = vmatprep.subr.mxu0 0.0
        %1874 = vmatpush1.msra.mxu0 0.0
        %1875 = vmatprep.subr.mxu0 0.0
        %1876 = vmatpush1.msra.mxu0 0.0
        %1877 = vmatprep.subr.mxu0 0.0
        %1878 = vmatpush1.msra.mxu0 0.0
        %1879 = vmatprep.subr.mxu0 0.0
        %1880 = vmatpush1.msra.mxu0 0.0
        %1881 = vmatprep.subr.mxu0 0.0
        %1882 = vmatpush1.msra.mxu0 0.0
        %1883 = vmatprep.subr.mxu0 0.0
        %1884 = vmatpush1.msra.mxu0 0.0
        %1885 = vmatprep.subr.mxu0 0.0
        %1886 = vmatpush1.msra.mxu0 0.0
        %1887 = vmatprep.subr.mxu0 0.0
        %1888 = vmatpush1.msra.mxu0 0.0
        %1889 = vmatprep.subr.mxu0 0.0
        %1890 = vmatpush1.msra.mxu0 0.0
        %1891 = vmatprep.subr.mxu0 0.0
        %1892 = vmatpush1.msra.mxu0 0.0
        %1893 = vmatprep.subr.mxu0 0.0
        %1894 = vmatpush1.msra.mxu0 0.0
        %1895 = vmatprep.subr.mxu0 0.0
        %1896 = vmatpush1.msra.mxu0 0.0
        %1897 = vmatprep.subr.mxu0 0.0
        %1898 = vmatpush1.msra.mxu0 0.0
        %1899 = vmatprep.mubr.f32.mxu0 0.0
        %1900 = vmatmul.mubr.f32.gmra.mrb[0].mxu0 %v1833
        %v1901 = vpop.f32.mrb[0].mxu0
        %v1902 = vadd.f32 0.0, %v1901
        %v1903 = vpop.f32.mrb[0].mxu0
        %v1904 = vadd.f32 0.0, %v1903
        %1905 = vdwg.mxu0
        %v1907 = vsel %vm795, %v630, 0
        %v1910 = vsel %vm795, %v631, 0
        %v1913 = vsel %vm795, %v632, 0
        %v1916 = vsel %vm795, %v633, 0
        %1918 = vmatprep.subr.mxu0 %v1904
        %1919 = vmatpush1.msra.mxu0 %v1902
        %1920 = vmatprep.subr.mxu0 0.0
        %1921 = vmatpush1.msra.mxu0 0.0
        %1922 = vmatprep.subr.mxu0 0.0
        %1923 = vmatpush1.msra.mxu0 0.0
        %1924 = vmatprep.subr.mxu0 0.0
        %1925 = vmatpush1.msra.mxu0 0.0
        %1926 = vmatprep.subr.mxu0 0.0
        %1927 = vmatpush1.msra.mxu0 0.0
        %1928 = vmatprep.subr.mxu0 0.0
        %1929 = vmatpush1.msra.mxu0 0.0
        %1930 = vmatprep.subr.mxu0 0.0
        %1931 = vmatpush1.msra.mxu0 0.0
        %1932 = vmatprep.subr.mxu0 0.0
        %1933 = vmatpush1.msra.mxu0 0.0
        %1934 = vmatprep.subr.mxu0 0.0
        %1935 = vmatpush1.msra.mxu0 0.0
        %1936 = vmatprep.subr.mxu0 0.0
        %1937 = vmatpush1.msra.mxu0 0.0
        %1938 = vmatprep.subr.mxu0 0.0
        %1939 = vmatpush1.msra.mxu0 0.0
        %1940 = vmatprep.subr.mxu0 0.0
        %1941 = vmatpush1.msra.mxu0 0.0
        %1942 = vmatprep.subr.mxu0 0.0
        %1943 = vmatpush1.msra.mxu0 0.0
        %1944 = vmatprep.subr.mxu0 0.0
        %1945 = vmatpush1.msra.mxu0 0.0
        %1946 = vmatprep.subr.mxu0 0.0
        %1947 = vmatpush1.msra.mxu0 0.0
        %1948 = vmatprep.subr.mxu0 0.0
        %1949 = vmatpush1.msra.mxu0 0.0
        %1950 = vmatprep.subr.mxu0 0.0
        %1951 = vmatpush1.msra.mxu0 0.0
        %1952 = vmatprep.subr.mxu0 0.0
        %1953 = vmatpush1.msra.mxu0 0.0
        %1954 = vmatprep.subr.mxu0 0.0
        %1955 = vmatpush1.msra.mxu0 0.0
        %1956 = vmatprep.subr.mxu0 0.0
        %1957 = vmatpush1.msra.mxu0 0.0
        %1958 = vmatprep.subr.mxu0 0.0
        %1959 = vmatpush1.msra.mxu0 0.0
        %1960 = vmatprep.subr.mxu0 0.0
        %1961 = vmatpush1.msra.mxu0 0.0
        %1962 = vmatprep.subr.mxu0 0.0
        %1963 = vmatpush1.msra.mxu0 0.0
        %1964 = vmatprep.subr.mxu0 0.0
        %1965 = vmatpush1.msra.mxu0 0.0
        %1966 = vmatprep.subr.mxu0 0.0
        %1967 = vmatpush1.msra.mxu0 0.0
        %1968 = vmatprep.subr.mxu0 0.0
        %1969 = vmatpush1.msra.mxu0 0.0
        %1970 = vmatprep.subr.mxu0 0.0
        %1971 = vmatpush1.msra.mxu0 0.0
        %1972 = vmatprep.subr.mxu0 0.0
        %1973 = vmatpush1.msra.mxu0 0.0
        %1974 = vmatprep.subr.mxu0 0.0
        %1975 = vmatpush1.msra.mxu0 0.0
        %1976 = vmatprep.subr.mxu0 0.0
        %1977 = vmatpush1.msra.mxu0 0.0
        %1978 = vmatprep.subr.mxu0 0.0
        %1979 = vmatpush1.msra.mxu0 0.0
        %1980 = vmatprep.subr.mxu0 0.0
        %1981 = vmatpush1.msra.mxu0 0.0
        %1982 = vmatprep.mubr.f32.mxu0 0.0
        %1983 = vmatmul.mubr.f32.gmra.mrb[0].mxu0 %v1907
        %v1984 = vpop.f32.mrb[0].mxu0
        %v1985 = vadd.f32 0.0, %v1984
        %v1986 = vpop.f32.mrb[0].mxu0
        %v1987 = vadd.f32 0.0, %v1986
        %1988 = vmatprep.mubr.f32.mxu0 0.0
        %1989 = vmatmul.mubr.f32.gmra.mrb[0].mxu0 %v1910
        %v1990 = vpop.f32.mrb[0].mxu0
        %v1991 = vadd.f32 0.0, %v1990
        %v1992 = vpop.f32.mrb[0].mxu0
        %v1993 = vadd.f32 0.0, %v1992
        %1994 = vmatprep.mubr.f32.mxu0 0.0
        %1995 = vmatmul.mubr.f32.gmra.mrb[0].mxu0 %v1913
        %v1996 = vpop.f32.mrb[0].mxu0
        %v1997 = vadd.f32 0.0, %v1996
        %v1998 = vpop.f32.mrb[0].mxu0
        %v1999 = vadd.f32 0.0, %v1998
        %2000 = vmatprep.mubr.f32.mxu0 0.0
        %2001 = vmatmul.mubr.f32.gmra.mrb[0].mxu0 %v1916
        %v2002 = vpop.f32.mrb[0].mxu0
        %v2003 = vadd.f32 0.0, %v2002
        %v2004 = vpop.f32.mrb[0].mxu0
        %v2005 = vadd.f32 0.0, %v2004
        %2006 = vdwg.mxu0
        %v2007 = vadd.f32 %v1663, %v1985
        %v2008 = vadd.f32 %v1664, %v1987
        %v2009 = vadd.f32 %v1665, %v1991
        %v2010 = vadd.f32 %v1666, %v1993
        %v2011 = vadd.f32 %v1667, %v1997
        %v2012 = vadd.f32 %v1668, %v1999
        %v2013 = vadd.f32 %v1669, %v2003
        %v2014 = vadd.f32 %v1670, %v2005
        %vm2015 = vcmp.ge.f32.partialorder %v2007, 0.0
        %vm2016 = vcmp.ge.f32.partialorder %v2008, 0.0
        %vm2017 = vcmp.ge.f32.partialorder %v2009, 0.0
        %vm2018 = vcmp.ge.f32.partialorder %v2010, 0.0
        %vm2019 = vcmp.ge.f32.partialorder %v2011, 0.0
        %vm2020 = vcmp.ge.f32.partialorder %v2012, 0.0
        %vm2021 = vcmp.ge.f32.partialorder %v2013, 0.0
        %vm2022 = vcmp.ge.f32.partialorder %v2014, 0.0
        %v2023 = vmul.f32 %v2007, 0.2
        %v2024 = vmul.f32 %v2008, 0.2
        %v2025 = vmul.f32 %v2009, 0.2
        %v2026 = vmul.f32 %v2010, 0.2
        %v2027 = vmul.f32 %v2011, 0.2
        %v2028 = vmul.f32 %v2012, 0.2
        %v2029 = vmul.f32 %v2013, 0.2
        %v2030 = vmul.f32 %v2014, 0.2
        %v2031 = vsel %vm2015, %v2007, %v2023
        %v2032 = vsel %vm2016, %v2008, %v2024
        %v2033 = vsel %vm2017, %v2009, %v2025
        %v2034 = vsel %vm2018, %v2010, %v2026
        %v2035 = vsel %vm2019, %v2011, %v2027
        %v2036 = vsel %vm2020, %v2012, %v2028
        %v2037 = vsel %vm2021, %v2013, %v2029
        %v2038 = vsel %vm2022, %v2014, %v2030
        %2039 = vst [vmem:[%s343] sm:$0xff] %v2031
        %2040 = vst [vmem:[%s343 + $0x8] sm:$0xff] %v2032
        %2041 = vst [vmem:[%s343 + $0x10] sm:$0xff] %v2033
        %2042 = vst [vmem:[%s343 + $0x18] sm:$0xff] %v2034
        %2043 = vst [vmem:[%s343 + $0x20] sm:$0xff] %v2035
        %2044 = vst [vmem:[%s343 + $0x28] sm:$0xff] %v2036
        %2045 = vst [vmem:[%s343 + $0x30] sm:$0xff] %v2037
        %2046 = vst [vmem:[%s343 + $0x38] sm:$0xff] %v2038
        %s2047 = sand.u32 %s205, 1
        %s2048 = scalar_lea.sflag [#allocation4], %s2047
        %s2049 = sand.u32 %s205, 1
        %s2050 = smul.addr %s2049, 64
        %s2051 = scalar_lea.vmem [#allocation8], %s2050
        // Predicated region
        $region65: #{tpu_custom_call.1} parent=51 // pred_check
          %p2052 = pneg %p215
        $region66: #{tpu_custom_call.1} parent=51 // pred_check_branch
          %2054 = sbr.rel (%p2052) target = $region68
        $region67: #{tpu_custom_call.1} parent=51 // pred_region
          %s2055 = smul.u32 4, %s24
          %s2057 = ssub.s32 1024, 1024
          %2058 = vsyncadd %s2048, %s2057
          %s2059 = smul.addr %s2055, 2
          %s2060 = smul.addr %s2059, 128
          %s2061 = scalar_lea.hbm %s8, %s2060
          %s2062 = sshll.u32 %s2051, 4
          %s2063 = int_to_ptr.vmem [resolvable:$true] %s2062
          %2068 = dma.vmem_to_hbm [thread:$0]  %s2063, 1024, %s2061, %s2048, 256, 256, 16
        $region68: #{tpu_custom_call.1} parent=51 // pred_fallthru
          _
      $region52: #{tpu_custom_call.1} parent=5 // pred_fallthru
        _
      %p2069 = scmp.le.s32.totalorder 2, %s19
      // Predicated region
      $region69: #{tpu_custom_call.1} parent=5 // pred_check
        %p2070 = pneg %p2069
      $region70: #{tpu_custom_call.1} parent=5 // pred_check_branch
        %2072 = sbr.rel (%p2070) target = $region72
      $region71: #{tpu_custom_call.1} parent=5 // pred_region
        %s2073 = ssub.s32 %s19, 2
        // Predicated region
        $region73: #{tpu_custom_call.1} parent=71 // pred_check
          %p2074 = pneg %p221
        $region74: #{tpu_custom_call.1} parent=71 // pred_check_branch
          %2076 = sbr.rel (%p2074) target = $region76
        $region75: #{tpu_custom_call.1} parent=71 // pred_region
          %s2077 = sand.u32 %s206, 1
          %s2078 = scalar_lea.sflag [#allocation4], %s2077
          %s2079 = sand.u32 %s206, 1
          %s2080 = smul.addr %s2079, 64
          %s2081 = scalar_lea.vmem [#allocation8], %s2080
          %2082 = dma.done %s2078, 1024
        $region76: #{tpu_custom_call.1} parent=71 // pred_fallthru
          _
      $region72: #{tpu_custom_call.1} parent=5 // pred_fallthru
        _
    $region6: #{tpu_custom_call.1} parent=1 // loop_footer
      %s23 = sadd.s32 1, %s19
    $region7: #{tpu_custom_call.1} parent=1 // loop_footer_branch
      %18 = sbr.rel target = $region3
    $region8: #{tpu_custom_call.1} parent=1 // loop_exit
      _
    %2083 = vsyncpa [#allocation3], 1
    %s2084 = scalar_lea.sflag [#allocation3], 1
    %2085 = vsyncpa %s2084, 1
    %2086 = vsyncpa [#allocation6], 1
    %2087 = vsyncpa [#allocation4], 1
    %s2088 = scalar_lea.sflag [#allocation4], 1
    %2089 = vsyncpa %s2088, 1

// kernel: tpu_custom_call.1
$region0: #{tpu_custom_call.1}
  #allocation0 [shape = 'u32[]', space=smem, size = 0x4, offset = 0x4, fixed_abs, tag = 'smem constant byte address 0x4 - core index']
  #allocation1 [shape = 'u32[144,128]{1,0:T(1,128)}', space=vmem, size = 0x12000, scoped, tag = 'internal scratch']
  %s0 = inlined_call_operand.vmem [shape: f32[64,128], index: 0, kind: input, shape index: {}]
  %s1 = inlined_call_operand.hbm [shape: f32[128,128], index: 1, kind: input, shape index: {}]
  %s2 = inlined_call_operand.vmem [shape: f32[128,256], index: 2, kind: input, shape index: {}]
  %s3 = inlined_call_operand.vmem [shape: f32[1,256], index: 3, kind: input, shape index: {}]
  %s4 = inlined_call_operand.hbm [shape: f32[4,8,32], index: 4, kind: input, shape index: {}]
  %s5 = inlined_call_operand.vmem [shape: f32[4,32,8], index: 5, kind: input, shape index: {}]
  %s6 = inlined_call_operand.vmem [shape: f32[4,32,8], index: 6, kind: input, shape index: {}]
  %s7 = inlined_call_operand.hbm [shape: f32[4,8,256], index: 7, kind: input, shape index: {}]
  %s8 = inlined_call_operand.hbm [shape: f32[64,256], index: 8, kind: output, shape index: {}]
  %s9 = sld [smem:[#allocation0]]
  $region77: #{tpu_custom_call.1} parent=0
    _
  %s11 = ssub.s32 1, %s9
  %s12 = scalar_select 0, %s11, %s9
  $region1: #{tpu_custom_call.1} parent=0
    #allocation2 [shape = 'u8[65536]{0}', space=vmem, size = 0x10000, scoped, tag = 'input window, operand 1, single buffered']
    #allocation3 [shape = 's32[2]{0}', space=sflag, size = 0x8, scoped, tag = 'scoped memory for tpu_custom_call.1']
    #allocation4 [shape = 's32[2]{0}', space=sflag, size = 0x8, scoped, tag = 'scoped memory for tpu_custom_call.1']
    #allocation5 [shape = 'u8[16384]{0}', space=vmem, size = 0x4000, scoped, tag = 'input window, operand 4, single buffered']
    #allocation6 [shape = 's32[1]{0}', space=sflag, size = 0x4, scoped, tag = 'scoped memory for tpu_custom_call.1']
    #allocation7 [shape = 'u8[32768]{0}', space=vmem, size = 0x8000, scoped, tag = 'input window, operand 7, single buffered']
    #allocation8 [shape = 'u8[65536]{0}', space=vmem, size = 0x10000, scoped, tag = 'output window, operand 0']
    %13 = vsyncpa [#allocation3], 0
    %14 = vsyncpa [#allocation6], 0
    %15 = vsyncpa [#allocation4], 0
    %s16 = scalar_lea.sflag [#allocation4], 1
    %17 = vsyncpa %s16, 0
    loop: start=0, step=1, limit=4
    $region2: #{tpu_custom_call.1} parent=1 // loop_pre_header
      _
    $region3: #{tpu_custom_call.1} parent=1 // loop_header
      %s19 = sphi 0, %s23
      %p20 = scmp.ge.s32.totalorder %s19, 4
      %s29 = sphi 0, %s31
      %s32 = sphi 0, %s29
      %s33 = sphi 0, %s32
      %s49 = sphi 0, %s33
      %s53 = sphi 0, %s53
      %s55 = sphi 0, %s53
      %s56 = sphi 0, %s55
      %s70 = sphi 0, %s56
      %s74 = sphi 0, %s74
      %s76 = sphi 0, %s74
      %s77 = sphi 0, %s76
      %s91 = sphi 0, %s77
      %s95 = sphi 0, %s95
      %s97 = sphi 0, %s95
      %s98 = sphi 0, %s97
      %s112 = sphi 0, %s98
      %s116 = sphi 0, %s116
      %s118 = sphi 0, %s116
      %s119 = sphi 0, %s118
      %s133 = sphi 0, %s119
      %s137 = sphi 0, %s137
      %s139 = sphi 0, %s137
      %s140 = sphi 0, %s139
      %s154 = sphi 0, %s140
      %s158 = sphi 0, %s158
      %s160 = sphi 0, %s158
      %s161 = sphi 0, %s160
      %s175 = sphi 0, %s161
      %s179 = sphi 0, %s179
      %s181 = sphi 0, %s179
      %s182 = sphi 0, %s181
      %s196 = sphi 0, %s182
      %s202 = sphi 0, %s204
      %s205 = sphi 0, %s202
      %s206 = sphi 0, %s205
      %s222 = sphi 0, %s206
    $region4: #{tpu_custom_call.1} parent=1 // loop_header_branch
      %22 = sbr.rel (%p20) target = $region8
    $region5: #{tpu_custom_call.1} parent=1 // loop_body
      %s24 = ssub.s32 %s19, 1
      %s25 = ssub.s32 %s19, 2
      %s26 = sadd.s32 %s19, 1
      %s27 = ssub.s32 %s19, %s26
      %p28 = scmp.eq.s32.totalorder %s27, 0
      %s30 = sadd.s32 %s29, 1
      %s31 = scalar_select %p28, %s29, %s30
      %p34 = pneg %p28
      %p35 = scmp.eq.s32.totalorder %s19, 1
      %p36 = por %p34, %p35
      %p37 = scmp.ne.s32.totalorder %s29, %s32
      %p38 = scmp.eq.s32.totalorder %s19, 0
      %p39 = por %p37, %p38
      %p40 = scmp.ne.s32.totalorder %s29, %s32
      %p41 = scmp.eq.s32.totalorder %s24, 1
      %p42 = por %p40, %p41
      %p43 = scmp.ne.s32.totalorder %s32, %s33
      %p44 = scmp.eq.s32.totalorder %s24, 0
      %p45 = por %p43, %p44
      %p46 = scmp.ne.s32.totalorder %s32, %s33
      %p47 = scmp.eq.s32.totalorder %s25, 1
      %p48 = por %p46, %p47
      %p50 = scmp.ne.s32.totalorder %s33, %s49
      %p51 = scmp.eq.s32.totalorder %s25, 0
      %p52 = por %p50, %p51
      %s54 = sadd.s32 %s53, 1
      %p57 = scmp.eq.s32.totalorder %s19, 1
      %p58 = scmp.ne.s32.totalorder %s53, %s55
      %p59 = scmp.eq.s32.totalorder %s19, 0
      %p60 = por %p58, %p59
      %p61 = scmp.ne.s32.totalorder %s53, %s55
      %p62 = scmp.eq.s32.totalorder %s24, 1
      %p63 = por %p61, %p62
      %p64 = scmp.ne.s32.totalorder %s55, %s56
      %p65 = scmp.eq.s32.totalorder %s24, 0
      %p66 = por %p64, %p65
      %p67 = scmp.ne.s32.totalorder %s55, %s56
      %p68 = scmp.eq.s32.totalorder %s25, 1
      %p69 = por %p67, %p68
      %p71 = scmp.ne.s32.totalorder %s56, %s70
      %p72 = scmp.eq.s32.totalorder %s25, 0
      %p73 = por %p71, %p72
      %s75 = sadd.s32 %s74, 1
      %p78 = scmp.eq.s32.totalorder %s19, 1
      %p79 = scmp.ne.s32.totalorder %s74, %s76
      %p80 = scmp.eq.s32.totalorder %s19, 0
      %p81 = por %p79, %p80
      %p82 = scmp.ne.s32.totalorder %s74, %s76
      %p83 = scmp.eq.s32.totalorder %s24, 1
      %p84 = por %p82, %p83
      %p85 = scmp.ne.s32.totalorder %s76, %s77
      %p86 = scmp.eq.s32.totalorder %s24, 0
      %p87 = por %p85, %p86
      %p88 = scmp.ne.s32.totalorder %s76, %s77
      %p89 = scmp.eq.s32.totalorder %s25, 1
      %p90 = por %p88, %p89
      %p92 = scmp.ne.s32.totalorder %s77, %s91
      %p93 = scmp.eq.s32.totalorder %s25, 0
      %p94 = por %p92, %p93
      %s96 = sadd.s32 %s95, 1
      %p99 = scmp.eq.s32.totalorder %s19, 1
      %p100 = scmp.ne.s32.totalorder %s95, %s97
      %p101 = scmp.eq.s32.totalorder %s19, 0
      %p102 = por %p100, %p101
      %p103 = scmp.ne.s32.totalorder %s95, %s97
      %p104 = scmp.eq.s32.totalorder %s24, 1
      %p105 = por %p103, %p104
      %p106 = scmp.ne.s32.totalorder %s97, %s98
      %p107 = scmp.eq.s32.totalorder %s24, 0
      %p108 = por %p106, %p107
      %p109 = scmp.ne.s32.totalorder %s97, %s98
      %p110 = scmp.eq.s32.totalorder %s25, 1
      %p111 = por %p109, %p110
      %p113 = scmp.ne.s32.totalorder %s98, %s112
      %p114 = scmp.eq.s32.totalorder %s25, 0
      %p115 = por %p113, %p114
      %s117 = sadd.s32 %s116, 1
      %p120 = scmp.eq.s32.totalorder %s19, 1
      %p121 = scmp.ne.s32.totalorder %s116, %s118
      %p122 = scmp.eq.s32.totalorder %s19, 0
      %p123 = por %p121, %p122
      %p124 = scmp.ne.s32.totalorder %s116, %s118
      %p125 = scmp.eq.s32.totalorder %s24, 1
      %p126 = por %p124, %p125
      %p127 = scmp.ne.s32.totalorder %s118, %s119
      %p128 = scmp.eq.s32.totalorder %s24, 0
      %p129 = por %p127, %p128
      %p130 = scmp.ne.s32.totalorder %s118, %s119
      %p131 = scmp.eq.s32.totalorder %s25, 1
      %p132 = por %p130, %p131
      %p134 = scmp.ne.s32.totalorder %s119, %s133
      %p135 = scmp.eq.s32.totalorder %s25, 0
      %p136 = por %p134, %p135
      %s138 = sadd.s32 %s137, 1
      %p141 = scmp.eq.s32.totalorder %s19, 1
      %p142 = scmp.ne.s32.totalorder %s137, %s139
      %p143 = scmp.eq.s32.totalorder %s19, 0
      %p144 = por %p142, %p143
      %p145 = scmp.ne.s32.totalorder %s137, %s139
      %p146 = scmp.eq.s32.totalorder %s24, 1
      %p147 = por %p145, %p146
      %p148 = scmp.ne.s32.totalorder %s139, %s140
      %p149 = scmp.eq.s32.totalorder %s24, 0
      %p150 = por %p148, %p149
      %p151 = scmp.ne.s32.totalorder %s139, %s140
      %p152 = scmp.eq.s32.totalorder %s25, 1
      %p153 = por %p151, %p152
      %p155 = scmp.ne.s32.totalorder %s140, %s154
      %p156 = scmp.eq.s32.totalorder %s25, 0
      %p157 = por %p155, %p156
      %s159 = sadd.s32 %s158, 1
      %p162 = scmp.eq.s32.totalorder %s19, 1
      %p163 = scmp.ne.s32.totalorder %s158, %s160
      %p164 = scmp.eq.s32.totalorder %s19, 0
      %p165 = por %p163, %p164
      %p166 = scmp.ne.s32.totalorder %s158, %s160
      %p167 = scmp.eq.s32.totalorder %s24, 1
      %p168 = por %p166, %p167
      %p169 = scmp.ne.s32.totalorder %s160, %s161
      %p170 = scmp.eq.s32.totalorder %s24, 0
      %p171 = por %p169, %p170
      %p172 = scmp.ne.s32.totalorder %s160, %s161
      %p173 = scmp.eq.s32.totalorder %s25, 1
      %p174 = por %p172, %p173
      %p176 = scmp.ne.s32.totalorder %s161, %s175
      %p177 = scmp.eq.s32.totalorder %s25, 0
      %p178 = por %p176, %p177
      %s180 = sadd.s32 %s179, 1
      %p183 = scmp.eq.s32.totalorder %s19, 1
      %p184 = scmp.ne.s32.totalorder %s179, %s181
      %p185 = scmp.eq.s32.totalorder %s19, 0
      %p186 = por %p184, %p185
      %p187 = scmp.ne.s32.totalorder %s179, %s181
      %p188 = scmp.eq.s32.totalorder %s24, 1
      %p189 = por %p187, %p188
      %p190 = scmp.ne.s32.totalorder %s181, %s182
      %p191 = scmp.eq.s32.totalorder %s24, 0
      %p192 = por %p190, %p191
      %p193 = scmp.ne.s32.totalorder %s181, %s182
      %p194 = scmp.eq.s32.totalorder %s25, 1
      %p195 = por %p193, %p194
      %p197 = scmp.ne.s32.totalorder %s182, %s196
      %p198 = scmp.eq.s32.totalorder %s25, 0
      %p199 = por %p197, %p198
      %s200 = ssub.s32 %s19, %s26
      %p201 = scmp.eq.s32.totalorder %s200, 0
      %s203 = sadd.s32 %s202, 1
      %s204 = scalar_select %p201, %s202, %s203
      %p207 = pneg %p201
      %p208 = scmp.eq.s32.totalorder %s19, 1
      %p209 = por %p207, %p208
      %p210 = scmp.ne.s32.totalorder %s202, %s205
      %p211 = scmp.eq.s32.totalorder %s19, 0
      %p212 = por %p210, %p211
      %p213 = scmp.ne.s32.totalorder %s202, %s205
      %p214 = scmp.eq.s32.totalorder %s24, 1
      %p215 = por %p213, %p214
      %p216 = scmp.ne.s32.totalorder %s205, %s206
      %p217 = scmp.eq.s32.totalorder %s24, 0
      %p218 = por %p216, %p217
      %p219 = scmp.ne.s32.totalorder %s205, %s206
      %p220 = scmp.eq.s32.totalorder %s25, 1
      %p221 = por %p219, %p220
      %p223 = scmp.ne.s32.totalorder %s206, %s222
      %p224 = scmp.eq.s32.totalorder %s25, 0
      %p225 = por %p223, %p224
      %p226 = scmp.le.s32.totalorder 1, %s19
      %p227 = scmp.lt.s32.totalorder %s19, 3
      %p228 = pnand %p226, %p227
      %p229 = pneg %p228
      // Predicated region
      $region9: #{tpu_custom_call.1} parent=5 // pred_check
        _
      $region10: #{tpu_custom_call.1} parent=5 // pred_check_branch
        %231 = sbr.rel (%p228) target = $region12
      $region11: #{tpu_custom_call.1} parent=5 // pred_region
        %s232 = ssub.s32 %s19, 1
        // Predicated region
        $region13: #{tpu_custom_call.1} parent=11 // pred_check
          %p233 = pneg %p66
        $region14: #{tpu_custom_call.1} parent=11 // pred_check_branch
          %235 = sbr.rel (%p233) target = $region16
        $region15: #{tpu_custom_call.1} parent=11 // pred_region
          %s237 = ssub.s32 2048, 2048
          %238 = vsyncadd [#allocation3], %s237
          %s239 = sshll.u32 [#allocation2], 4
          %s240 = int_to_ptr.vmem [resolvable:$true] %s239
          %245 = dma.hbm_to_vmem [thread:$0]  %s1, 2048, %s240, [#allocation3], 128, 128, 8
        $region16: #{tpu_custom_call.1} parent=11 // pred_fallthru
          _
        // Predicated region
        $region17: #{tpu_custom_call.1} parent=11 // pred_check
          %p246 = pneg %p87
        $region18: #{tpu_custom_call.1} parent=11 // pred_check_branch
          %248 = sbr.rel (%p246) target = $region20
        $region19: #{tpu_custom_call.1} parent=11 // pred_region
          _
        $region20: #{tpu_custom_call.1} parent=11 // pred_fallthru
          _
        // Predicated region
        $region21: #{tpu_custom_call.1} parent=11 // pred_check
          %p249 = pneg %p108
        $region22: #{tpu_custom_call.1} parent=11 // pred_check_branch
          %251 = sbr.rel (%p249) target = $region24
        $region23: #{tpu_custom_call.1} parent=11 // pred_region
          _
        $region24: #{tpu_custom_call.1} parent=11 // pred_fallthru
          _
        // Predicated region
        $region25: #{tpu_custom_call.1} parent=11 // pred_check
          %p252 = pneg %p129
        $region26: #{tpu_custom_call.1} parent=11 // pred_check_branch
          %254 = sbr.rel (%p252) target = $region28
        $region27: #{tpu_custom_call.1} parent=11 // pred_region
          %s256 = ssub.s32 512, 512
          %257 = vsyncadd [#allocation6], %s256
          %s258 = sshll.u32 [#allocation5], 4
          %s259 = int_to_ptr.vmem [resolvable:$true] %s258
          %264 = dma.hbm_to_vmem [thread:$0]  %s4, 512, %s259, [#allocation6], 128, 128, 8
        $region28: #{tpu_custom_call.1} parent=11 // pred_fallthru
          _
        // Predicated region
        $region29: #{tpu_custom_call.1} parent=11 // pred_check
          %p265 = pneg %p150
        $region30: #{tpu_custom_call.1} parent=11 // pred_check_branch
          %267 = sbr.rel (%p265) target = $region32
        $region31: #{tpu_custom_call.1} parent=11 // pred_region
          _
        $region32: #{tpu_custom_call.1} parent=11 // pred_fallthru
          _
        // Predicated region
        $region33: #{tpu_custom_call.1} parent=11 // pred_check
          %p268 = pneg %p171
        $region34: #{tpu_custom_call.1} parent=11 // pred_check_branch
          %270 = sbr.rel (%p268) target = $region36
        $region35: #{tpu_custom_call.1} parent=11 // pred_region
          _
        $region36: #{tpu_custom_call.1} parent=11 // pred_fallthru
          _
        // Predicated region
        $region37: #{tpu_custom_call.1} parent=11 // pred_check
          %p271 = pneg %p192
        $region38: #{tpu_custom_call.1} parent=11 // pred_check_branch
          %273 = sbr.rel (%p271) target = $region40
        $region39: #{tpu_custom_call.1} parent=11 // pred_region
          %s275 = ssub.s32 1024, 1024
          %276 = vsyncadd [#allocation6], %s275
          %s277 = sshll.u32 [#allocation7], 4
          %s278 = int_to_ptr.vmem [resolvable:$true] %s277
          %283 = dma.hbm_to_vmem [thread:$0]  %s7, 1024, %s278, [#allocation6], 256, 256, 16
        $region40: #{tpu_custom_call.1} parent=11 // pred_fallthru
          _
      $region12: #{tpu_custom_call.1} parent=5 // pred_fallthru
        _
      %p284 = scmp.lt.s32.totalorder %s19, 2
      // Predicated region
      $region41: #{tpu_custom_call.1} parent=5 // pred_check
        %p285 = pneg %p284
      $region42: #{tpu_custom_call.1} parent=5 // pred_check_branch
        %287 = sbr.rel (%p285) target = $region44
      $region43: #{tpu_custom_call.1} parent=5 // pred_region
        // Predicated region
        $region45: #{tpu_custom_call.1} parent=43 // pred_check
          %p288 = pneg %p39
        $region46: #{tpu_custom_call.1} parent=43 // pred_check_branch
          %290 = sbr.rel (%p288) target = $region48
        $region47: #{tpu_custom_call.1} parent=43 // pred_region
          %s291 = smul.u32 4, %s19
          %p292 = scmp.lt.s32.totalorder %s291, 7
          %s293 = scalar_select %p292, %s291, 7
          %s294 = smul.addr %s293, 8
          %s295 = scalar_lea.vmem %s0, %s294
          %s296 = smul.u32 4, %s19
        $region48: #{tpu_custom_call.1} parent=43 // pred_fallthru
          _
      $region44: #{tpu_custom_call.1} parent=5 // pred_fallthru
        _
      %p297 = scmp.le.s32.totalorder 1, %s19
      %p298 = scmp.lt.s32.totalorder %s19, 3
      %p299 = pnand %p297, %p298
      %p300 = pneg %p299
      // Predicated region
      $region49: #{tpu_custom_call.1} parent=5 // pred_check
        _
      $region50: #{tpu_custom_call.1} parent=5 // pred_check_branch
        %302 = sbr.rel (%p299) target = $region52
      $region51: #{tpu_custom_call.1} parent=5 // pred_region
        %s303 = ssub.s32 %s19, 1
        // Predicated region
        $region53: #{tpu_custom_call.1} parent=51 // pred_check
          %p304 = pneg %p66
        $region54: #{tpu_custom_call.1} parent=51 // pred_check_branch
          %306 = sbr.rel (%p304) target = $region56
        $region55: #{tpu_custom_call.1} parent=51 // pred_region
          %307 = dma.done [#allocation3], 2048
        $region56: #{tpu_custom_call.1} parent=51 // pred_fallthru
          _
        // Predicated region
        $region57: #{tpu_custom_call.1} parent=51 // pred_check
          %p308 = pneg %p129
        $region58: #{tpu_custom_call.1} parent=51 // pred_check_branch
          %310 = sbr.rel (%p308) target = $region60
        $region59: #{tpu_custom_call.1} parent=51 // pred_region
          %311 = dma.done [#allocation6], 512
        $region60: #{tpu_custom_call.1} parent=51 // pred_fallthru
          _
        // Predicated region
        $region61: #{tpu_custom_call.1} parent=51 // pred_check
          %p312 = pneg %p192
        $region62: #{tpu_custom_call.1} parent=51 // pred_check_branch
          %314 = sbr.rel (%p312) target = $region64
        $region63: #{tpu_custom_call.1} parent=51 // pred_region
          %315 = dma.done [#allocation6], 1024
        $region64: #{tpu_custom_call.1} parent=51 // pred_fallthru
          _
        %s316 = smul.u32 4, %s24
        %p317 = scmp.lt.s32.totalorder %s316, 7
        %s318 = scalar_select %p317, %s316, 7
        %s319 = smul.addr %s318, 8
        %s320 = scalar_lea.vmem %s0, %s319
        %p321 = pneg %p45
        %p322 = pneg %p42
        %p323 = pneg %p66
        %p324 = pneg %p63
        %p325 = pneg %p87
        %p326 = pneg %p84
        %p327 = pneg %p108
        %p328 = pneg %p105
        %p329 = pneg %p129
        %p330 = pneg %p126
        %p331 = pneg %p150
        %p332 = pneg %p147
        %p333 = pneg %p171
        %p334 = pneg %p168
        %p335 = pneg %p192
        %p336 = pneg %p189
        %p337 = pneg %p218
        %p338 = pneg %p215
        %s339 = sand.u32 %s205, 1
        %s340 = scalar_lea.sflag [#allocation4], %s339
        %s341 = sand.u32 %s205, 1
        %s342 = smul.addr %s341, 64
        %s343 = scalar_lea.vmem [#allocation8], %s342
        %s344 = smul.u32 4, %s24
        %p345 = scmp.lt.s32.totalorder %s344, 7
        %s346 = scalar_select %p345, %s344, 7
        %s347 = smul.addr %s346, 8
        %s348 = scalar_lea.vmem %s0, %s347
        %s349 = smul.u32 4, %s24
        %s350 = smul.u32 4, %s24
        %v351 = vld [vmem:[%s348] sm:$0xff]
        %v352 = vld [vmem:[%s348 + $0x8] sm:$0xff]
        %v353 = vld [vmem:[%s348 + $0x10] sm:$0xff]
        %v354 = vld [vmem:[%s348 + $0x18] sm:$0xff]
        %v355 = vld [vmem:[%s2] sm:$0xff]
        %v356 = vld [vmem:[%s2 + $0x8] sm:$0xff]
        %v357 = vld [vmem:[%s2 + $0x10] sm:$0xff]
        %v358 = vld [vmem:[%s2 + $0x18] sm:$0xff]
        %v359 = vld [vmem:[%s2 + $0x20] sm:$0xff]
        %v360 = vld [vmem:[%s2 + $0x28] sm:$0xff]
        %v361 = vld [vmem:[%s2 + $0x30] sm:$0xff]
        %v362 = vld [vmem:[%s2 + $0x38] sm:$0xff]
        %v363 = vld [vmem:[%s2 + $0x40] sm:$0xff]
        %v364 = vld [vmem:[%s2 + $0x48] sm:$0xff]
        %v365 = vld [vmem:[%s2 + $0x50] sm:$0xff]
        %v366 = vld [vmem:[%s2 + $0x58] sm:$0xff]
        %v367 = vld [vmem:[%s2 + $0x60] sm:$0xff]
        %v368 = vld [vmem:[%s2 + $0x68] sm:$0xff]
        %v369 = vld [vmem:[%s2 + $0x70] sm:$0xff]
        %v370 = vld [vmem:[%s2 + $0x78] sm:$0xff]
        %v371 = vld [vmem:[%s2 + $0x80] sm:$0xff]
        %v372 = vld [vmem:[%s2 + $0x88] sm:$0xff]
        %v373 = vld [vmem:[%s2 + $0x90] sm:$0xff]
        %v374 = vld [vmem:[%s2 + $0x98] sm:$0xff]
        %v375 = vld [vmem:[%s2 + $0xa0] sm:$0xff]
        %v376 = vld [vmem:[%s2 + $0xa8] sm:$0xff]
        %v377 = vld [vmem:[%s2 + $0xb0] sm:$0xff]
        %v378 = vld [vmem:[%s2 + $0xb8] sm:$0xff]
        %v379 = vld [vmem:[%s2 + $0xc0] sm:$0xff]
        %v380 = vld [vmem:[%s2 + $0xc8] sm:$0xff]
        %v381 = vld [vmem:[%s2 + $0xd0] sm:$0xff]
        %v382 = vld [vmem:[%s2 + $0xd8] sm:$0xff]
        %v383 = vld [vmem:[%s2 + $0xe0] sm:$0xff]
        %v384 = vld [vmem:[%s2 + $0xe8] sm:$0xff]
        %v385 = vld [vmem:[%s2 + $0xf0] sm:$0xff]
        %v386 = vld [vmem:[%s2 + $0xf8] sm:$0xff]
        %v387 = vld [vmem:[%s3] sm:$0x3]
        %v389 = vlaneseq
        %v390 = vshrl.u32 %v389, 7
        %v391 = vsub.s32 0, %v390
        %v392 = vrot.slane %v387, %v391
        %v393 = vlaneseq
        %v394 = vshrl.u32 %v393, 7
        %v395 = vsub.s32 1, %v394
        %v396 = vrot.slane %v387, %v395
        %399 = vmatprep.subr.mxu0 %v356
        %400 = vmatpush1.msra.mxu0 %v355
        %401 = vmatprep.subr.mxu0 %v358
        %402 = vmatpush1.msra.mxu0 %v357
        %403 = vmatprep.subr.mxu0 %v360
        %404 = vmatpush1.msra.mxu0 %v359
        %405 = vmatprep.subr.mxu0 %v362
        %406 = vmatpush1.msra.mxu0 %v361
        %407 = vmatprep.subr.mxu0 %v364
        %408 = vmatpush1.msra.mxu0 %v363
        %409 = vmatprep.subr.mxu0 %v366
        %410 = vmatpush1.msra.mxu0 %v365
        %411 = vmatprep.subr.mxu0 %v368
        %412 = vmatpush1.msra.mxu0 %v367
        %413 = vmatprep.subr.mxu0 %v370
        %414 = vmatpush1.msra.mxu0 %v369
        %415 = vmatprep.subr.mxu0 %v372
        %416 = vmatpush1.msra.mxu0 %v371
        %417 = vmatprep.subr.mxu0 %v374
        %418 = vmatpush1.msra.mxu0 %v373
        %419 = vmatprep.subr.mxu0 %v376
        %420 = vmatpush1.msra.mxu0 %v375
        %421 = vmatprep.subr.mxu0 %v378
        %422 = vmatpush1.msra.mxu0 %v377
        %423 = vmatprep.subr.mxu0 %v380
        %424 = vmatpush1.msra.mxu0 %v379
        %425 = vmatprep.subr.mxu0 %v382
        %426 = vmatpush1.msra.mxu0 %v381
        %427 = vmatprep.subr.mxu0 %v384
        %428 = vmatpush1.msra.mxu0 %v383
        %429 = vmatprep.subr.mxu0 %v386
        %430 = vmatpush1.msra.mxu0 %v385
        %431 = vmatprep.subr.mxu0 0.0
        %432 = vmatpush1.msra.mxu0 0.0
        %433 = vmatprep.subr.mxu0 0.0
        %434 = vmatpush1.msra.mxu0 0.0
        %435 = vmatprep.subr.mxu0 0.0
        %436 = vmatpush1.msra.mxu0 0.0
        %437 = vmatprep.subr.mxu0 0.0
        %438 = vmatpush1.msra.mxu0 0.0
        %439 = vmatprep.subr.mxu0 0.0
        %440 = vmatpush1.msra.mxu0 0.0
        %441 = vmatprep.subr.mxu0 0.0
        %442 = vmatpush1.msra.mxu0 0.0
        %443 = vmatprep.subr.mxu0 0.0
        %444 = vmatpush1.msra.mxu0 0.0
        %445 = vmatprep.subr.mxu0 0.0
        %446 = vmatpush1.msra.mxu0 0.0
        %447 = vmatprep.subr.mxu0 0.0
        %448 = vmatpush1.msra.mxu0 0.0
        %449 = vmatprep.subr.mxu0 0.0
        %450 = vmatpush1.msra.mxu0 0.0
        %451 = vmatprep.subr.mxu0 0.0
        %452 = vmatpush1.msra.mxu0 0.0
        %453 = vmatprep.subr.mxu0 0.0
        %454 = vmatpush1.msra.mxu0 0.0
        %455 = vmatprep.subr.mxu0 0.0
        %456 = vmatpush1.msra.mxu0 0.0
        %457 = vmatprep.subr.mxu0 0.0
        %458 = vmatpush1.msra.mxu0 0.0
        %459 = vmatprep.subr.mxu0 0.0
        %460 = vmatpush1.msra.mxu0 0.0
        %461 = vmatprep.subr.mxu0 0.0
        %462 = vmatpush1.msra.mxu0 0.0
        %463 = vmatprep.mubr.f32.mxu0 0.0
        %464 = vmatmul.mubr.f32.gmra.mrb[0].mxu0 %v351
        %v465 = vpop.f32.mrb[0].mxu0
        %v466 = vadd.f32 %v392, %v465
        %v467 = vpop.f32.mrb[0].mxu0
        %v468 = vadd.f32 %v396, %v467
        %469 = vmatprep.mubr.f32.mxu0 0.0
        %470 = vmatmul.mubr.f32.gmra.mrb[0].mxu0 %v352
        %v471 = vpop.f32.mrb[0].mxu0
        %v472 = vadd.f32 %v392, %v471
        %v473 = vpop.f32.mrb[0].mxu0
        %v474 = vadd.f32 %v396, %v473
        %475 = vmatprep.mubr.f32.mxu0 0.0
        %476 = vmatmul.mubr.f32.gmra.mrb[0].mxu0 %v353
        %v477 = vpop.f32.mrb[0].mxu0
        %v478 = vadd.f32 %v392, %v477
        %v479 = vpop.f32.mrb[0].mxu0
        %v480 = vadd.f32 %v396, %v479
        %481 = vmatprep.mubr.f32.mxu0 0.0
        %482 = vmatmul.mubr.f32.gmra.mrb[0].mxu0 %v354
        %v483 = vpop.f32.mrb[0].mxu0
        %v484 = vadd.f32 %v392, %v483
        %v485 = vpop.f32.mrb[0].mxu0
        %v486 = vadd.f32 %v396, %v485
        %487 = vdwg.mxu0
        %v488 = vld [vmem:[#allocation2] sm:$0xff]
        %v489 = vld [vmem:[#allocation2 + $0x8] sm:$0xff]
        %v490 = vld [vmem:[#allocation2 + $0x10] sm:$0xff]
        %v491 = vld [vmem:[#allocation2 + $0x18] sm:$0xff]
        %v492 = vld [vmem:[#allocation2 + $0x20] sm:$0xff]
        %v493 = vld [vmem:[#allocation2 + $0x28] sm:$0xff]
        %v494 = vld [vmem:[#allocation2 + $0x30] sm:$0xff]
        %v495 = vld [vmem:[#allocation2 + $0x38] sm:$0xff]
        %v496 = vld [vmem:[#allocation2 + $0x40] sm:$0xff]
        %v497 = vld [vmem:[#allocation2 + $0x48] sm:$0xff]
        %v498 = vld [vmem:[#allocation2 + $0x50] sm:$0xff]
        %v499 = vld [vmem:[#allocation2 + $0x58] sm:$0xff]
        %v500 = vld [vmem:[#allocation2 + $0x60] sm:$0xff]
        %v501 = vld [vmem:[#allocation2 + $0x68] sm:$0xff]
        %v502 = vld [vmem:[#allocation2 + $0x70] sm:$0xff]
        %v503 = vld [vmem:[#allocation2 + $0x78] sm:$0xff]
        %504 = vmatprep.subr.mxu0 0.0
        %505 = vmatpush1.msra.mxu0 %v488
        %506 = vmatprep.subr.mxu0 0.0
        %507 = vmatpush1.msra.mxu0 %v489
        %508 = vmatprep.subr.mxu0 0.0
        %509 = vmatpush1.msra.mxu0 %v490
        %510 = vmatprep.subr.mxu0 0.0
        %511 = vmatpush1.msra.mxu0 %v491
        %512 = vmatprep.subr.mxu0 0.0
        %513 = vmatpush1.msra.mxu0 %v492
        %514 = vmatprep.subr.mxu0 0.0
        %515 = vmatpush1.msra.mxu0 %v493
        %516 = vmatprep.subr.mxu0 0.0
        %517 = vmatpush1.msra.mxu0 %v494
        %518 = vmatprep.subr.mxu0 0.0
        %519 = vmatpush1.msra.mxu0 %v495
        %520 = vmatprep.subr.mxu0 0.0
        %521 = vmatpush1.msra.mxu0 %v496
        %522 = vmatprep.subr.mxu0 0.0
        %523 = vmatpush1.msra.mxu0 %v497
        %524 = vmatprep.subr.mxu0 0.0
        %525 = vmatpush1.msra.mxu0 %v498
        %526 = vmatprep.subr.mxu0 0.0
        %527 = vmatpush1.msra.mxu0 %v499
        %528 = vmatprep.subr.mxu0 0.0
        %529 = vmatpush1.msra.mxu0 %v500
        %530 = vmatprep.subr.mxu0 0.0
        %531 = vmatpush1.msra.mxu0 %v501
        %532 = vmatprep.subr.mxu0 0.0
        %533 = vmatpush1.msra.mxu0 %v502
        %534 = vmatprep.subr.mxu0 0.0
        %535 = vmatpush1.msra.mxu0 %v503
        %536 = vmatprep.subr.mxu0 0.0
        %537 = vmatpush1.msra.mxu0 0.0
        %538 = vmatprep.subr.mxu0 0.0
        %539 = vmatpush1.msra.mxu0 0.0
        %540 = vmatprep.subr.mxu0 0.0
        %541 = vmatpush1.msra.mxu0 0.0
        %542 = vmatprep.subr.mxu0 0.0
        %543 = vmatpush1.msra.mxu0 0.0
        %544 = vmatprep.subr.mxu0 0.0
        %545 = vmatpush1.msra.mxu0 0.0
        %546 = vmatprep.subr.mxu0 0.0
        %547 = vmatpush1.msra.mxu0 0.0
        %548 = vmatprep.subr.mxu0 0.0
        %549 = vmatpush1.msra.mxu0 0.0
        %550 = vmatprep.subr.mxu0 0.0
        %551 = vmatpush1.msra.mxu0 0.0
        %552 = vmatprep.subr.mxu0 0.0
        %553 = vmatpush1.msra.mxu0 0.0
        %554 = vmatprep.subr.mxu0 0.0
        %555 = vmatpush1.msra.mxu0 0.0
        %556 = vmatprep.subr.mxu0 0.0
        %557 = vmatpush1.msra.mxu0 0.0
        %558 = vmatprep.subr.mxu0 0.0
        %559 = vmatpush1.msra.mxu0 0.0
        %560 = vmatprep.subr.mxu0 0.0
        %561 = vmatpush1.msra.mxu0 0.0
        %562 = vmatprep.subr.mxu0 0.0
        %563 = vmatpush1.msra.mxu0 0.0
        %564 = vmatprep.subr.mxu0 0.0
        %565 = vmatpush1.msra.mxu0 0.0
        %566 = vmatprep.subr.mxu0 0.0
        %567 = vmatpush1.msra.mxu0 0.0
        %568 = vmatprep.mubr.f32.mxu0 0.0
        %569 = vmatmul.mubr.f32.gmra.mrb[0].mxu0 %v351
        %v570 = vpop.f32.mrb[0].mxu0
        %v571 = vadd.f32 0.0, %v570
        %v572 = vpop.f32.mrb[0].mxu0
        %573 = vmatprep.mubr.f32.mxu0 0.0
        %574 = vmatmul.mubr.f32.gmra.mrb[0].mxu0 %v352
        %v575 = vpop.f32.mrb[0].mxu0
        %v576 = vadd.f32 0.0, %v575
        %v577 = vpop.f32.mrb[0].mxu0
        %578 = vmatprep.mubr.f32.mxu0 0.0
        %579 = vmatmul.mubr.f32.gmra.mrb[0].mxu0 %v353
        %v580 = vpop.f32.mrb[0].mxu0
        %v581 = vadd.f32 0.0, %v580
        %v582 = vpop.f32.mrb[0].mxu0
        %583 = vmatprep.mubr.f32.mxu0 0.0
        %584 = vmatmul.mubr.f32.gmra.mrb[0].mxu0 %v354
        %v585 = vpop.f32.mrb[0].mxu0
        %v586 = vadd.f32 0.0, %v585
        %v587 = vpop.f32.mrb[0].mxu0
        %588 = vdwg.mxu0
        %v589 = vld [vmem:[#allocation5] sm:$0xff]
        %s590 = scalar_lea.vmem [#allocation5], 8
        %v591 = vld [vmem:[%s590] sm:$0xff]
        %s592 = scalar_lea.vmem [#allocation5], 16
        %v593 = vld [vmem:[%s592] sm:$0xff]
        %s594 = scalar_lea.vmem [#allocation5], 24
        %v595 = vld [vmem:[%s594] sm:$0xff]
        %v596 = vld [vmem:[%s5] sm:$0xff]
        %v597 = vld [vmem:[%s5 + $0x8] sm:$0xff]
        %v598 = vld [vmem:[%s5 + $0x10] sm:$0xff]
        %v599 = vld [vmem:[%s5 + $0x18] sm:$0xff]
        %s600 = scalar_lea.vmem %s5, 32
        %v601 = vld [vmem:[%s600] sm:$0xff]
        %v602 = vld [vmem:[%s600 + $0x8] sm:$0xff]
        %v603 = vld [vmem:[%s600 + $0x10] sm:$0xff]
        %v604 = vld [vmem:[%s600 + $0x18] sm:$0xff]
        %s605 = scalar_lea.vmem %s5, 64
        %v606 = vld [vmem:[%s605] sm:$0xff]
        %v607 = vld [vmem:[%s605 + $0x8] sm:$0xff]
        %v608 = vld [vmem:[%s605 + $0x10] sm:$0xff]
        %v609 = vld [vmem:[%s605 + $0x18] sm:$0xff]
        %s610 = scalar_lea.vmem %s5, 96
        %v611 = vld [vmem:[%s610] sm:$0xff]
        %v612 = vld [vmem:[%s610 + $0x8] sm:$0xff]
        %v613 = vld [vmem:[%s610 + $0x10] sm:$0xff]
        %v614 = vld [vmem:[%s610 + $0x18] sm:$0xff]
        %v615 = vld [vmem:[%s6] sm:$0xff]
        %v616 = vld [vmem:[%s6 + $0x8] sm:$0xff]
        %v617 = vld [vmem:[%s6 + $0x10] sm:$0xff]
        %v618 = vld [vmem:[%s6 + $0x18] sm:$0xff]
        %s619 = scalar_lea.vmem %s6, 32
        %v620 = vld [vmem:[%s619] sm:$0xff]
        %v621 = vld [vmem:[%s619 + $0x8] sm:$0xff]
        %v622 = vld [vmem:[%s619 + $0x10] sm:$0xff]
        %v623 = vld [vmem:[%s619 + $0x18] sm:$0xff]
        %s624 = scalar_lea.vmem %s6, 64
        %v625 = vld [vmem:[%s624] sm:$0xff]
        %v626 = vld [vmem:[%s624 + $0x8] sm:$0xff]
        %v627 = vld [vmem:[%s624 + $0x10] sm:$0xff]
        %v628 = vld [vmem:[%s624 + $0x18] sm:$0xff]
        %s629 = scalar_lea.vmem %s6, 96
        %v630 = vld [vmem:[%s629] sm:$0xff]
        %v631 = vld [vmem:[%s629 + $0x8] sm:$0xff]
        %v632 = vld [vmem:[%s629 + $0x10] sm:$0xff]
        %v633 = vld [vmem:[%s629 + $0x18] sm:$0xff]
        %v634 = vld [vmem:[#allocation7] sm:$0xff]
        %v635 = vld [vmem:[#allocation7 + $0x8] sm:$0xff]
        %s636 = scalar_lea.vmem [#allocation7], 16
        %v637 = vld [vmem:[%s636] sm:$0xff]
        %v638 = vld [vmem:[%s636 + $0x8] sm:$0xff]
        %s639 = scalar_lea.vmem [#allocation7], 32
        %v640 = vld [vmem:[%s639] sm:$0xff]
        %v641 = vld [vmem:[%s639 + $0x8] sm:$0xff]
        %s642 = scalar_lea.vmem [#allocation7], 48
        %v643 = vld [vmem:[%s642] sm:$0xff]
        %v644 = vld [vmem:[%s642 + $0x8] sm:$0xff]
        %vm645 = vcmask 261120
        %v647 = vsel %vm645, %v589, 0
        %649 = vmatprep.subr.mxu0 0.0
        %650 = vmatpush1.msra.mxu0 %v571
        %651 = vmatprep.subr.mxu0 0.0
        %652 = vmatpush1.msra.mxu0 %v576
        %653 = vmatprep.subr.mxu0 0.0
        %654 = vmatpush1.msra.mxu0 %v581
        %655 = vmatprep.subr.mxu0 0.0
        %656 = vmatpush1.msra.mxu0 %v586
        %657 = vmatprep.subr.mxu0 0.0
        %658 = vmatpush1.msra.mxu0 0.0
        %659 = vmatprep.subr.mxu0 0.0
        %660 = vmatpush1.msra.mxu0 0.0
        %661 = vmatprep.subr.mxu0 0.0
        %662 = vmatpush1.msra.mxu0 0.0
        %663 = vmatprep.subr.mxu0 0.0
        %664 = vmatpush1.msra.mxu0 0.0
        %665 = vmatprep.subr.mxu0 0.0
        %666 = vmatpush1.msra.mxu0 0.0
        %667 = vmatprep.subr.mxu0 0.0
        %668 = vmatpush1.msra.mxu0 0.0
        %669 = vmatprep.subr.mxu0 0.0
        %670 = vmatpush1.msra.mxu0 0.0
        %671 = vmatprep.subr.mxu0 0.0
        %672 = vmatpush1.msra.mxu0 0.0
        %673 = vmatprep.subr.mxu0 0.0
        %674 = vmatpush1.msra.mxu0 0.0
        %675 = vmatprep.subr.mxu0 0.0
        %676 = vmatpush1.msra.mxu0 0.0
        %677 = vmatprep.subr.mxu0 0.0
        %678 = vmatpush1.msra.mxu0 0.0
        %679 = vmatprep.subr.mxu0 0.0
        %680 = vmatpush1.msra.mxu0 0.0
        %681 = vmatprep.subr.mxu0 0.0
        %682 = vmatpush1.msra.mxu0 0.0
        %683 = vmatprep.subr.mxu0 0.0
        %684 = vmatpush1.msra.mxu0 0.0
        %685 = vmatprep.subr.mxu0 0.0
        %686 = vmatpush1.msra.mxu0 0.0
        %687 = vmatprep.subr.mxu0 0.0
        %688 = vmatpush1.msra.mxu0 0.0
        %689 = vmatprep.subr.mxu0 0.0
        %690 = vmatpush1.msra.mxu0 0.0
        %691 = vmatprep.subr.mxu0 0.0
        %692 = vmatpush1.msra.mxu0 0.0
        %693 = vmatprep.subr.mxu0 0.0
        %694 = vmatpush1.msra.mxu0 0.0
        %695 = vmatprep.subr.mxu0 0.0
        %696 = vmatpush1.msra.mxu0 0.0
        %697 = vmatprep.subr.mxu0 0.0
        %698 = vmatpush1.msra.mxu0 0.0
        %699 = vmatprep.subr.mxu0 0.0
        %700 = vmatpush1.msra.mxu0 0.0
        %701 = vmatprep.subr.mxu0 0.0
        %702 = vmatpush1.msra.mxu0 0.0
        %703 = vmatprep.subr.mxu0 0.0
        %704 = vmatpush1.msra.mxu0 0.0
        %705 = vmatprep.subr.mxu0 0.0
        %706 = vmatpush1.msra.mxu0 0.0
        %707 = vmatprep.subr.mxu0 0.0
        %708 = vmatpush1.msra.mxu0 0.0
        %709 = vmatprep.subr.mxu0 0.0
        %710 = vmatpush1.msra.mxu0 0.0
        %711 = vmatprep.subr.mxu0 0.0
        %712 = vmatpush1.msra.mxu0 0.0
        %713 = vmatprep.mubr.f32.mxu0 0.0
        %714 = vmatmul.mubr.f32.gmra.mrb[0].mxu0 %v647
        %v715 = vpop.f32.mrb[0].mxu0
        %v716 = vadd.f32 0.0, %v715
        %v717 = vpop.f32.mrb[0].mxu0
        %718 = vdwg.mxu0
        %v720 = vsel %vm645, %v716, 0
        %722 = vmatprep.subr.mxu0 0.0
        %723 = vmatpush1.msra.mxu0 %v596
        %724 = vmatprep.subr.mxu0 0.0
        %725 = vmatpush1.msra.mxu0 %v597
        %726 = vmatprep.subr.mxu0 0.0
        %727 = vmatpush1.msra.mxu0 %v598
        %728 = vmatprep.subr.mxu0 0.0
        %729 = vmatpush1.msra.mxu0 %v599
        %730 = vmatprep.subr.mxu0 0.0
        %731 = vmatpush1.msra.mxu0 0.0
        %732 = vmatprep.subr.mxu0 0.0
        %733 = vmatpush1.msra.mxu0 0.0
        %734 = vmatprep.subr.mxu0 0.0
        %735 = vmatpush1.msra.mxu0 0.0
        %736 = vmatprep.subr.mxu0 0.0
        %737 = vmatpush1.msra.mxu0 0.0
        %738 = vmatprep.subr.mxu0 0.0
        %739 = vmatpush1.msra.mxu0 0.0
        %740 = vmatprep.subr.mxu0 0.0
        %741 = vmatpush1.msra.mxu0 0.0
        %742 = vmatprep.subr.mxu0 0.0
        %743 = vmatpush1.msra.mxu0 0.0
        %744 = vmatprep.subr.mxu0 0.0
        %745 = vmatpush1.msra.mxu0 0.0
        %746 = vmatprep.subr.mxu0 0.0
        %747 = vmatpush1.msra.mxu0 0.0
        %748 = vmatprep.subr.mxu0 0.0
        %749 = vmatpush1.msra.mxu0 0.0
        %750 = vmatprep.subr.mxu0 0.0
        %751 = vmatpush1.msra.mxu0 0.0
        %752 = vmatprep.subr.mxu0 0.0
        %753 = vmatpush1.msra.mxu0 0.0
        %754 = vmatprep.subr.mxu0 0.0
        %755 = vmatpush1.msra.mxu0 0.0
        %756 = vmatprep.subr.mxu0 0.0
        %757 = vmatpush1.msra.mxu0 0.0
        %758 = vmatprep.subr.mxu0 0.0
        %759 = vmatpush1.msra.mxu0 0.0
        %760 = vmatprep.subr.mxu0 0.0
        %761 = vmatpush1.msra.mxu0 0.0
        %762 = vmatprep.subr.mxu0 0.0
        %763 = vmatpush1.msra.mxu0 0.0
        %764 = vmatprep.subr.mxu0 0.0
        %765 = vmatpush1.msra.mxu0 0.0
        %766 = vmatprep.subr.mxu0 0.0
        %767 = vmatpush1.msra.mxu0 0.0
        %768 = vmatprep.subr.mxu0 0.0
        %769 = vmatpush1.msra.mxu0 0.0
        %770 = vmatprep.subr.mxu0 0.0
        %771 = vmatpush1.msra.mxu0 0.0
        %772 = vmatprep.subr.mxu0 0.0
        %773 = vmatpush1.msra.mxu0 0.0
        %774 = vmatprep.subr.mxu0 0.0
        %775 = vmatpush1.msra.mxu0 0.0
        %776 = vmatprep.subr.mxu0 0.0
        %777 = vmatpush1.msra.mxu0 0.0
        %778 = vmatprep.subr.mxu0 0.0
        %779 = vmatpush1.msra.mxu0 0.0
        %780 = vmatprep.subr.mxu0 0.0
        %781 = vmatpush1.msra.mxu0 0.0
        %782 = vmatprep.subr.mxu0 0.0
        %783 = vmatpush1.msra.mxu0 0.0
        %784 = vmatprep.subr.mxu0 0.0
        %785 = vmatpush1.msra.mxu0 0.0
        %786 = vmatprep.mubr.f32.mxu0 0.0
        %787 = vmatmul.mubr.f32.gmra.mrb[0].mxu0 %v720
        %v788 = vpop.f32.mrb[0].mxu0
        %v789 = vadd.f32 0.0, %v788
        %v790 = vpop.f32.mrb[0].mxu0
        %791 = vdwg.mxu0
        %vm792 = vcmp.ge.f32.partialorder %v789, 0.0
        %v793 = vmul.f32 %v789, 0.2
        %v794 = vsel %vm792, %v789, %v793
        %vm795 = vcmask 64512
        %v797 = vsel %vm795, %v794, 0
        %799 = vmatprep.subr.mxu0 %v635
        %800 = vmatpush1.msra.mxu0 %v634
        %801 = vmatprep.subr.mxu0 0.0
        %802 = vmatpush1.msra.mxu0 0.0
        %803 = vmatprep.subr.mxu0 0.0
        %804 = vmatpush1.msra.mxu0 0.0
        %805 = vmatprep.subr.mxu0 0.0
        %806 = vmatpush1.msra.mxu0 0.0
        %807 = vmatprep.subr.mxu0 0.0
        %808 = vmatpush1.msra.mxu0 0.0
        %809 = vmatprep.subr.mxu0 0.0
        %810 = vmatpush1.msra.mxu0 0.0
        %811 = vmatprep.subr.mxu0 0.0
        %812 = vmatpush1.msra.mxu0 0.0
        %813 = vmatprep.subr.mxu0 0.0
        %814 = vmatpush1.msra.mxu0 0.0
        %815 = vmatprep.subr.mxu0 0.0
        %816 = vmatpush1.msra.mxu0 0.0
        %817 = vmatprep.subr.mxu0 0.0
        %818 = vmatpush1.msra.mxu0 0.0
        %819 = vmatprep.subr.mxu0 0.0
        %820 = vmatpush1.msra.mxu0 0.0
        %821 = vmatprep.subr.mxu0 0.0
        %822 = vmatpush1.msra.mxu0 0.0
        %823 = vmatprep.subr.mxu0 0.0
        %824 = vmatpush1.msra.mxu0 0.0
        %825 = vmatprep.subr.mxu0 0.0
        %826 = vmatpush1.msra.mxu0 0.0
        %827 = vmatprep.subr.mxu0 0.0
        %828 = vmatpush1.msra.mxu0 0.0
        %829 = vmatprep.subr.mxu0 0.0
        %830 = vmatpush1.msra.mxu0 0.0
        %831 = vmatprep.subr.mxu0 0.0
        %832 = vmatpush1.msra.mxu0 0.0
        %833 = vmatprep.subr.mxu0 0.0
        %834 = vmatpush1.msra.mxu0 0.0
        %835 = vmatprep.subr.mxu0 0.0
        %836 = vmatpush1.msra.mxu0 0.0
        %837 = vmatprep.subr.mxu0 0.0
        %838 = vmatpush1.msra.mxu0 0.0
        %839 = vmatprep.subr.mxu0 0.0
        %840 = vmatpush1.msra.mxu0 0.0
        %841 = vmatprep.subr.mxu0 0.0
        %842 = vmatpush1.msra.mxu0 0.0
        %843 = vmatprep.subr.mxu0 0.0
        %844 = vmatpush1.msra.mxu0 0.0
        %845 = vmatprep.subr.mxu0 0.0
        %846 = vmatpush1.msra.mxu0 0.0
        %847 = vmatprep.subr.mxu0 0.0
        %848 = vmatpush1.msra.mxu0 0.0
        %849 = vmatprep.subr.mxu0 0.0
        %850 = vmatpush1.msra.mxu0 0.0
        %851 = vmatprep.subr.mxu0 0.0
        %852 = vmatpush1.msra.mxu0 0.0
        %853 = vmatprep.subr.mxu0 0.0
        %854 = vmatpush1.msra.mxu0 0.0
        %855 = vmatprep.subr.mxu0 0.0
        %856 = vmatpush1.msra.mxu0 0.0
        %857 = vmatprep.subr.mxu0 0.0
        %858 = vmatpush1.msra.mxu0 0.0
        %859 = vmatprep.subr.mxu0 0.0
        %860 = vmatpush1.msra.mxu0 0.0
        %861 = vmatprep.subr.mxu0 0.0
        %862 = vmatpush1.msra.mxu0 0.0
        %863 = vmatprep.mubr.f32.mxu0 0.0
        %864 = vmatmul.mubr.f32.gmra.mrb[0].mxu0 %v797
        %v865 = vpop.f32.mrb[0].mxu0
        %v866 = vadd.f32 0.0, %v865
        %v867 = vpop.f32.mrb[0].mxu0
        %v868 = vadd.f32 0.0, %v867
        %869 = vdwg.mxu0
        %v871 = vsel %vm795, %v615, 0
        %v874 = vsel %vm795, %v616, 0
        %v877 = vsel %vm795, %v617, 0
        %v880 = vsel %vm795, %v618, 0
        %882 = vmatprep.subr.mxu0 %v868
        %883 = vmatpush1.msra.mxu0 %v866
        %884 = vmatprep.subr.mxu0 0.0
        %885 = vmatpush1.msra.mxu0 0.0
        %886 = vmatprep.subr.mxu0 0.0
        %887 = vmatpush1.msra.mxu0 0.0
        %888 = vmatprep.subr.mxu0 0.0
        %889 = vmatpush1.msra.mxu0 0.0
        %890 = vmatprep.subr.mxu0 0.0
        %891 = vmatpush1.msra.mxu0 0.0
        %892 = vmatprep.subr.mxu0 0.0
        %893 = vmatpush1.msra.mxu0 0.0
        %894 = vmatprep.subr.mxu0 0.0
        %895 = vmatpush1.msra.mxu0 0.0
        %896 = vmatprep.subr.mxu0 0.0
        %897 = vmatpush1.msra.mxu0 0.0
        %898 = vmatprep.subr.mxu0 0.0
        %899 = vmatpush1.msra.mxu0 0.0
        %900 = vmatprep.subr.mxu0 0.0
        %901 = vmatpush1.msra.mxu0 0.0
        %902 = vmatprep.subr.mxu0 0.0
        %903 = vmatpush1.msra.mxu0 0.0
        %904 = vmatprep.subr.mxu0 0.0
        %905 = vmatpush1.msra.mxu0 0.0
        %906 = vmatprep.subr.mxu0 0.0
        %907 = vmatpush1.msra.mxu0 0.0
        %908 = vmatprep.subr.mxu0 0.0
        %909 = vmatpush1.msra.mxu0 0.0
        %910 = vmatprep.subr.mxu0 0.0
        %911 = vmatpush1.msra.mxu0 0.0
        %912 = vmatprep.subr.mxu0 0.0
        %913 = vmatpush1.msra.mxu0 0.0
        %914 = vmatprep.subr.mxu0 0.0
        %915 = vmatpush1.msra.mxu0 0.0
        %916 = vmatprep.subr.mxu0 0.0
        %917 = vmatpush1.msra.mxu0 0.0
        %918 = vmatprep.subr.mxu0 0.0
        %919 = vmatpush1.msra.mxu0 0.0
        %920 = vmatprep.subr.mxu0 0.0
        %921 = vmatpush1.msra.mxu0 0.0
        %922 = vmatprep.subr.mxu0 0.0
        %923 = vmatpush1.msra.mxu0 0.0
        %924 = vmatprep.subr.mxu0 0.0
        %925 = vmatpush1.msra.mxu0 0.0
        %926 = vmatprep.subr.mxu0 0.0
        %927 = vmatpush1.msra.mxu0 0.0
        %928 = vmatprep.subr.mxu0 0.0
        %929 = vmatpush1.msra.mxu0 0.0
        %930 = vmatprep.subr.mxu0 0.0
        %931 = vmatpush1.msra.mxu0 0.0
        %932 = vmatprep.subr.mxu0 0.0
        %933 = vmatpush1.msra.mxu0 0.0
        %934 = vmatprep.subr.mxu0 0.0
        %935 = vmatpush1.msra.mxu0 0.0
        %936 = vmatprep.subr.mxu0 0.0
        %937 = vmatpush1.msra.mxu0 0.0
        %938 = vmatprep.subr.mxu0 0.0
        %939 = vmatpush1.msra.mxu0 0.0
        %940 = vmatprep.subr.mxu0 0.0
        %941 = vmatpush1.msra.mxu0 0.0
        %942 = vmatprep.subr.mxu0 0.0
        %943 = vmatpush1.msra.mxu0 0.0
        %944 = vmatprep.subr.mxu0 0.0
        %945 = vmatpush1.msra.mxu0 0.0
        %946 = vmatprep.mubr.f32.mxu0 0.0
        %947 = vmatmul.mubr.f32.gmra.mrb[0].mxu0 %v871
        %v948 = vpop.f32.mrb[0].mxu0
        %v949 = vadd.f32 0.0, %v948
        %v950 = vpop.f32.mrb[0].mxu0
        %v951 = vadd.f32 0.0, %v950
        %952 = vmatprep.mubr.f32.mxu0 0.0
        %953 = vmatmul.mubr.f32.gmra.mrb[0].mxu0 %v874
        %v954 = vpop.f32.mrb[0].mxu0
        %v955 = vadd.f32 0.0, %v954
        %v956 = vpop.f32.mrb[0].mxu0
        %v957 = vadd.f32 0.0, %v956
        %958 = vmatprep.mubr.f32.mxu0 0.0
        %959 = vmatmul.mubr.f32.gmra.mrb[0].mxu0 %v877
        %v960 = vpop.f32.mrb[0].mxu0
        %v961 = vadd.f32 0.0, %v960
        %v962 = vpop.f32.mrb[0].mxu0
        %v963 = vadd.f32 0.0, %v962
        %964 = vmatprep.mubr.f32.mxu0 0.0
        %965 = vmatmul.mubr.f32.gmra.mrb[0].mxu0 %v880
        %v966 = vpop.f32.mrb[0].mxu0
        %v967 = vadd.f32 0.0, %v966
        %v968 = vpop.f32.mrb[0].mxu0
        %v969 = vadd.f32 0.0, %v968
        %970 = vdwg.mxu0
        %v971 = vadd.f32 %v466, %v949
        %v972 = vadd.f32 %v468, %v951
        %v973 = vadd.f32 %v472, %v955
        %v974 = vadd.f32 %v474, %v957
        %v975 = vadd.f32 %v478, %v961
        %v976 = vadd.f32 %v480, %v963
        %v977 = vadd.f32 %v484, %v967
        %v978 = vadd.f32 %v486, %v969
        %983 = vrot.lane.b32.xlu0 %v571, 96
        %v984 = vpop.permute.xlu0 %983
        %985 = vrot.lane.b32.xlu0 %v576, 96
        %v986 = vpop.permute.xlu0 %985
        %987 = vrot.lane.b32.xlu0 %v581, 96
        %v988 = vpop.permute.xlu0 %987
        %989 = vrot.lane.b32.xlu0 %v586, 96
        %v990 = vpop.permute.xlu0 %989
        %v996 = vsel %vm645, %v591, 0
        %998 = vmatprep.subr.mxu0 0.0
        %999 = vmatpush1.msra.mxu0 %v984
        %1000 = vmatprep.subr.mxu0 0.0
        %1001 = vmatpush1.msra.mxu0 %v986
        %1002 = vmatprep.subr.mxu0 0.0
        %1003 = vmatpush1.msra.mxu0 %v988
        %1004 = vmatprep.subr.mxu0 0.0
        %1005 = vmatpush1.msra.mxu0 %v990
        %1006 = vmatprep.subr.mxu0 0.0
        %1007 = vmatpush1.msra.mxu0 0.0
        %1008 = vmatprep.subr.mxu0 0.0
        %1009 = vmatpush1.msra.mxu0 0.0
        %1010 = vmatprep.subr.mxu0 0.0
        %1011 = vmatpush1.msra.mxu0 0.0
        %1012 = vmatprep.subr.mxu0 0.0
        %1013 = vmatpush1.msra.mxu0 0.0
        %1014 = vmatprep.subr.mxu0 0.0
        %1015 = vmatpush1.msra.mxu0 0.0
        %1016 = vmatprep.subr.mxu0 0.0
        %1017 = vmatpush1.msra.mxu0 0.0
        %1018 = vmatprep.subr.mxu0 0.0
        %1019 = vmatpush1.msra.mxu0 0.0
        %1020 = vmatprep.subr.mxu0 0.0
        %1021 = vmatpush1.msra.mxu0 0.0
        %1022 = vmatprep.subr.mxu0 0.0
        %1023 = vmatpush1.msra.mxu0 0.0
        %1024 = vmatprep.subr.mxu0 0.0
        %1025 = vmatpush1.msra.mxu0 0.0
        %1026 = vmatprep.subr.mxu0 0.0
        %1027 = vmatpush1.msra.mxu0 0.0
        %1028 = vmatprep.subr.mxu0 0.0
        %1029 = vmatpush1.msra.mxu0 0.0
        %1030 = vmatprep.subr.mxu0 0.0
        %1031 = vmatpush1.msra.mxu0 0.0
        %1032 = vmatprep.subr.mxu0 0.0
        %1033 = vmatpush1.msra.mxu0 0.0
        %1034 = vmatprep.subr.mxu0 0.0
        %1035 = vmatpush1.msra.mxu0 0.0
        %1036 = vmatprep.subr.mxu0 0.0
        %1037 = vmatpush1.msra.mxu0 0.0
        %1038 = vmatprep.subr.mxu0 0.0
        %1039 = vmatpush1.msra.mxu0 0.0
        %1040 = vmatprep.subr.mxu0 0.0
        %1041 = vmatpush1.msra.mxu0 0.0
        %1042 = vmatprep.subr.mxu0 0.0
        %1043 = vmatpush1.msra.mxu0 0.0
        %1044 = vmatprep.subr.mxu0 0.0
        %1045 = vmatpush1.msra.mxu0 0.0
        %1046 = vmatprep.subr.mxu0 0.0
        %1047 = vmatpush1.msra.mxu0 0.0
        %1048 = vmatprep.subr.mxu0 0.0
        %1049 = vmatpush1.msra.mxu0 0.0
        %1050 = vmatprep.subr.mxu0 0.0
        %1051 = vmatpush1.msra.mxu0 0.0
        %1052 = vmatprep.subr.mxu0 0.0
        %1053 = vmatpush1.msra.mxu0 0.0
        %1054 = vmatprep.subr.mxu0 0.0
        %1055 = vmatpush1.msra.mxu0 0.0
        %1056 = vmatprep.subr.mxu0 0.0
        %1057 = vmatpush1.msra.mxu0 0.0
        %1058 = vmatprep.subr.mxu0 0.0
        %1059 = vmatpush1.msra.mxu0 0.0
        %1060 = vmatprep.subr.mxu0 0.0
        %1061 = vmatpush1.msra.mxu0 0.0
        %1062 = vmatprep.mubr.f32.mxu0 0.0
        %1063 = vmatmul.mubr.f32.gmra.mrb[0].mxu0 %v996
        %v1064 = vpop.f32.mrb[0].mxu0
        %v1065 = vadd.f32 0.0, %v1064
        %v1066 = vpop.f32.mrb[0].mxu0
        %1067 = vdwg.mxu0
        %v1069 = vsel %vm645, %v1065, 0
        %1071 = vmatprep.subr.mxu0 0.0
        %1072 = vmatpush1.msra.mxu0 %v601
        %1073 = vmatprep.subr.mxu0 0.0
        %1074 = vmatpush1.msra.mxu0 %v602
        %1075 = vmatprep.subr.mxu0 0.0
        %1076 = vmatpush1.msra.mxu0 %v603
        %1077 = vmatprep.subr.mxu0 0.0
        %1078 = vmatpush1.msra.mxu0 %v604
        %1079 = vmatprep.subr.mxu0 0.0
        %1080 = vmatpush1.msra.mxu0 0.0
        %1081 = vmatprep.subr.mxu0 0.0
        %1082 = vmatpush1.msra.mxu0 0.0
        %1083 = vmatprep.subr.mxu0 0.0
        %1084 = vmatpush1.msra.mxu0 0.0
        %1085 = vmatprep.subr.mxu0 0.0
        %1086 = vmatpush1.msra.mxu0 0.0
        %1087 = vmatprep.subr.mxu0 0.0
        %1088 = vmatpush1.msra.mxu0 0.0
        %1089 = vmatprep.subr.mxu0 0.0
        %1090 = vmatpush1.msra.mxu0 0.0
        %1091 = vmatprep.subr.mxu0 0.0
        %1092 = vmatpush1.msra.mxu0 0.0
        %1093 = vmatprep.subr.mxu0 0.0
        %1094 = vmatpush1.msra.mxu0 0.0
        %1095 = vmatprep.subr.mxu0 0.0
        %1096 = vmatpush1.msra.mxu0 0.0
        %1097 = vmatprep.subr.mxu0 0.0
        %1098 = vmatpush1.msra.mxu0 0.0
        %1099 = vmatprep.subr.mxu0 0.0
        %1100 = vmatpush1.msra.mxu0 0.0
        %1101 = vmatprep.subr.mxu0 0.0
        %1102 = vmatpush1.msra.mxu0 0.0
        %1103 = vmatprep.subr.mxu0 0.0
        %1104 = vmatpush1.msra.mxu0 0.0
        %1105 = vmatprep.subr.mxu0 0.0
        %1106 = vmatpush1.msra.mxu0 0.0
        %1107 = vmatprep.subr.mxu0 0.0
        %1108 = vmatpush1.msra.mxu0 0.0
        %1109 = vmatprep.subr.mxu0 0.0
        %1110 = vmatpush1.msra.mxu0 0.0
        %1111 = vmatprep.subr.mxu0 0.0
        %1112 = vmatpush1.msra.mxu0 0.0
        %1113 = vmatprep.subr.mxu0 0.0
        %1114 = vmatpush1.msra.mxu0 0.0
        %1115 = vmatprep.subr.mxu0 0.0
        %1116 = vmatpush1.msra.mxu0 0.0
        %1117 = vmatprep.subr.mxu0 0.0
        %1118 = vmatpush1.msra.mxu0 0.0
        %1119 = vmatprep.subr.mxu0 0.0
        %1120 = vmatpush1.msra.mxu0 0.0
        %1121 = vmatprep.subr.mxu0 0.0
        %1122 = vmatpush1.msra.mxu0 0.0
        %1123 = vmatprep.subr.mxu0 0.0
        %1124 = vmatpush1.msra.mxu0 0.0
        %1125 = vmatprep.subr.mxu0 0.0
        %1126 = vmatpush1.msra.mxu0 0.0
        %1127 = vmatprep.subr.mxu0 0.0
        %1128 = vmatpush1.msra.mxu0 0.0
        %1129 = vmatprep.subr.mxu0 0.0
        %1130 = vmatpush1.msra.mxu0 0.0
        %1131 = vmatprep.subr.mxu0 0.0
        %1132 = vmatpush1.msra.mxu0 0.0
        %1133 = vmatprep.subr.mxu0 0.0
        %1134 = vmatpush1.msra.mxu0 0.0
        %1135 = vmatprep.mubr.f32.mxu0 0.0
        %1136 = vmatmul.mubr.f32.gmra.mrb[0].mxu0 %v1069
        %v1137 = vpop.f32.mrb[0].mxu0
        %v1138 = vadd.f32 0.0, %v1137
        %v1139 = vpop.f32.mrb[0].mxu0
        %1140 = vdwg.mxu0
        %vm1141 = vcmp.ge.f32.partialorder %v1138, 0.0
        %v1142 = vmul.f32 %v1138, 0.2
        %v1143 = vsel %vm1141, %v1138, %v1142
        %v1145 = vsel %vm795, %v1143, 0
        %1147 = vmatprep.subr.mxu0 %v638
        %1148 = vmatpush1.msra.mxu0 %v637
        %1149 = vmatprep.subr.mxu0 0.0
        %1150 = vmatpush1.msra.mxu0 0.0
        %1151 = vmatprep.subr.mxu0 0.0
        %1152 = vmatpush1.msra.mxu0 0.0
        %1153 = vmatprep.subr.mxu0 0.0
        %1154 = vmatpush1.msra.mxu0 0.0
        %1155 = vmatprep.subr.mxu0 0.0
        %1156 = vmatpush1.msra.mxu0 0.0
        %1157 = vmatprep.subr.mxu0 0.0
        %1158 = vmatpush1.msra.mxu0 0.0
        %1159 = vmatprep.subr.mxu0 0.0
        %1160 = vmatpush1.msra.mxu0 0.0
        %1161 = vmatprep.subr.mxu0 0.0
        %1162 = vmatpush1.msra.mxu0 0.0
        %1163 = vmatprep.subr.mxu0 0.0
        %1164 = vmatpush1.msra.mxu0 0.0
        %1165 = vmatprep.subr.mxu0 0.0
        %1166 = vmatpush1.msra.mxu0 0.0
        %1167 = vmatprep.subr.mxu0 0.0
        %1168 = vmatpush1.msra.mxu0 0.0
        %1169 = vmatprep.subr.mxu0 0.0
        %1170 = vmatpush1.msra.mxu0 0.0
        %1171 = vmatprep.subr.mxu0 0.0
        %1172 = vmatpush1.msra.mxu0 0.0
        %1173 = vmatprep.subr.mxu0 0.0
        %1174 = vmatpush1.msra.mxu0 0.0
        %1175 = vmatprep.subr.mxu0 0.0
        %1176 = vmatpush1.msra.mxu0 0.0
        %1177 = vmatprep.subr.mxu0 0.0
        %1178 = vmatpush1.msra.mxu0 0.0
        %1179 = vmatprep.subr.mxu0 0.0
        %1180 = vmatpush1.msra.mxu0 0.0
        %1181 = vmatprep.subr.mxu0 0.0
        %1182 = vmatpush1.msra.mxu0 0.0
        %1183 = vmatprep.subr.mxu0 0.0
        %1184 = vmatpush1.msra.mxu0 0.0
        %1185 = vmatprep.subr.mxu0 0.0
        %1186 = vmatpush1.msra.mxu0 0.0
        %1187 = vmatprep.subr.mxu0 0.0
        %1188 = vmatpush1.msra.mxu0 0.0
        %1189 = vmatprep.subr.mxu0 0.0
        %1190 = vmatpush1.msra.mxu0 0.0
        %1191 = vmatprep.subr.mxu0 0.0
        %1192 = vmatpush1.msra.mxu0 0.0
        %1193 = vmatprep.subr.mxu0 0.0
        %1194 = vmatpush1.msra.mxu0 0.0
        %1195 = vmatprep.subr.mxu0 0.0
        %1196 = vmatpush1.msra.mxu0 0.0
        %1197 = vmatprep.subr.mxu0 0.0
        %1198 = vmatpush1.msra.mxu0 0.0
        %1199 = vmatprep.subr.mxu0 0.0
        %1200 = vmatpush1.msra.mxu0 0.0
        %1201 = vmatprep.subr.mxu0 0.0
        %1202 = vmatpush1.msra.mxu0 0.0
        %1203 = vmatprep.subr.mxu0 0.0
        %1204 = vmatpush1.msra.mxu0 0.0
        %1205 = vmatprep.subr.mxu0 0.0
        %1206 = vmatpush1.msra.mxu0 0.0
        %1207 = vmatprep.subr.mxu0 0.0
        %1208 = vmatpush1.msra.mxu0 0.0
        %1209 = vmatprep.subr.mxu0 0.0
        %1210 = vmatpush1.msra.mxu0 0.0
        %1211 = vmatprep.mubr.f32.mxu0 0.0
        %1212 = vmatmul.mubr.f32.gmra.mrb[0].mxu0 %v1145
        %v1213 = vpop.f32.mrb[0].mxu0
        %v1214 = vadd.f32 0.0, %v1213
        %v1215 = vpop.f32.mrb[0].mxu0
        %v1216 = vadd.f32 0.0, %v1215
        %1217 = vdwg.mxu0
        %v1219 = vsel %vm795, %v620, 0
        %v1222 = vsel %vm795, %v621, 0
        %v1225 = vsel %vm795, %v622, 0
        %v1228 = vsel %vm795, %v623, 0
        %1230 = vmatprep.subr.mxu0 %v1216
        %1231 = vmatpush1.msra.mxu0 %v1214
        %1232 = vmatprep.subr.mxu0 0.0
        %1233 = vmatpush1.msra.mxu0 0.0
        %1234 = vmatprep.subr.mxu0 0.0
        %1235 = vmatpush1.msra.mxu0 0.0
        %1236 = vmatprep.subr.mxu0 0.0
        %1237 = vmatpush1.msra.mxu0 0.0
        %1238 = vmatprep.subr.mxu0 0.0
        %1239 = vmatpush1.msra.mxu0 0.0
        %1240 = vmatprep.subr.mxu0 0.0
        %1241 = vmatpush1.msra.mxu0 0.0
        %1242 = vmatprep.subr.mxu0 0.0
        %1243 = vmatpush1.msra.mxu0 0.0
        %1244 = vmatprep.subr.mxu0 0.0
        %1245 = vmatpush1.msra.mxu0 0.0
        %1246 = vmatprep.subr.mxu0 0.0
        %1247 = vmatpush1.msra.mxu0 0.0
        %1248 = vmatprep.subr.mxu0 0.0
        %1249 = vmatpush1.msra.mxu0 0.0
        %1250 = vmatprep.subr.mxu0 0.0
        %1251 = vmatpush1.msra.mxu0 0.0
        %1252 = vmatprep.subr.mxu0 0.0
        %1253 = vmatpush1.msra.mxu0 0.0
        %1254 = vmatprep.subr.mxu0 0.0
        %1255 = vmatpush1.msra.mxu0 0.0
        %1256 = vmatprep.subr.mxu0 0.0
        %1257 = vmatpush1.msra.mxu0 0.0
        %1258 = vmatprep.subr.mxu0 0.0
        %1259 = vmatpush1.msra.mxu0 0.0
        %1260 = vmatprep.subr.mxu0 0.0
        %1261 = vmatpush1.msra.mxu0 0.0
        %1262 = vmatprep.subr.mxu0 0.0
        %1263 = vmatpush1.msra.mxu0 0.0
        %1264 = vmatprep.subr.mxu0 0.0
        %1265 = vmatpush1.msra.mxu0 0.0
        %1266 = vmatprep.subr.mxu0 0.0
        %1267 = vmatpush1.msra.mxu0 0.0
        %1268 = vmatprep.subr.mxu0 0.0
        %1269 = vmatpush1.msra.mxu0 0.0
        %1270 = vmatprep.subr.mxu0 0.0
        %1271 = vmatpush1.msra.mxu0 0.0
        %1272 = vmatprep.subr.mxu0 0.0
        %1273 = vmatpush1.msra.mxu0 0.0
        %1274 = vmatprep.subr.mxu0 0.0
        %1275 = vmatpush1.msra.mxu0 0.0
        %1276 = vmatprep.subr.mxu0 0.0
        %1277 = vmatpush1.msra.mxu0 0.0
        %1278 = vmatprep.subr.mxu0 0.0
        %1279 = vmatpush1.msra.mxu0 0.0
        %1280 = vmatprep.subr.mxu0 0.0
        %1281 = vmatpush1.msra.mxu0 0.0
        %1282 = vmatprep.subr.mxu0 0.0
        %1283 = vmatpush1.msra.mxu0 0.0
        %1284 = vmatprep.subr.mxu0 0.0
        %1285 = vmatpush1.msra.mxu0 0.0
        %1286 = vmatprep.subr.mxu0 0.0
        %1287 = vmatpush1.msra.mxu0 0.0
        %1288 = vmatprep.subr.mxu0 0.0
        %1289 = vmatpush1.msra.mxu0 0.0
        %1290 = vmatprep.subr.mxu0 0.0
        %1291 = vmatpush1.msra.mxu0 0.0
        %1292 = vmatprep.subr.mxu0 0.0
        %1293 = vmatpush1.msra.mxu0 0.0
        %1294 = vmatprep.mubr.f32.mxu0 0.0
        %1295 = vmatmul.mubr.f32.gmra.mrb[0].mxu0 %v1219
        %v1296 = vpop.f32.mrb[0].mxu0
        %v1297 = vadd.f32 0.0, %v1296
        %v1298 = vpop.f32.mrb[0].mxu0
        %v1299 = vadd.f32 0.0, %v1298
        %1300 = vmatprep.mubr.f32.mxu0 0.0
        %1301 = vmatmul.mubr.f32.gmra.mrb[0].mxu0 %v1222
        %v1302 = vpop.f32.mrb[0].mxu0
        %v1303 = vadd.f32 0.0, %v1302
        %v1304 = vpop.f32.mrb[0].mxu0
        %v1305 = vadd.f32 0.0, %v1304
        %1306 = vmatprep.mubr.f32.mxu0 0.0
        %1307 = vmatmul.mubr.f32.gmra.mrb[0].mxu0 %v1225
        %v1308 = vpop.f32.mrb[0].mxu0
        %v1309 = vadd.f32 0.0, %v1308
        %v1310 = vpop.f32.mrb[0].mxu0
        %v1311 = vadd.f32 0.0, %v1310
        %1312 = vmatprep.mubr.f32.mxu0 0.0
        %1313 = vmatmul.mubr.f32.gmra.mrb[0].mxu0 %v1228
        %v1314 = vpop.f32.mrb[0].mxu0
        %v1315 = vadd.f32 0.0, %v1314
        %v1316 = vpop.f32.mrb[0].mxu0
        %v1317 = vadd.f32 0.0, %v1316
        %1318 = vdwg.mxu0
        %v1319 = vadd.f32 %v971, %v1297
        %v1320 = vadd.f32 %v972, %v1299
        %v1321 = vadd.f32 %v973, %v1303
        %v1322 = vadd.f32 %v974, %v1305
        %v1323 = vadd.f32 %v975, %v1309
        %v1324 = vadd.f32 %v976, %v1311
        %v1325 = vadd.f32 %v977, %v1315
        %v1326 = vadd.f32 %v978, %v1317
        %1327 = vrot.lane.b32.xlu0 %v571, 64
        %v1328 = vpop.permute.xlu0 %1327
        %1329 = vrot.lane.b32.xlu0 %v576, 64
        %v1330 = vpop.permute.xlu0 %1329
        %1331 = vrot.lane.b32.xlu0 %v581, 64
        %v1332 = vpop.permute.xlu0 %1331
        %1333 = vrot.lane.b32.xlu0 %v586, 64
        %v1334 = vpop.permute.xlu0 %1333
        %v1340 = vsel %vm645, %v593, 0
        %1342 = vmatprep.subr.mxu0 0.0
        %1343 = vmatpush1.msra.mxu0 %v1328
        %1344 = vmatprep.subr.mxu0 0.0
        %1345 = vmatpush1.msra.mxu0 %v1330
        %1346 = vmatprep.subr.mxu0 0.0
        %1347 = vmatpush1.msra.mxu0 %v1332
        %1348 = vmatprep.subr.mxu0 0.0
        %1349 = vmatpush1.msra.mxu0 %v1334
        %1350 = vmatprep.subr.mxu0 0.0
        %1351 = vmatpush1.msra.mxu0 0.0
        %1352 = vmatprep.subr.mxu0 0.0
        %1353 = vmatpush1.msra.mxu0 0.0
        %1354 = vmatprep.subr.mxu0 0.0
        %1355 = vmatpush1.msra.mxu0 0.0
        %1356 = vmatprep.subr.mxu0 0.0
        %1357 = vmatpush1.msra.mxu0 0.0
        %1358 = vmatprep.subr.mxu0 0.0
        %1359 = vmatpush1.msra.mxu0 0.0
        %1360 = vmatprep.subr.mxu0 0.0
        %1361 = vmatpush1.msra.mxu0 0.0
        %1362 = vmatprep.subr.mxu0 0.0
        %1363 = vmatpush1.msra.mxu0 0.0
        %1364 = vmatprep.subr.mxu0 0.0
        %1365 = vmatpush1.msra.mxu0 0.0
        %1366 = vmatprep.subr.mxu0 0.0
        %1367 = vmatpush1.msra.mxu0 0.0
        %1368 = vmatprep.subr.mxu0 0.0
        %1369 = vmatpush1.msra.mxu0 0.0
        %1370 = vmatprep.subr.mxu0 0.0
        %1371 = vmatpush1.msra.mxu0 0.0
        %1372 = vmatprep.subr.mxu0 0.0
        %1373 = vmatpush1.msra.mxu0 0.0
        %1374 = vmatprep.subr.mxu0 0.0
        %1375 = vmatpush1.msra.mxu0 0.0
        %1376 = vmatprep.subr.mxu0 0.0
        %1377 = vmatpush1.msra.mxu0 0.0
        %1378 = vmatprep.subr.mxu0 0.0
        %1379 = vmatpush1.msra.mxu0 0.0
        %1380 = vmatprep.subr.mxu0 0.0
        %1381 = vmatpush1.msra.mxu0 0.0
        %1382 = vmatprep.subr.mxu0 0.0
        %1383 = vmatpush1.msra.mxu0 0.0
        %1384 = vmatprep.subr.mxu0 0.0
        %1385 = vmatpush1.msra.mxu0 0.0
        %1386 = vmatprep.subr.mxu0 0.0
        %1387 = vmatpush1.msra.mxu0 0.0
        %1388 = vmatprep.subr.mxu0 0.0
        %1389 = vmatpush1.msra.mxu0 0.0
        %1390 = vmatprep.subr.mxu0 0.0
        %1391 = vmatpush1.msra.mxu0 0.0
        %1392 = vmatprep.subr.mxu0 0.0
        %1393 = vmatpush1.msra.mxu0 0.0
        %1394 = vmatprep.subr.mxu0 0.0
        %1395 = vmatpush1.msra.mxu0 0.0
        %1396 = vmatprep.subr.mxu0 0.0
        %1397 = vmatpush1.msra.mxu0 0.0
        %1398 = vmatprep.subr.mxu0 0.0
        %1399 = vmatpush1.msra.mxu0 0.0
        %1400 = vmatprep.subr.mxu0 0.0
        %1401 = vmatpush1.msra.mxu0 0.0
        %1402 = vmatprep.subr.mxu0 0.0
        %1403 = vmatpush1.msra.mxu0 0.0
        %1404 = vmatprep.subr.mxu0 0.0
        %1405 = vmatpush1.msra.mxu0 0.0
        %1406 = vmatprep.mubr.f32.mxu0 0.0
        %1407 = vmatmul.mubr.f32.gmra.mrb[0].mxu0 %v1340
        %v1408 = vpop.f32.mrb[0].mxu0
        %v1409 = vadd.f32 0.0, %v1408
        %v1410 = vpop.f32.mrb[0].mxu0
        %1411 = vdwg.mxu0
        %v1413 = vsel %vm645, %v1409, 0
        %1415 = vmatprep.subr.mxu0 0.0
        %1416 = vmatpush1.msra.mxu0 %v606
        %1417 = vmatprep.subr.mxu0 0.0
        %1418 = vmatpush1.msra.mxu0 %v607
        %1419 = vmatprep.subr.mxu0 0.0
        %1420 = vmatpush1.msra.mxu0 %v608
        %1421 = vmatprep.subr.mxu0 0.0
        %1422 = vmatpush1.msra.mxu0 %v609
        %1423 = vmatprep.subr.mxu0 0.0
        %1424 = vmatpush1.msra.mxu0 0.0
        %1425 = vmatprep.subr.mxu0 0.0
        %1426 = vmatpush1.msra.mxu0 0.0
        %1427 = vmatprep.subr.mxu0 0.0
        %1428 = vmatpush1.msra.mxu0 0.0
        %1429 = vmatprep.subr.mxu0 0.0
        %1430 = vmatpush1.msra.mxu0 0.0
        %1431 = vmatprep.subr.mxu0 0.0
        %1432 = vmatpush1.msra.mxu0 0.0
        %1433 = vmatprep.subr.mxu0 0.0
        %1434 = vmatpush1.msra.mxu0 0.0
        %1435 = vmatprep.subr.mxu0 0.0
        %1436 = vmatpush1.msra.mxu0 0.0
        %1437 = vmatprep.subr.mxu0 0.0
        %1438 = vmatpush1.msra.mxu0 0.0
        %1439 = vmatprep.subr.mxu0 0.0
        %1440 = vmatpush1.msra.mxu0 0.0
        %1441 = vmatprep.subr.mxu0 0.0
        %1442 = vmatpush1.msra.mxu0 0.0
        %1443 = vmatprep.subr.mxu0 0.0
        %1444 = vmatpush1.msra.mxu0 0.0
        %1445 = vmatprep.subr.mxu0 0.0
        %1446 = vmatpush1.msra.mxu0 0.0
        %1447 = vmatprep.subr.mxu0 0.0
        %1448 = vmatpush1.msra.mxu0 0.0
        %1449 = vmatprep.subr.mxu0 0.0
        %1450 = vmatpush1.msra.mxu0 0.0
        %1451 = vmatprep.subr.mxu0 0.0
        %1452 = vmatpush1.msra.mxu0 0.0
        %1453 = vmatprep.subr.mxu0 0.0
        %1454 = vmatpush1.msra.mxu0 0.0
        %1455 = vmatprep.subr.mxu0 0.0
        %1456 = vmatpush1.msra.mxu0 0.0
        %1457 = vmatprep.subr.mxu0 0.0
        %1458 = vmatpush1.msra.mxu0 0.0
        %1459 = vmatprep.subr.mxu0 0.0
        %1460 = vmatpush1.msra.mxu0 0.0
        %1461 = vmatprep.subr.mxu0 0.0
        %1462 = vmatpush1.msra.mxu0 0.0
        %1463 = vmatprep.subr.mxu0 0.0
        %1464 = vmatpush1.msra.mxu0 0.0
        %1465 = vmatprep.subr.mxu0 0.0
        %1466 = vmatpush1.msra.mxu0 0.0
        %1467 = vmatprep.subr.mxu0 0.0
        %1468 = vmatpush1.msra.mxu0 0.0
        %1469 = vmatprep.subr.mxu0 0.0
        %1470 = vmatpush1.msra.mxu0 0.0
        %1471 = vmatprep.subr.mxu0 0.0
        %1472 = vmatpush1.msra.mxu0 0.0
        %1473 = vmatprep.subr.mxu0 0.0
        %1474 = vmatpush1.msra.mxu0 0.0
        %1475 = vmatprep.subr.mxu0 0.0
        %1476 = vmatpush1.msra.mxu0 0.0
        %1477 = vmatprep.subr.mxu0 0.0
        %1478 = vmatpush1.msra.mxu0 0.0
        %1479 = vmatprep.mubr.f32.mxu0 0.0
        %1480 = vmatmul.mubr.f32.gmra.mrb[0].mxu0 %v1413
        %v1481 = vpop.f32.mrb[0].mxu0
        %v1482 = vadd.f32 0.0, %v1481
        %v1483 = vpop.f32.mrb[0].mxu0
        %1484 = vdwg.mxu0
        %vm1485 = vcmp.ge.f32.partialorder %v1482, 0.0
        %v1486 = vmul.f32 %v1482, 0.2
        %v1487 = vsel %vm1485, %v1482, %v1486
        %v1489 = vsel %vm795, %v1487, 0
        %1491 = vmatprep.subr.mxu0 %v641
        %1492 = vmatpush1.msra.mxu0 %v640
        %1493 = vmatprep.subr.mxu0 0.0
        %1494 = vmatpush1.msra.mxu0 0.0
        %1495 = vmatprep.subr.mxu0 0.0
        %1496 = vmatpush1.msra.mxu0 0.0
        %1497 = vmatprep.subr.mxu0 0.0
        %1498 = vmatpush1.msra.mxu0 0.0
        %1499 = vmatprep.subr.mxu0 0.0
        %1500 = vmatpush1.msra.mxu0 0.0
        %1501 = vmatprep.subr.mxu0 0.0
        %1502 = vmatpush1.msra.mxu0 0.0
        %1503 = vmatprep.subr.mxu0 0.0
        %1504 = vmatpush1.msra.mxu0 0.0
        %1505 = vmatprep.subr.mxu0 0.0
        %1506 = vmatpush1.msra.mxu0 0.0
        %1507 = vmatprep.subr.mxu0 0.0
        %1508 = vmatpush1.msra.mxu0 0.0
        %1509 = vmatprep.subr.mxu0 0.0
        %1510 = vmatpush1.msra.mxu0 0.0
        %1511 = vmatprep.subr.mxu0 0.0
        %1512 = vmatpush1.msra.mxu0 0.0
        %1513 = vmatprep.subr.mxu0 0.0
        %1514 = vmatpush1.msra.mxu0 0.0
        %1515 = vmatprep.subr.mxu0 0.0
        %1516 = vmatpush1.msra.mxu0 0.0
        %1517 = vmatprep.subr.mxu0 0.0
        %1518 = vmatpush1.msra.mxu0 0.0
        %1519 = vmatprep.subr.mxu0 0.0
        %1520 = vmatpush1.msra.mxu0 0.0
        %1521 = vmatprep.subr.mxu0 0.0
        %1522 = vmatpush1.msra.mxu0 0.0
        %1523 = vmatprep.subr.mxu0 0.0
        %1524 = vmatpush1.msra.mxu0 0.0
        %1525 = vmatprep.subr.mxu0 0.0
        %1526 = vmatpush1.msra.mxu0 0.0
        %1527 = vmatprep.subr.mxu0 0.0
        %1528 = vmatpush1.msra.mxu0 0.0
        %1529 = vmatprep.subr.mxu0 0.0
        %1530 = vmatpush1.msra.mxu0 0.0
        %1531 = vmatprep.subr.mxu0 0.0
        %1532 = vmatpush1.msra.mxu0 0.0
        %1533 = vmatprep.subr.mxu0 0.0
        %1534 = vmatpush1.msra.mxu0 0.0
        %1535 = vmatprep.subr.mxu0 0.0
        %1536 = vmatpush1.msra.mxu0 0.0
        %1537 = vmatprep.subr.mxu0 0.0
        %1538 = vmatpush1.msra.mxu0 0.0
        %1539 = vmatprep.subr.mxu0 0.0
        %1540 = vmatpush1.msra.mxu0 0.0
        %1541 = vmatprep.subr.mxu0 0.0
        %1542 = vmatpush1.msra.mxu0 0.0
        %1543 = vmatprep.subr.mxu0 0.0
        %1544 = vmatpush1.msra.mxu0 0.0
        %1545 = vmatprep.subr.mxu0 0.0
        %1546 = vmatpush1.msra.mxu0 0.0
        %1547 = vmatprep.subr.mxu0 0.0
        %1548 = vmatpush1.msra.mxu0 0.0
        %1549 = vmatprep.subr.mxu0 0.0
        %1550 = vmatpush1.msra.mxu0 0.0
        %1551 = vmatprep.subr.mxu0 0.0
        %1552 = vmatpush1.msra.mxu0 0.0
        %1553 = vmatprep.subr.mxu0 0.0
        %1554 = vmatpush1.msra.mxu0 0.0
        %1555 = vmatprep.mubr.f32.mxu0 0.0
        %1556 = vmatmul.mubr.f32.gmra.mrb[0].mxu0 %v1489
        %v1557 = vpop.f32.mrb[0].mxu0
        %v1558 = vadd.f32 0.0, %v1557
        %v1559 = vpop.f32.mrb[0].mxu0
        %v1560 = vadd.f32 0.0, %v1559
        %1561 = vdwg.mxu0
        %v1563 = vsel %vm795, %v625, 0
        %v1566 = vsel %vm795, %v626, 0
        %v1569 = vsel %vm795, %v627, 0
        %v1572 = vsel %vm795, %v628, 0
        %1574 = vmatprep.subr.mxu0 %v1560
        %1575 = vmatpush1.msra.mxu0 %v1558
        %1576 = vmatprep.subr.mxu0 0.0
        %1577 = vmatpush1.msra.mxu0 0.0
        %1578 = vmatprep.subr.mxu0 0.0
        %1579 = vmatpush1.msra.mxu0 0.0
        %1580 = vmatprep.subr.mxu0 0.0
        %1581 = vmatpush1.msra.mxu0 0.0
        %1582 = vmatprep.subr.mxu0 0.0
        %1583 = vmatpush1.msra.mxu0 0.0
        %1584 = vmatprep.subr.mxu0 0.0
        %1585 = vmatpush1.msra.mxu0 0.0
        %1586 = vmatprep.subr.mxu0 0.0
        %1587 = vmatpush1.msra.mxu0 0.0
        %1588 = vmatprep.subr.mxu0 0.0
        %1589 = vmatpush1.msra.mxu0 0.0
        %1590 = vmatprep.subr.mxu0 0.0
        %1591 = vmatpush1.msra.mxu0 0.0
        %1592 = vmatprep.subr.mxu0 0.0
        %1593 = vmatpush1.msra.mxu0 0.0
        %1594 = vmatprep.subr.mxu0 0.0
        %1595 = vmatpush1.msra.mxu0 0.0
        %1596 = vmatprep.subr.mxu0 0.0
        %1597 = vmatpush1.msra.mxu0 0.0
        %1598 = vmatprep.subr.mxu0 0.0
        %1599 = vmatpush1.msra.mxu0 0.0
        %1600 = vmatprep.subr.mxu0 0.0
        %1601 = vmatpush1.msra.mxu0 0.0
        %1602 = vmatprep.subr.mxu0 0.0
        %1603 = vmatpush1.msra.mxu0 0.0
        %1604 = vmatprep.subr.mxu0 0.0
        %1605 = vmatpush1.msra.mxu0 0.0
        %1606 = vmatprep.subr.mxu0 0.0
        %1607 = vmatpush1.msra.mxu0 0.0
        %1608 = vmatprep.subr.mxu0 0.0
        %1609 = vmatpush1.msra.mxu0 0.0
        %1610 = vmatprep.subr.mxu0 0.0
        %1611 = vmatpush1.msra.mxu0 0.0
        %1612 = vmatprep.subr.mxu0 0.0
        %1613 = vmatpush1.msra.mxu0 0.0
        %1614 = vmatprep.subr.mxu0 0.0
        %1615 = vmatpush1.msra.mxu0 0.0
        %1616 = vmatprep.subr.mxu0 0.0
        %1617 = vmatpush1.msra.mxu0 0.0
        %1618 = vmatprep.subr.mxu0 0.0
        %1619 = vmatpush1.msra.mxu0 0.0
        %1620 = vmatprep.subr.mxu0 0.0
        %1621 = vmatpush1.msra.mxu0 0.0
        %1622 = vmatprep.subr.mxu0 0.0
        %1623 = vmatpush1.msra.mxu0 0.0
        %1624 = vmatprep.subr.mxu0 0.0
        %1625 = vmatpush1.msra.mxu0 0.0
        %1626 = vmatprep.subr.mxu0 0.0
        %1627 = vmatpush1.msra.mxu0 0.0
        %1628 = vmatprep.subr.mxu0 0.0
        %1629 = vmatpush1.msra.mxu0 0.0
        %1630 = vmatprep.subr.mxu0 0.0
        %1631 = vmatpush1.msra.mxu0 0.0
        %1632 = vmatprep.subr.mxu0 0.0
        %1633 = vmatpush1.msra.mxu0 0.0
        %1634 = vmatprep.subr.mxu0 0.0
        %1635 = vmatpush1.msra.mxu0 0.0
        %1636 = vmatprep.subr.mxu0 0.0
        %1637 = vmatpush1.msra.mxu0 0.0
        %1638 = vmatprep.mubr.f32.mxu0 0.0
        %1639 = vmatmul.mubr.f32.gmra.mrb[0].mxu0 %v1563
        %v1640 = vpop.f32.mrb[0].mxu0
        %v1641 = vadd.f32 0.0, %v1640
        %v1642 = vpop.f32.mrb[0].mxu0
        %v1643 = vadd.f32 0.0, %v1642
        %1644 = vmatprep.mubr.f32.mxu0 0.0
        %1645 = vmatmul.mubr.f32.gmra.mrb[0].mxu0 %v1566
        %v1646 = vpop.f32.mrb[0].mxu0
        %v1647 = vadd.f32 0.0, %v1646
        %v1648 = vpop.f32.mrb[0].mxu0
        %v1649 = vadd.f32 0.0, %v1648
        %1650 = vmatprep.mubr.f32.mxu0 0.0
        %1651 = vmatmul.mubr.f32.gmra.mrb[0].mxu0 %v1569
        %v1652 = vpop.f32.mrb[0].mxu0
        %v1653 = vadd.f32 0.0, %v1652
        %v1654 = vpop.f32.mrb[0].mxu0
        %v1655 = vadd.f32 0.0, %v1654
        %1656 = vmatprep.mubr.f32.mxu0 0.0
        %1657 = vmatmul.mubr.f32.gmra.mrb[0].mxu0 %v1572
        %v1658 = vpop.f32.mrb[0].mxu0
        %v1659 = vadd.f32 0.0, %v1658
        %v1660 = vpop.f32.mrb[0].mxu0
        %v1661 = vadd.f32 0.0, %v1660
        %1662 = vdwg.mxu0
        %v1663 = vadd.f32 %v1319, %v1641
        %v1664 = vadd.f32 %v1320, %v1643
        %v1665 = vadd.f32 %v1321, %v1647
        %v1666 = vadd.f32 %v1322, %v1649
        %v1667 = vadd.f32 %v1323, %v1653
        %v1668 = vadd.f32 %v1324, %v1655
        %v1669 = vadd.f32 %v1325, %v1659
        %v1670 = vadd.f32 %v1326, %v1661
        %1671 = vrot.lane.b32.xlu0 %v571, 32
        %v1672 = vpop.permute.xlu0 %1671
        %1673 = vrot.lane.b32.xlu0 %v576, 32
        %v1674 = vpop.permute.xlu0 %1673
        %1675 = vrot.lane.b32.xlu0 %v581, 32
        %v1676 = vpop.permute.xlu0 %1675
        %1677 = vrot.lane.b32.xlu0 %v586, 32
        %v1678 = vpop.permute.xlu0 %1677
        %v1684 = vsel %vm645, %v595, 0
        %1686 = vmatprep.subr.mxu0 0.0
        %1687 = vmatpush1.msra.mxu0 %v1672
        %1688 = vmatprep.subr.mxu0 0.0
        %1689 = vmatpush1.msra.mxu0 %v1674
        %1690 = vmatprep.subr.mxu0 0.0
        %1691 = vmatpush1.msra.mxu0 %v1676
        %1692 = vmatprep.subr.mxu0 0.0
        %1693 = vmatpush1.msra.mxu0 %v1678
        %1694 = vmatprep.subr.mxu0 0.0
        %1695 = vmatpush1.msra.mxu0 0.0
        %1696 = vmatprep.subr.mxu0 0.0
        %1697 = vmatpush1.msra.mxu0 0.0
        %1698 = vmatprep.subr.mxu0 0.0
        %1699 = vmatpush1.msra.mxu0 0.0
        %1700 = vmatprep.subr.mxu0 0.0
        %1701 = vmatpush1.msra.mxu0 0.0
        %1702 = vmatprep.subr.mxu0 0.0
        %1703 = vmatpush1.msra.mxu0 0.0
        %1704 = vmatprep.subr.mxu0 0.0
        %1705 = vmatpush1.msra.mxu0 0.0
        %1706 = vmatprep.subr.mxu0 0.0
        %1707 = vmatpush1.msra.mxu0 0.0
        %1708 = vmatprep.subr.mxu0 0.0
        %1709 = vmatpush1.msra.mxu0 0.0
        %1710 = vmatprep.subr.mxu0 0.0
        %1711 = vmatpush1.msra.mxu0 0.0
        %1712 = vmatprep.subr.mxu0 0.0
        %1713 = vmatpush1.msra.mxu0 0.0
        %1714 = vmatprep.subr.mxu0 0.0
        %1715 = vmatpush1.msra.mxu0 0.0
        %1716 = vmatprep.subr.mxu0 0.0
        %1717 = vmatpush1.msra.mxu0 0.0
        %1718 = vmatprep.subr.mxu0 0.0
        %1719 = vmatpush1.msra.mxu0 0.0
        %1720 = vmatprep.subr.mxu0 0.0
        %1721 = vmatpush1.msra.mxu0 0.0
        %1722 = vmatprep.subr.mxu0 0.0
        %1723 = vmatpush1.msra.mxu0 0.0
        %1724 = vmatprep.subr.mxu0 0.0
        %1725 = vmatpush1.msra.mxu0 0.0
        %1726 = vmatprep.subr.mxu0 0.0
        %1727 = vmatpush1.msra.mxu0 0.0
        %1728 = vmatprep.subr.mxu0 0.0
        %1729 = vmatpush1.msra.mxu0 0.0
        %1730 = vmatprep.subr.mxu0 0.0
        %1731 = vmatpush1.msra.mxu0 0.0
        %1732 = vmatprep.subr.mxu0 0.0
        %1733 = vmatpush1.msra.mxu0 0.0
        %1734 = vmatprep.subr.mxu0 0.0
        %1735 = vmatpush1.msra.mxu0 0.0
        %1736 = vmatprep.subr.mxu0 0.0
        %1737 = vmatpush1.msra.mxu0 0.0
        %1738 = vmatprep.subr.mxu0 0.0
        %1739 = vmatpush1.msra.mxu0 0.0
        %1740 = vmatprep.subr.mxu0 0.0
        %1741 = vmatpush1.msra.mxu0 0.0
        %1742 = vmatprep.subr.mxu0 0.0
        %1743 = vmatpush1.msra.mxu0 0.0
        %1744 = vmatprep.subr.mxu0 0.0
        %1745 = vmatpush1.msra.mxu0 0.0
        %1746 = vmatprep.subr.mxu0 0.0
        %1747 = vmatpush1.msra.mxu0 0.0
        %1748 = vmatprep.subr.mxu0 0.0
        %1749 = vmatpush1.msra.mxu0 0.0
        %1750 = vmatprep.mubr.f32.mxu0 0.0
        %1751 = vmatmul.mubr.f32.gmra.mrb[0].mxu0 %v1684
        %v1752 = vpop.f32.mrb[0].mxu0
        %v1753 = vadd.f32 0.0, %v1752
        %v1754 = vpop.f32.mrb[0].mxu0
        %1755 = vdwg.mxu0
        %v1757 = vsel %vm645, %v1753, 0
        %1759 = vmatprep.subr.mxu0 0.0
        %1760 = vmatpush1.msra.mxu0 %v611
        %1761 = vmatprep.subr.mxu0 0.0
        %1762 = vmatpush1.msra.mxu0 %v612
        %1763 = vmatprep.subr.mxu0 0.0
        %1764 = vmatpush1.msra.mxu0 %v613
        %1765 = vmatprep.subr.mxu0 0.0
        %1766 = vmatpush1.msra.mxu0 %v614
        %1767 = vmatprep.subr.mxu0 0.0
        %1768 = vmatpush1.msra.mxu0 0.0
        %1769 = vmatprep.subr.mxu0 0.0
        %1770 = vmatpush1.msra.mxu0 0.0
        %1771 = vmatprep.subr.mxu0 0.0
        %1772 = vmatpush1.msra.mxu0 0.0
        %1773 = vmatprep.subr.mxu0 0.0
        %1774 = vmatpush1.msra.mxu0 0.0
        %1775 = vmatprep.subr.mxu0 0.0
        %1776 = vmatpush1.msra.mxu0 0.0
        %1777 = vmatprep.subr.mxu0 0.0
        %1778 = vmatpush1.msra.mxu0 0.0
        %1779 = vmatprep.subr.mxu0 0.0
        %1780 = vmatpush1.msra.mxu0 0.0
        %1781 = vmatprep.subr.mxu0 0.0
        %1782 = vmatpush1.msra.mxu0 0.0
        %1783 = vmatprep.subr.mxu0 0.0
        %1784 = vmatpush1.msra.mxu0 0.0
        %1785 = vmatprep.subr.mxu0 0.0
        %1786 = vmatpush1.msra.mxu0 0.0
        %1787 = vmatprep.subr.mxu0 0.0
        %1788 = vmatpush1.msra.mxu0 0.0
        %1789 = vmatprep.subr.mxu0 0.0
        %1790 = vmatpush1.msra.mxu0 0.0
        %1791 = vmatprep.subr.mxu0 0.0
        %1792 = vmatpush1.msra.mxu0 0.0
        %1793 = vmatprep.subr.mxu0 0.0
        %1794 = vmatpush1.msra.mxu0 0.0
        %1795 = vmatprep.subr.mxu0 0.0
        %1796 = vmatpush1.msra.mxu0 0.0
        %1797 = vmatprep.subr.mxu0 0.0
        %1798 = vmatpush1.msra.mxu0 0.0
        %1799 = vmatprep.subr.mxu0 0.0
        %1800 = vmatpush1.msra.mxu0 0.0
        %1801 = vmatprep.subr.mxu0 0.0
        %1802 = vmatpush1.msra.mxu0 0.0
        %1803 = vmatprep.subr.mxu0 0.0
        %1804 = vmatpush1.msra.mxu0 0.0
        %1805 = vmatprep.subr.mxu0 0.0
        %1806 = vmatpush1.msra.mxu0 0.0
        %1807 = vmatprep.subr.mxu0 0.0
        %1808 = vmatpush1.msra.mxu0 0.0
        %1809 = vmatprep.subr.mxu0 0.0
        %1810 = vmatpush1.msra.mxu0 0.0
        %1811 = vmatprep.subr.mxu0 0.0
        %1812 = vmatpush1.msra.mxu0 0.0
        %1813 = vmatprep.subr.mxu0 0.0
        %1814 = vmatpush1.msra.mxu0 0.0
        %1815 = vmatprep.subr.mxu0 0.0
        %1816 = vmatpush1.msra.mxu0 0.0
        %1817 = vmatprep.subr.mxu0 0.0
        %1818 = vmatpush1.msra.mxu0 0.0
        %1819 = vmatprep.subr.mxu0 0.0
        %1820 = vmatpush1.msra.mxu0 0.0
        %1821 = vmatprep.subr.mxu0 0.0
        %1822 = vmatpush1.msra.mxu0 0.0
        %1823 = vmatprep.mubr.f32.mxu0 0.0
        %1824 = vmatmul.mubr.f32.gmra.mrb[0].mxu0 %v1757
        %v1825 = vpop.f32.mrb[0].mxu0
        %v1826 = vadd.f32 0.0, %v1825
        %v1827 = vpop.f32.mrb[0].mxu0
        %1828 = vdwg.mxu0
        %vm1829 = vcmp.ge.f32.partialorder %v1826, 0.0
        %v1830 = vmul.f32 %v1826, 0.2
        %v1831 = vsel %vm1829, %v1826, %v1830
        %v1833 = vsel %vm795, %v1831, 0
        %1835 = vmatprep.subr.mxu0 %v644
        %1836 = vmatpush1.msra.mxu0 %v643
        %1837 = vmatprep.subr.mxu0 0.0
        %1838 = vmatpush1.msra.mxu0 0.0
        %1839 = vmatprep.subr.mxu0 0.0
        %1840 = vmatpush1.msra.mxu0 0.0
        %1841 = vmatprep.subr.mxu0 0.0
        %1842 = vmatpush1.msra.mxu0 0.0
        %1843 = vmatprep.subr.mxu0 0.0
        %1844 = vmatpush1.msra.mxu0 0.0
        %1845 = vmatprep.subr.mxu0 0.0
        %1846 = vmatpush1.msra.mxu0 0.0
        %1847 = vmatprep.subr.mxu0 0.0
        %1848 = vmatpush1.msra.mxu0 0.0
        %1849 = vmatprep.subr.mxu0 0.0
        %1850 = vmatpush1.msra.mxu0 0.0
        %1851 = vmatprep.subr.mxu0 0.0
        %1852 = vmatpush1.msra.mxu0 0.0
        %1853 = vmatprep.subr.mxu0 0.0
        %1854 = vmatpush1.msra.mxu0 0.0
        %1855 = vmatprep.subr.mxu0 0.0
        %1856 = vmatpush1.msra.mxu0 0.0
        %1857 = vmatprep.subr.mxu0 0.0
        %1858 = vmatpush1.msra.mxu0 0.0
        %1859 = vmatprep.subr.mxu0 0.0
        %1860 = vmatpush1.msra.mxu0 0.0
        %1861 = vmatprep.subr.mxu0 0.0
        %1862 = vmatpush1.msra.mxu0 0.0
        %1863 = vmatprep.subr.mxu0 0.0
        %1864 = vmatpush1.msra.mxu0 0.0
        %1865 = vmatprep.subr.mxu0 0.0
        %1866 = vmatpush1.msra.mxu0 0.0
        %1867 = vmatprep.subr.mxu0 0.0
        %1868 = vmatpush1.msra.mxu0 0.0
        %1869 = vmatprep.subr.mxu0 0.0
        %1870 = vmatpush1.msra.mxu0 0.0
        %1871 = vmatprep.subr.mxu0 0.0
        %1872 = vmatpush1.msra.mxu0 0.0
        %1873 = vmatprep.subr.mxu0 0.0
        %1874 = vmatpush1.msra.mxu0 0.0
        %1875 = vmatprep.subr.mxu0 0.0
        %1876 = vmatpush1.msra.mxu0 0.0
        %1877 = vmatprep.subr.mxu0 0.0
        %1878 = vmatpush1.msra.mxu0 0.0
        %1879 = vmatprep.subr.mxu0 0.0
        %1880 = vmatpush1.msra.mxu0 0.0
        %1881 = vmatprep.subr.mxu0 0.0
        %1882 = vmatpush1.msra.mxu0 0.0
        %1883 = vmatprep.subr.mxu0 0.0
        %1884 = vmatpush1.msra.mxu0 0.0
        %1885 = vmatprep.subr.mxu0 0.0
        %1886 = vmatpush1.msra.mxu0 0.0
        %1887 = vmatprep.subr.mxu0 0.0
        %1888 = vmatpush1.msra.mxu0 0.0
        %1889 = vmatprep.subr.mxu0 0.0
        %1890 = vmatpush1.msra.mxu0 0.0
        %1891 = vmatprep.subr.mxu0 0.0
        %1892 = vmatpush1.msra.mxu0 0.0
        %1893 = vmatprep.subr.mxu0 0.0
        %1894 = vmatpush1.msra.mxu0 0.0
        %1895 = vmatprep.subr.mxu0 0.0
        %1896 = vmatpush1.msra.mxu0 0.0
        %1897 = vmatprep.subr.mxu0 0.0
        %1898 = vmatpush1.msra.mxu0 0.0
        %1899 = vmatprep.mubr.f32.mxu0 0.0
        %1900 = vmatmul.mubr.f32.gmra.mrb[0].mxu0 %v1833
        %v1901 = vpop.f32.mrb[0].mxu0
        %v1902 = vadd.f32 0.0, %v1901
        %v1903 = vpop.f32.mrb[0].mxu0
        %v1904 = vadd.f32 0.0, %v1903
        %1905 = vdwg.mxu0
        %v1907 = vsel %vm795, %v630, 0
        %v1910 = vsel %vm795, %v631, 0
        %v1913 = vsel %vm795, %v632, 0
        %v1916 = vsel %vm795, %v633, 0
        %1918 = vmatprep.subr.mxu0 %v1904
        %1919 = vmatpush1.msra.mxu0 %v1902
        %1920 = vmatprep.subr.mxu0 0.0
        %1921 = vmatpush1.msra.mxu0 0.0
        %1922 = vmatprep.subr.mxu0 0.0
        %1923 = vmatpush1.msra.mxu0 0.0
        %1924 = vmatprep.subr.mxu0 0.0
        %1925 = vmatpush1.msra.mxu0 0.0
        %1926 = vmatprep.subr.mxu0 0.0
        %1927 = vmatpush1.msra.mxu0 0.0
        %1928 = vmatprep.subr.mxu0 0.0
        %1929 = vmatpush1.msra.mxu0 0.0
        %1930 = vmatprep.subr.mxu0 0.0
        %1931 = vmatpush1.msra.mxu0 0.0
        %1932 = vmatprep.subr.mxu0 0.0
        %1933 = vmatpush1.msra.mxu0 0.0
        %1934 = vmatprep.subr.mxu0 0.0
        %1935 = vmatpush1.msra.mxu0 0.0
        %1936 = vmatprep.subr.mxu0 0.0
        %1937 = vmatpush1.msra.mxu0 0.0
        %1938 = vmatprep.subr.mxu0 0.0
        %1939 = vmatpush1.msra.mxu0 0.0
        %1940 = vmatprep.subr.mxu0 0.0
        %1941 = vmatpush1.msra.mxu0 0.0
        %1942 = vmatprep.subr.mxu0 0.0
        %1943 = vmatpush1.msra.mxu0 0.0
        %1944 = vmatprep.subr.mxu0 0.0
        %1945 = vmatpush1.msra.mxu0 0.0
        %1946 = vmatprep.subr.mxu0 0.0
        %1947 = vmatpush1.msra.mxu0 0.0
        %1948 = vmatprep.subr.mxu0 0.0
        %1949 = vmatpush1.msra.mxu0 0.0
        %1950 = vmatprep.subr.mxu0 0.0
        %1951 = vmatpush1.msra.mxu0 0.0
        %1952 = vmatprep.subr.mxu0 0.0
        %1953 = vmatpush1.msra.mxu0 0.0
        %1954 = vmatprep.subr.mxu0 0.0
        %1955 = vmatpush1.msra.mxu0 0.0
        %1956 = vmatprep.subr.mxu0 0.0
        %1957 = vmatpush1.msra.mxu0 0.0
        %1958 = vmatprep.subr.mxu0 0.0
        %1959 = vmatpush1.msra.mxu0 0.0
        %1960 = vmatprep.subr.mxu0 0.0
        %1961 = vmatpush1.msra.mxu0 0.0
        %1962 = vmatprep.subr.mxu0 0.0
        %1963 = vmatpush1.msra.mxu0 0.0
        %1964 = vmatprep.subr.mxu0 0.0
        %1965 = vmatpush1.msra.mxu0 0.0
        %1966 = vmatprep.subr.mxu0 0.0
        %1967 = vmatpush1.msra.mxu0 0.0
        %1968 = vmatprep.subr.mxu0 0.0
        %1969 = vmatpush1.msra.mxu0 0.0
        %1970 = vmatprep.subr.mxu0 0.0
        %1971 = vmatpush1.msra.mxu0 0.0
        %1972 = vmatprep.subr.mxu0 0.0
        %1973 = vmatpush1.msra.mxu0 0.0
        %1974 = vmatprep.subr.mxu0 0.0
        %1975 = vmatpush1.msra.mxu0 0.0
        %1976 = vmatprep.subr.mxu0 0.0
        %1977 = vmatpush1.msra.mxu0 0.0
        %1978 = vmatprep.subr.mxu0 0.0
        %1979 = vmatpush1.msra.mxu0 0.0
        %1980 = vmatprep.subr.mxu0 0.0
        %1981 = vmatpush1.msra.mxu0 0.0
        %1982 = vmatprep.mubr.f32.mxu0 0.0
        %1983 = vmatmul.mubr.f32.gmra.mrb[0].mxu0 %v1907
        %v1984 = vpop.f32.mrb[0].mxu0
        %v1985 = vadd.f32 0.0, %v1984
        %v1986 = vpop.f32.mrb[0].mxu0
        %v1987 = vadd.f32 0.0, %v1986
        %1988 = vmatprep.mubr.f32.mxu0 0.0
        %1989 = vmatmul.mubr.f32.gmra.mrb[0].mxu0 %v1910
        %v1990 = vpop.f32.mrb[0].mxu0
        %v1991 = vadd.f32 0.0, %v1990
        %v1992 = vpop.f32.mrb[0].mxu0
        %v1993 = vadd.f32 0.0, %v1992
        %1994 = vmatprep.mubr.f32.mxu0 0.0
        %1995 = vmatmul.mubr.f32.gmra.mrb[0].mxu0 %v1913
        %v1996 = vpop.f32.mrb[0].mxu0
        %v1997 = vadd.f32 0.0, %v1996
        %v1998 = vpop.f32.mrb[0].mxu0
        %v1999 = vadd.f32 0.0, %v1998
        %2000 = vmatprep.mubr.f32.mxu0 0.0
        %2001 = vmatmul.mubr.f32.gmra.mrb[0].mxu0 %v1916
        %v2002 = vpop.f32.mrb[0].mxu0
        %v2003 = vadd.f32 0.0, %v2002
        %v2004 = vpop.f32.mrb[0].mxu0
        %v2005 = vadd.f32 0.0, %v2004
        %2006 = vdwg.mxu0
        %v2007 = vadd.f32 %v1663, %v1985
        %v2008 = vadd.f32 %v1664, %v1987
        %v2009 = vadd.f32 %v1665, %v1991
        %v2010 = vadd.f32 %v1666, %v1993
        %v2011 = vadd.f32 %v1667, %v1997
        %v2012 = vadd.f32 %v1668, %v1999
        %v2013 = vadd.f32 %v1669, %v2003
        %v2014 = vadd.f32 %v1670, %v2005
        %vm2015 = vcmp.ge.f32.partialorder %v2007, 0.0
        %vm2016 = vcmp.ge.f32.partialorder %v2008, 0.0
        %vm2017 = vcmp.ge.f32.partialorder %v2009, 0.0
        %vm2018 = vcmp.ge.f32.partialorder %v2010, 0.0
        %vm2019 = vcmp.ge.f32.partialorder %v2011, 0.0
        %vm2020 = vcmp.ge.f32.partialorder %v2012, 0.0
        %vm2021 = vcmp.ge.f32.partialorder %v2013, 0.0
        %vm2022 = vcmp.ge.f32.partialorder %v2014, 0.0
        %v2023 = vmul.f32 %v2007, 0.2
        %v2024 = vmul.f32 %v2008, 0.2
        %v2025 = vmul.f32 %v2009, 0.2
        %v2026 = vmul.f32 %v2010, 0.2
        %v2027 = vmul.f32 %v2011, 0.2
        %v2028 = vmul.f32 %v2012, 0.2
        %v2029 = vmul.f32 %v2013, 0.2
        %v2030 = vmul.f32 %v2014, 0.2
        %v2031 = vsel %vm2015, %v2007, %v2023
        %v2032 = vsel %vm2016, %v2008, %v2024
        %v2033 = vsel %vm2017, %v2009, %v2025
        %v2034 = vsel %vm2018, %v2010, %v2026
        %v2035 = vsel %vm2019, %v2011, %v2027
        %v2036 = vsel %vm2020, %v2012, %v2028
        %v2037 = vsel %vm2021, %v2013, %v2029
        %v2038 = vsel %vm2022, %v2014, %v2030
        %2039 = vst [vmem:[%s343] sm:$0xff] %v2031
        %2040 = vst [vmem:[%s343 + $0x8] sm:$0xff] %v2032
        %2041 = vst [vmem:[%s343 + $0x10] sm:$0xff] %v2033
        %2042 = vst [vmem:[%s343 + $0x18] sm:$0xff] %v2034
        %2043 = vst [vmem:[%s343 + $0x20] sm:$0xff] %v2035
        %2044 = vst [vmem:[%s343 + $0x28] sm:$0xff] %v2036
        %2045 = vst [vmem:[%s343 + $0x30] sm:$0xff] %v2037
        %2046 = vst [vmem:[%s343 + $0x38] sm:$0xff] %v2038
        %s2047 = sand.u32 %s205, 1
        %s2048 = scalar_lea.sflag [#allocation4], %s2047
        %s2049 = sand.u32 %s205, 1
        %s2050 = smul.addr %s2049, 64
        %s2051 = scalar_lea.vmem [#allocation8], %s2050
        // Predicated region
        $region65: #{tpu_custom_call.1} parent=51 // pred_check
          %p2052 = pneg %p215
        $region66: #{tpu_custom_call.1} parent=51 // pred_check_branch
          %2054 = sbr.rel (%p2052) target = $region68
        $region67: #{tpu_custom_call.1} parent=51 // pred_region
          %s2055 = smul.u32 4, %s24
          %s2057 = ssub.s32 1024, 1024
          %2058 = vsyncadd %s2048, %s2057
          %s2059 = smul.addr %s2055, 2
          %s2060 = smul.addr %s2059, 128
          %s2061 = scalar_lea.hbm %s8, %s2060
          %s2062 = sshll.u32 %s2051, 4
          %s2063 = int_to_ptr.vmem [resolvable:$true] %s2062
          %2068 = dma.vmem_to_hbm [thread:$0]  %s2063, 1024, %s2061, %s2048, 256, 256, 16
        $region68: #{tpu_custom_call.1} parent=51 // pred_fallthru
          _
      $region52: #{tpu_custom_call.1} parent=5 // pred_fallthru
        _
      %p2069 = scmp.le.s32.totalorder 2, %s19
      // Predicated region
      $region69: #{tpu_custom_call.1} parent=5 // pred_check
        %p2070 = pneg %p2069
      $region70: #{tpu_custom_call.1} parent=5 // pred_check_branch
        %2072 = sbr.rel (%p2070) target = $region72
      $region71: #{tpu_custom_call.1} parent=5 // pred_region
        %s2073 = ssub.s32 %s19, 2
        // Predicated region
        $region73: #{tpu_custom_call.1} parent=71 // pred_check
          %p2074 = pneg %p221
        $region74: #{tpu_custom_call.1} parent=71 // pred_check_branch
          %2076 = sbr.rel (%p2074) target = $region76
        $region75: #{tpu_custom_call.1} parent=71 // pred_region
          %s2077 = sand.u32 %s206, 1
          %s2078 = scalar_lea.sflag [#allocation4], %s2077
          %s2079 = sand.u32 %s206, 1
          %s2080 = smul.addr %s2079, 64
          %s2081 = scalar_lea.vmem [#allocation8], %s2080
          %2082 = dma.done %s2078, 1024
        $region76: #{tpu_custom_call.1} parent=71 // pred_fallthru
          _
      $region72: #{tpu_custom_call.1} parent=5 // pred_fallthru
        _
    $region6: #{tpu_custom_call.1} parent=1 // loop_footer
      %s23 = sadd.s32 1, %s19
    $region7: #{tpu_custom_call.1} parent=1 // loop_footer_branch
      %18 = sbr.rel target = $region3
    $region8: #{tpu_custom_call.1} parent=1 // loop_exit
      _
    %2083 = vsyncpa [#allocation3], 1
    %s2084 = scalar_lea.sflag [#allocation3], 1
    %2085 = vsyncpa %s2084, 1
    %2086 = vsyncpa [#allocation6], 1
    %2087 = vsyncpa [#allocation4], 1
    %s2088 = scalar_lea.sflag [#allocation4], 1
    %2089 = vsyncpa %s2088, 1

</llo_original>
